<compile_context>
chip_gen: v5e
topology: v5e:2x2
jax: 0.10.0
libtpu: 0.0.40
codegen_flags: <defaults>
</compile_context>

<pallas_src>
import functools

import jax
import jax.numpy as jnp
from jax import lax
from jax.experimental import pallas as pl
from jax.experimental.pallas import tpu as pltpu


def _gate_update(gates, c, H):
    """PyTorch LSTM gate order [i | f | g | o], each width H."""
    i = jax.nn.sigmoid(gates[:, 0 * H:1 * H])
    f = jax.nn.sigmoid(gates[:, 1 * H:2 * H])
    g = jnp.tanh(gates[:, 2 * H:3 * H])
    o = jax.nn.sigmoid(gates[:, 3 * H:4 * H])
    c_new = f * c + i * g
    h_new = o * jnp.tanh(c_new)
    return h_new, c_new


def _deepar_kernel(x_ref, wih0_ref, b0_ref, whh0_ref, wih1_ref, whh1_ref,
                   b1_ref, wfc_ref, bfc_ref,
                   out_ref,
                   gin0_ref, hseq_ref,
                   *, T, Bb, H, unroll):
    wdt = whh0_ref.dtype   # MXU operand dtype (bf16 in production, f32 to validate)

    # ---- hoisted layer-0 input projection: one (T*Bb, D) @ (D, 4H) matmul ----
    gin0_ref[...] = (
        jnp.dot(x_ref[0].astype(wdt), wih0_ref[...],
                preferred_element_type=jnp.float32)
        + b0_ref[...]
    )

    whh0 = whh0_ref[...]       # (H, 4H)  layer-0 recurrent
    wih1 = wih1_ref[...]       # (H, 4H)  layer-1 input (from h0_new)
    whh1 = whh1_ref[...]       # (H, 4H)  layer-1 recurrent
    # Hoisted bias broadcast: avoid T sublane-broadcasts inside the loop.
    b1b = jnp.broadcast_to(b1_ref[...], (Bb, 4 * H))

    # ---- time recurrence (sequential; h/c are loop carries in vregs) ----
    def step(t, carry):
        h0, c0, h1, c1 = carry
        row = pl.multiple_of(t * Bb, 8)          # sublane-aligned (Bb % 8 == 0)

        # Layer-1 recurrent matmul depends only on h1_prev, so the MXU can run
        # it while layer-0's sigmoid/tanh chain occupies the EUP.
        g1_rec = jnp.dot(h1.astype(wdt), whh1, preferred_element_type=jnp.float32)

        # Layer 0: input part precomputed; only the recurrent matmul here.
        g0 = gin0_ref[pl.ds(row, Bb), :] + jnp.dot(
            h0.astype(wdt), whh0, preferred_element_type=jnp.float32)
        h0, c0 = _gate_update(g0, c0, H)

        # Layer 1: add the h0_new contribution (no per-step concatenate).
        g1 = g1_rec + jnp.dot(h0.astype(wdt), wih1,
                              preferred_element_type=jnp.float32) + b1b
        h1, c1 = _gate_update(g1, c1, H)

        hseq_ref[pl.ds(row, Bb), :] = h1
        return h0, c0, h1, c1

    z = jnp.zeros((Bb, H), jnp.float32)
    lax.fori_loop(0, T, step, (z, z, z, z), unroll=unroll)

    # ---- fc head: one (T*Bb, H) @ (H, 1) matmul + scalar bias, single store ----
    # NOTE: at production T*Bb, emit a lane-dense output slab (Bb >= 128 on
    # lanes) instead of an N=1 column to avoid masked single-lane stores.
    y = jnp.dot(hseq_ref[...], wfc_ref[...],
                preferred_element_type=jnp.float32) + bfc_ref[0, 0]
    out_ref[0] = y


def prepare_kernel_params(params, mxu_dtype=jnp.bfloat16):
    """One-time weight transposition / fusion (do NOT redo this every forward).

    mxu_dtype=bf16 feeds the MXU bf16 operands (~3x fewer vmatmul passes and
    half the weight VMEM); gate/state math stays f32 inside the kernel.
    Use mxu_dtype=jnp.float32 for tight-tolerance validation.
    """
    H = params["whh0"].shape[1]
    return {
        "H": int(H),
        "wih0_t": jnp.asarray(params["wih0"].T, mxu_dtype),            # (D, 4H)
        "b0": jnp.asarray(params["b0"], jnp.float32)[None, :],         # (1, 4H)
        "whh0_t": jnp.asarray(params["whh0"].T, mxu_dtype),            # (H, 4H)
        "wih1_t": jnp.asarray(params["wih1"].T, mxu_dtype),            # (H, 4H)
        "whh1_t": jnp.asarray(params["whh1"].T, mxu_dtype),            # (H, 4H)
        "b1": jnp.asarray(params["b1"], jnp.float32)[None, :],         # (1, 4H)
        "wfc_t": jnp.asarray(params["wfc"].T, jnp.float32),            # (H, 1)
        "bfc": jnp.asarray(params["bfc"], jnp.float32).reshape(1, 1),  # (1, 1)
    }


def _vmem_estimate_bytes(T, Bb, D, H, w_bytes):
    """Rough per-block VMEM usage (double-buffered inputs/outputs/weights)."""
    x_blk = 2 * T * Bb * D * 4
    out = 2 * T * Bb * 1 * 4
    gin0 = T * Bb * 4 * H * 4
    hseq = T * Bb * H * 4
    wts = 2 * (D * 4 * H + 3 * H * 4 * H) * w_bytes
    biases = 2 * (2 * 4 * H * 4 + H * 4)
    return x_blk + out + gin0 + hseq + wts + biases


def _auto_block_b(Bp, T, D, H, w_bytes, budget_bytes):
    """Largest batch-block (multiple of 8, divides Bp, <= 256 MXU rows) fitting
    the VMEM budget.  Capping below Bp also keeps n_blk >= 2 for large batches
    so v7x's second TensorCore gets work via the 'parallel' grid axis."""
    bb = min(Bp, 256)
    bb -= bb % 8
    while bb > 8 and (Bp % bb != 0
                      or _vmem_estimate_bytes(T, bb, D, H, w_bytes) > budget_bytes):
        bb -= 8
    return max(bb, 8)


def deepar_forward(x, kp, *, block_b=None, vmem_budget_bytes=48 << 20,
                   single_buffer_weights=False):
    """x: (B, T, D) batch-first (PyTorch convention). Returns (B, T, 1)."""
    B, T, D = x.shape
    H = kp["H"]
    w_bytes = kp["whh0_t"].dtype.itemsize

    # Pad batch to a multiple of 8 sublanes (f32).
    Bp = max(8, ((B + 7) // 8) * 8)
    if block_b is None:
        block_b = _auto_block_b(Bp, T, D, H, w_bytes, vmem_budget_bytes)
    assert block_b % 8 == 0 and Bp % block_b == 0
    Bb = block_b
    n_blk = Bp // Bb

    xf = x.astype(jnp.float32)
    if Bp != B:
        xf = jnp.concatenate([xf, jnp.zeros((Bp - B, T, D), jnp.float32)], axis=0)
    # (Bp,T,D) -> (n_blk, Bb, T, D) -> (n_blk, T, Bb, D) -> (n_blk, T*Bb, D)
    # so inside a block, row index = t*Bb + b_local (time-major, sublane aligned).
    x_blk = (xf.reshape(n_blk, Bb, T, D)
               .transpose(0, 2, 1, 3)
               .reshape(n_blk, T * Bb, D))

    kernel = functools.partial(
        _deepar_kernel, T=T, Bb=Bb, H=H,
        unroll=True if T <= 16 else 8)

    def wspec(shape):
        # Grid-invariant weight operands. For very large H on v7x (64 MiB VMEM)
        # enable single buffering to halve their footprint.
        if single_buffer_weights:
            return pl.BlockSpec(shape, lambda j: (0,) * len(shape),
                                pipeline_mode=pl.Buffered(1))
        return pl.BlockSpec(shape, lambda j: (0,) * len(shape))

    # Raise the scoped-VMEM limit explicitly (default is only 16/32 MiB).
    vmem_limit = min(128 << 20,
                     max(32 << 20,
                         int(1.5 * _vmem_estimate_bytes(T, Bb, D, H, w_bytes))))

    out = pl.pallas_call(
        kernel,
        out_shape=jax.ShapeDtypeStruct((n_blk, T * Bb, 1), jnp.float32),
        grid_spec=pltpu.PrefetchScalarGridSpec(
            num_scalar_prefetch=0,
            grid=(n_blk,),
            in_specs=[
                pl.BlockSpec((1, T * Bb, D), lambda j: (j, 0, 0)),   # x block
                wspec((D, 4 * H)),                                   # W_ih0^T
                wspec((1, 4 * H)),                                   # b0 (b_ih+b_hh)
                wspec((H, 4 * H)),                                   # W_hh0^T
                wspec((H, 4 * H)),                                   # W_ih1^T
                wspec((H, 4 * H)),                                   # W_hh1^T
                wspec((1, 4 * H)),                                   # b1 (b_ih+b_hh)
                wspec((H, 1)),                                       # fc weight^T
                pl.BlockSpec(memory_space=pltpu.MemorySpace.SMEM),   # fc bias scalar
            ],
            out_specs=pl.BlockSpec((1, T * Bb, 1), lambda j: (j, 0, 0)),
            scratch_shapes=[
                pltpu.VMEM((T * Bb, 4 * H), jnp.float32),   # hoisted input gates
                pltpu.VMEM((T * Bb, H), jnp.float32),       # h1 sequence
            ],
        ),
        compiler_params=pltpu.CompilerParams(
            # batch blocks are independent -> shard across TCs (v7x megacore)
            dimension_semantics=("parallel",),
            vmem_limit_bytes=vmem_limit),
    )(x_blk, kp["wih0_t"], kp["b0"], kp["whh0_t"], kp["wih1_t"],
      kp["whh1_t"], kp["b1"], kp["wfc_t"], kp["bfc"])

    # (n_blk, T*Bb, 1) -> (B, T, 1)
    y = (out.reshape(n_blk, T, Bb)
            .transpose(0, 2, 1)
            .reshape(Bp, T))[:B]
    return y[..., None]


def init_params(key, input_size, hidden_units):
    """Deterministic init mimicking PyTorch's U(-1/sqrt(H), 1/sqrt(H))."""
    H, D = hidden_units, input_size
    k = 1.0 / jnp.sqrt(jnp.float32(H))
    keys = jax.random.split(key, 9)
    u = lambda kk, shp: jax.random.uniform(kk, shp, jnp.float32, -k, k)
    return {
        # PyTorch nn.LSTM gate order [i, f, g, o]; b = b_ih + b_hh folded together
        "wih0": u(keys[0], (4 * H, D)),
        "whh0": u(keys[1], (4 * H, H)),
        "b0":   u(keys[2], (4 * H,)) + u(keys[3], (4 * H,)),
        "wih1": u(keys[4], (4 * H, H)),
        "whh1": u(keys[5], (4 * H, H)),
        "b1":   u(keys[6], (4 * H,)) + u(keys[7], (4 * H,)),
        "wfc":  u(keys[8], (1, H)),
        "bfc":  jnp.zeros((1,), jnp.float32),
    }


def deepar_reference(x, params):
    """Pure-JAX reference (lax.scan over time) for validation."""
    B, T, D = x.shape
    H = params["whh0"].shape[1]   # whh0 is (4H, H)

    def cell(x_t, h, c, wih, whh, b):
        g = x_t @ wih.T + h @ whh.T + b
        i = jax.nn.sigmoid(g[:, 0 * H:1 * H])
        f = jax.nn.sigmoid(g[:, 1 * H:2 * H])
        gg = jnp.tanh(g[:, 2 * H:3 * H])
        o = jax.nn.sigmoid(g[:, 3 * H:4 * H])
        c_new = f * c + i * gg
        return o * jnp.tanh(c_new), c_new

    def step(carry, x_t):
        h0, c0, h1, c1 = carry
        h0, c0 = cell(x_t, h0, c0, params["wih0"], params["whh0"], params["b0"])
        h1, c1 = cell(h0, h1, c1, params["wih1"], params["whh1"], params["b1"])
        y = h1 @ params["wfc"].T + params["bfc"]
        return (h0, c0, h1, c1), y

    z = jnp.zeros((B, H), jnp.float32)
    _, ys = lax.scan(step, (z, z, z, z), jnp.transpose(x, (1, 0, 2)))
    return jnp.transpose(ys, (1, 0, 2))  # (B, T, 1)


if __name__ == "__main__":
    # H chosen as a multiple of 128 so gate slices are vreg-aligned on lanes.
    B, T, D, H = 4, 8, 8, 128

    key = jax.random.PRNGKey(0)
    pkey, xkey = jax.random.split(key)
    params = init_params(pkey, input_size=D, hidden_units=H)
    x = jax.random.normal(xkey, (B, T, D), jnp.float32)

    ref = jax.block_until_ready(deepar_reference(x, params))

    # 1) f32 MXU operands: tight validation of the kernel structure.
    kp_f32 = prepare_kernel_params(params, mxu_dtype=jnp.float32)
    out_f32 = jax.block_until_ready(deepar_forward(x, kp_f32))
    assert out_f32.shape == (B, T, 1), out_f32.shape
    err32 = float(jnp.max(jnp.abs(out_f32 - ref)))
    assert jnp.allclose(out_f32, ref, rtol=1e-4, atol=1e-4), f"f32 max diff {err32}"

    # 2) bf16 MXU operands (production default): looser tolerance for the
    #    recurrent bf16 matmul drift.
    kp_bf16 = prepare_kernel_params(params)   # bf16 weights, f32 state math
    out_bf16 = jax.block_until_ready(deepar_forward(x, kp_bf16))
    assert out_bf16.shape == (B, T, 1), out_bf16.shape
    err16 = float(jnp.max(jnp.abs(out_bf16 - ref)))
    assert jnp.allclose(out_bf16, ref, rtol=5e-2, atol=5e-2), f"bf16 max diff {err16}"

    print("KERNEL_OK")
</pallas_src>

<mosaic_0001>
module attributes {stable_mosaic.version = 11 : i64} {
  func.func @_deepar_kernel(%arg0: i32, %arg1: memref<1x64x8xf32, #tpu.memory_space<vmem>>, %arg2: memref<8x512xf32, #tpu.memory_space<vmem>>, %arg3: memref<1x512xf32, #tpu.memory_space<vmem>>, %arg4: memref<128x512xf32, #tpu.memory_space<vmem>>, %arg5: memref<128x512xf32, #tpu.memory_space<vmem>>, %arg6: memref<128x512xf32, #tpu.memory_space<vmem>>, %arg7: memref<1x512xf32, #tpu.memory_space<vmem>>, %arg8: memref<128x1xf32, #tpu.memory_space<vmem>>, %arg9: memref<1x1xf32, #tpu.memory_space<smem>>, %arg10: memref<1x64x1xf32, #tpu.memory_space<vmem>>, %arg11: memref<64x512xf32, #tpu.memory_space<vmem>>, %arg12: memref<64x128xf32, #tpu.memory_space<vmem>>) attributes {dimension_semantics = [#tpu.dimension_semantics<parallel>], iteration_bounds = array<i64: 1>, scalar_prefetch = 0 : i64, scratch_operands = 2 : i64, tpu.core_type = #tpu.core_type<tc>, window_params = [{transform_indices = @transform_0, window_bounds = array<i64: 1, 64, 8>}, {pipeline_mode = #tpu.pipeline_mode<synchronous>, transform_indices = @transform_1, window_bounds = array<i64: 8, 512>}, {pipeline_mode = #tpu.pipeline_mode<synchronous>, transform_indices = @transform_2, window_bounds = array<i64: 1, 512>}, {pipeline_mode = #tpu.pipeline_mode<synchronous>, transform_indices = @transform_3, window_bounds = array<i64: 128, 512>}, {pipeline_mode = #tpu.pipeline_mode<synchronous>, transform_indices = @transform_4, window_bounds = array<i64: 128, 512>}, {pipeline_mode = #tpu.pipeline_mode<synchronous>, transform_indices = @transform_5, window_bounds = array<i64: 128, 512>}, {pipeline_mode = #tpu.pipeline_mode<synchronous>, transform_indices = @transform_6, window_bounds = array<i64: 1, 512>}, {pipeline_mode = #tpu.pipeline_mode<synchronous>, transform_indices = @transform_7, window_bounds = array<i64: 128, 1>}, {transform_indices = @transform_8, window_bounds = array<i64: 1, 1>}, {transform_indices = @transform_9, window_bounds = array<i64: 1, 64, 1>}]} {
    %c0 = arith.constant 0 : index
    %c0_0 = arith.constant 0 : index
    %c0_1 = arith.constant 0 : index
    %0 = vector.load %arg1[%c0, %c0_0, %c0_1] : memref<1x64x8xf32, #tpu.memory_space<vmem>>, vector<1x64x8xf32>
    %1 = vector.shape_cast %0 : vector<1x64x8xf32> to vector<64x8xf32>
    %c0_2 = arith.constant 0 : index
    %c0_3 = arith.constant 0 : index
    %2 = vector.load %arg2[%c0_2, %c0_3] : memref<8x512xf32, #tpu.memory_space<vmem>>, vector<8x512xf32>
    %cst = arith.constant dense<0.000000e+00> : vector<64x512xf32>
    %3 = tpu.matmul %1, %2, %cst {dimension_numbers = #tpu.dot_dimension_numbers<[1], [0], [0], [1], [0, 0, 1, 1], [], []>} : vector<64x8xf32>, vector<8x512xf32>, vector<64x512xf32> -> vector<64x512xf32>
    %c0_4 = arith.constant 0 : index
    %c0_5 = arith.constant 0 : index
    %4 = vector.load %arg3[%c0_4, %c0_5] : memref<1x512xf32, #tpu.memory_space<vmem>>, vector<1x512xf32>
    %5 = vector.broadcast %4 : vector<1x512xf32> to vector<64x512xf32>
    %6 = arith.addf %3, %5 : vector<64x512xf32>
    %c0_6 = arith.constant 0 : index
    %c0_7 = arith.constant 0 : index
    %7 = vector.load %arg11[%c0_6, %c0_7] : memref<64x512xf32, #tpu.memory_space<vmem>>, vector<64x512xf32>
    tpu.vector_store %arg11[%c0_6, %c0_7], %6 {strides = array<i32>} : memref<64x512xf32, #tpu.memory_space<vmem>>, vector<64x512xf32>,
    %c0_8 = arith.constant 0 : index
    %c0_9 = arith.constant 0 : index
    %8 = vector.load %arg4[%c0_8, %c0_9] : memref<128x512xf32, #tpu.memory_space<vmem>>, vector<128x512xf32>
    %c0_10 = arith.constant 0 : index
    %c0_11 = arith.constant 0 : index
    %9 = vector.load %arg5[%c0_10, %c0_11] : memref<128x512xf32, #tpu.memory_space<vmem>>, vector<128x512xf32>
    %c0_12 = arith.constant 0 : index
    %c0_13 = arith.constant 0 : index
    %10 = vector.load %arg6[%c0_12, %c0_13] : memref<128x512xf32, #tpu.memory_space<vmem>>, vector<128x512xf32>
    %c0_14 = arith.constant 0 : index
    %c0_15 = arith.constant 0 : index
    %11 = vector.load %arg7[%c0_14, %c0_15] : memref<1x512xf32, #tpu.memory_space<vmem>>, vector<1x512xf32>
    %12 = vector.shape_cast %11 : vector<1x512xf32> to vector<1x512xf32>
    %13 = vector.broadcast %12 : vector<1x512xf32> to vector<8x512xf32>
    %cst_16 = arith.constant 0.000000e+00 : f32
    %14 = vector.broadcast %cst_16 : f32 to vector<8x128xf32>
    %c0_i32 = arith.constant 0 : i32
    %c8_i32 = arith.constant 8 : i32
    %15 = arith.muli %c0_i32, %c8_i32 : i32
    %16 = tpu.assume_multiple %15, 8 : i32
    %cst_17 = arith.constant dense<0.000000e+00> : vector<8x512xf32>
    %17 = tpu.matmul %14, %10, %cst_17 {dimension_numbers = #tpu.dot_dimension_numbers<[1], [0], [0], [1], [0, 0, 1, 1], [], []>} : vector<8x128xf32>, vector<128x512xf32>, vector<8x512xf32> -> vector<8x512xf32>
    %18 = arith.index_cast %16 : i32 to index
    %c0_18 = arith.constant 0 : index
    %19 = vector.load %arg11[%18, %c0_18] : memref<64x512xf32, #tpu.memory_space<vmem>>, vector<8x512xf32>
    %cst_19 = arith.constant dense<0.000000e+00> : vector<8x512xf32>
    %20 = tpu.matmul %14, %8, %cst_19 {dimension_numbers = #tpu.dot_dimension_numbers<[1], [0], [0], [1], [0, 0, 1, 1], [], []>} : vector<8x128xf32>, vector<128x512xf32>, vector<8x512xf32> -> vector<8x512xf32>
    %21 = arith.addf %19, %20 : vector<8x512xf32>
    %22 = vector.extract_strided_slice %21 {offsets = [0, 0], sizes = [8, 128], strides = [1, 1]} : vector<8x512xf32> to vector<8x128xf32>
    %23 = arith.negf %22 : vector<8x128xf32>
    %24 = math.exp %23 : vector<8x128xf32>
    %cst_20 = arith.constant 1.000000e+00 : f32
    %25 = vector.broadcast %cst_20 : f32 to vector<8x128xf32>
    %26 = arith.addf %25, %24 : vector<8x128xf32>
    %27 = arith.divf %25, %26 : vector<8x128xf32>
    %28 = vector.extract_strided_slice %21 {offsets = [0, 128], sizes = [8, 128], strides = [1, 1]} : vector<8x512xf32> to vector<8x128xf32>
    %29 = arith.negf %28 : vector<8x128xf32>
    %30 = math.exp %29 : vector<8x128xf32>
    %cst_21 = arith.constant 1.000000e+00 : f32
    %31 = vector.broadcast %cst_21 : f32 to vector<8x128xf32>
    %32 = arith.addf %31, %30 : vector<8x128xf32>
    %33 = arith.divf %31, %32 : vector<8x128xf32>
    %34 = vector.extract_strided_slice %21 {offsets = [0, 256], sizes = [8, 128], strides = [1, 1]} : vector<8x512xf32> to vector<8x128xf32>
    %35 = math.tanh %34 : vector<8x128xf32>
    %36 = vector.extract_strided_slice %21 {offsets = [0, 384], sizes = [8, 128], strides = [1, 1]} : vector<8x512xf32> to vector<8x128xf32>
    %37 = arith.negf %36 : vector<8x128xf32>
    %38 = math.exp %37 : vector<8x128xf32>
    %cst_22 = arith.constant 1.000000e+00 : f32
    %39 = vector.broadcast %cst_22 : f32 to vector<8x128xf32>
    %40 = arith.addf %39, %38 : vector<8x128xf32>
    %41 = arith.divf %39, %40 : vector<8x128xf32>
    %42 = arith.mulf %33, %14 : vector<8x128xf32>
    %43 = arith.mulf %27, %35 : vector<8x128xf32>
    %44 = arith.addf %42, %43 : vector<8x128xf32>
    %45 = math.tanh %44 : vector<8x128xf32>
    %46 = arith.mulf %41, %45 : vector<8x128xf32>
    %cst_23 = arith.constant dense<0.000000e+00> : vector<8x512xf32>
    %47 = tpu.matmul %46, %9, %cst_23 {dimension_numbers = #tpu.dot_dimension_numbers<[1], [0], [0], [1], [0, 0, 1, 1], [], []>} : vector<8x128xf32>, vector<128x512xf32>, vector<8x512xf32> -> vector<8x512xf32>
    %48 = arith.addf %17, %47 : vector<8x512xf32>
    %49 = arith.addf %48, %13 : vector<8x512xf32>
    %50 = vector.extract_strided_slice %49 {offsets = [0, 0], sizes = [8, 128], strides = [1, 1]} : vector<8x512xf32> to vector<8x128xf32>
    %51 = arith.negf %50 : vector<8x128xf32>
    %52 = math.exp %51 : vector<8x128xf32>
    %cst_24 = arith.constant 1.000000e+00 : f32
    %53 = vector.broadcast %cst_24 : f32 to vector<8x128xf32>
    %54 = arith.addf %53, %52 : vector<8x128xf32>
    %55 = arith.divf %53, %54 : vector<8x128xf32>
    %56 = vector.extract_strided_slice %49 {offsets = [0, 128], sizes = [8, 128], strides = [1, 1]} : vector<8x512xf32> to vector<8x128xf32>
    %57 = arith.negf %56 : vector<8x128xf32>
    %58 = math.exp %57 : vector<8x128xf32>
    %cst_25 = arith.constant 1.000000e+00 : f32
    %59 = vector.broadcast %cst_25 : f32 to vector<8x128xf32>
    %60 = arith.addf %59, %58 : vector<8x128xf32>
    %61 = arith.divf %59, %60 : vector<8x128xf32>
    %62 = vector.extract_strided_slice %49 {offsets = [0, 256], sizes = [8, 128], strides = [1, 1]} : vector<8x512xf32> to vector<8x128xf32>
    %63 = math.tanh %62 : vector<8x128xf32>
    %64 = vector.extract_strided_slice %49 {offsets = [0, 384], sizes = [8, 128], strides = [1, 1]} : vector<8x512xf32> to vector<8x128xf32>
    %65 = arith.negf %64 : vector<8x128xf32>
    %66 = math.exp %65 : vector<8x128xf32>
    %cst_26 = arith.constant 1.000000e+00 : f32
    %67 = vector.broadcast %cst_26 : f32 to vector<8x128xf32>
    %68 = arith.addf %67, %66 : vector<8x128xf32>
    %69 = arith.divf %67, %68 : vector<8x128xf32>
    %70 = arith.mulf %61, %14 : vector<8x128xf32>
    %71 = arith.mulf %55, %63 : vector<8x128xf32>
    %72 = arith.addf %70, %71 : vector<8x128xf32>
    %73 = math.tanh %72 : vector<8x128xf32>
    %74 = arith.mulf %69, %73 : vector<8x128xf32>
    %75 = arith.index_cast %16 : i32 to index
    %c0_27 = arith.constant 0 : index
    %76 = vector.load %arg12[%75, %c0_27] : memref<64x128xf32, #tpu.memory_space<vmem>>, vector<8x128xf32>
    tpu.vector_store %arg12[%75, %c0_27], %74 {strides = array<i32>} : memref<64x128xf32, #tpu.memory_space<vmem>>, vector<8x128xf32>,
    %c1_i32 = arith.constant 1 : i32
    %c8_i32_28 = arith.constant 8 : i32
    %77 = arith.muli %c1_i32, %c8_i32_28 : i32
    %78 = tpu.assume_multiple %77, 8 : i32
    %cst_29 = arith.constant dense<0.000000e+00> : vector<8x512xf32>
    %79 = tpu.matmul %74, %10, %cst_29 {dimension_numbers = #tpu.dot_dimension_numbers<[1], [0], [0], [1], [0, 0, 1, 1], [], []>} : vector<8x128xf32>, vector<128x512xf32>, vector<8x512xf32> -> vector<8x512xf32>
    %80 = arith.index_cast %78 : i32 to index
    %c0_30 = arith.constant 0 : index
    %81 = vector.load %arg11[%80, %c0_30] : memref<64x512xf32, #tpu.memory_space<vmem>>, vector<8x512xf32>
    %cst_31 = arith.constant dense<0.000000e+00> : vector<8x512xf32>
    %82 = tpu.matmul %46, %8, %cst_31 {dimension_numbers = #tpu.dot_dimension_numbers<[1], [0], [0], [1], [0, 0, 1, 1], [], []>} : vector<8x128xf32>, vector<128x512xf32>, vector<8x512xf32> -> vector<8x512xf32>
    %83 = arith.addf %81, %82 : vector<8x512xf32>
    %84 = vector.extract_strided_slice %83 {offsets = [0, 0], sizes = [8, 128], strides = [1, 1]} : vector<8x512xf32> to vector<8x128xf32>
    %85 = arith.negf %84 : vector<8x128xf32>
    %86 = math.exp %85 : vector<8x128xf32>
    %cst_32 = arith.constant 1.000000e+00 : f32
    %87 = vector.broadcast %cst_32 : f32 to vector<8x128xf32>
    %88 = arith.addf %87, %86 : vector<8x128xf32>
    %89 = arith.divf %87, %88 : vector<8x128xf32>
    %90 = vector.extract_strided_slice %83 {offsets = [0, 128], sizes = [8, 128], strides = [1, 1]} : vector<8x512xf32> to vector<8x128xf32>
    %91 = arith.negf %90 : vector<8x128xf32>
    %92 = math.exp %91 : vector<8x128xf32>
    %cst_33 = arith.constant 1.000000e+00 : f32
    %93 = vector.broadcast %cst_33 : f32 to vector<8x128xf32>
    %94 = arith.addf %93, %92 : vector<8x128xf32>
    %95 = arith.divf %93, %94 : vector<8x128xf32>
    %96 = vector.extract_strided_slice %83 {offsets = [0, 256], sizes = [8, 128], strides = [1, 1]} : vector<8x512xf32> to vector<8x128xf32>
    %97 = math.tanh %96 : vector<8x128xf32>
    %98 = vector.extract_strided_slice %83 {offsets = [0, 384], sizes = [8, 128], strides = [1, 1]} : vector<8x512xf32> to vector<8x128xf32>
    %99 = arith.negf %98 : vector<8x128xf32>
    %100 = math.exp %99 : vector<8x128xf32>
    %cst_34 = arith.constant 1.000000e+00 : f32
    %101 = vector.broadcast %cst_34 : f32 to vector<8x128xf32>
    %102 = arith.addf %101, %100 : vector<8x128xf32>
    %103 = arith.divf %101, %102 : vector<8x128xf32>
    %104 = arith.mulf %95, %44 : vector<8x128xf32>
    %105 = arith.mulf %89, %97 : vector<8x128xf32>
    %106 = arith.addf %104, %105 : vector<8x128xf32>
    %107 = math.tanh %106 : vector<8x128xf32>
    %108 = arith.mulf %103, %107 : vector<8x128xf32>
    %cst_35 = arith.constant dense<0.000000e+00> : vector<8x512xf32>
    %109 = tpu.matmul %108, %9, %cst_35 {dimension_numbers = #tpu.dot_dimension_numbers<[1], [0], [0], [1], [0, 0, 1, 1], [], []>} : vector<8x128xf32>, vector<128x512xf32>, vector<8x512xf32> -> vector<8x512xf32>
    %110 = arith.addf %79, %109 : vector<8x512xf32>
    %111 = arith.addf %110, %13 : vector<8x512xf32>
    %112 = vector.extract_strided_slice %111 {offsets = [0, 0], sizes = [8, 128], strides = [1, 1]} : vector<8x512xf32> to vector<8x128xf32>
    %113 = arith.negf %112 : vector<8x128xf32>
    %114 = math.exp %113 : vector<8x128xf32>
    %cst_36 = arith.constant 1.000000e+00 : f32
    %115 = vector.broadcast %cst_36 : f32 to vector<8x128xf32>
    %116 = arith.addf %115, %114 : vector<8x128xf32>
    %117 = arith.divf %115, %116 : vector<8x128xf32>
    %118 = vector.extract_strided_slice %111 {offsets = [0, 128], sizes = [8, 128], strides = [1, 1]} : vector<8x512xf32> to vector<8x128xf32>
    %119 = arith.negf %118 : vector<8x128xf32>
    %120 = math.exp %119 : vector<8x128xf32>
    %cst_37 = arith.constant 1.000000e+00 : f32
    %121 = vector.broadcast %cst_37 : f32 to vector<8x128xf32>
    %122 = arith.addf %121, %120 : vector<8x128xf32>
    %123 = arith.divf %121, %122 : vector<8x128xf32>
    %124 = vector.extract_strided_slice %111 {offsets = [0, 256], sizes = [8, 128], strides = [1, 1]} : vector<8x512xf32> to vector<8x128xf32>
    %125 = math.tanh %124 : vector<8x128xf32>
    %126 = vector.extract_strided_slice %111 {offsets = [0, 384], sizes = [8, 128], strides = [1, 1]} : vector<8x512xf32> to vector<8x128xf32>
    %127 = arith.negf %126 : vector<8x128xf32>
    %128 = math.exp %127 : vector<8x128xf32>
    %cst_38 = arith.constant 1.000000e+00 : f32
    %129 = vector.broadcast %cst_38 : f32 to vector<8x128xf32>
    %130 = arith.addf %129, %128 : vector<8x128xf32>
    %131 = arith.divf %129, %130 : vector<8x128xf32>
    %132 = arith.mulf %123, %72 : vector<8x128xf32>
    %133 = arith.mulf %117, %125 : vector<8x128xf32>
    %134 = arith.addf %132, %133 : vector<8x128xf32>
    %135 = math.tanh %134 : vector<8x128xf32>
    %136 = arith.mulf %131, %135 : vector<8x128xf32>
    %137 = arith.index_cast %78 : i32 to index
    %c0_39 = arith.constant 0 : index
    %138 = vector.load %arg12[%137, %c0_39] : memref<64x128xf32, #tpu.memory_space<vmem>>, vector<8x128xf32>
    tpu.vector_store %arg12[%137, %c0_39], %136 {strides = array<i32>} : memref<64x128xf32, #tpu.memory_space<vmem>>, vector<8x128xf32>,
    %c2_i32 = arith.constant 2 : i32
    %c8_i32_40 = arith.constant 8 : i32
    %139 = arith.muli %c2_i32, %c8_i32_40 : i32
    %140 = tpu.assume_multiple %139, 8 : i32
    %cst_41 = arith.constant dense<0.000000e+00> : vector<8x512xf32>
    %141 = tpu.matmul %136, %10, %cst_41 {dimension_numbers = #tpu.dot_dimension_numbers<[1], [0], [0], [1], [0, 0, 1, 1], [], []>} : vector<8x128xf32>, vector<128x512xf32>, vector<8x512xf32> -> vector<8x512xf32>
    %142 = arith.index_cast %140 : i32 to index
    %c0_42 = arith.constant 0 : index
    %143 = vector.load %arg11[%142, %c0_42] : memref<64x512xf32, #tpu.memory_space<vmem>>, vector<8x512xf32>
    %cst_43 = arith.constant dense<0.000000e+00> : vector<8x512xf32>
    %144 = tpu.matmul %108, %8, %cst_43 {dimension_numbers = #tpu.dot_dimension_numbers<[1], [0], [0], [1], [0, 0, 1, 1], [], []>} : vector<8x128xf32>, vector<128x512xf32>, vector<8x512xf32> -> vector<8x512xf32>
    %145 = arith.addf %143, %144 : vector<8x512xf32>
    %146 = vector.extract_strided_slice %145 {offsets = [0, 0], sizes = [8, 128], strides = [1, 1]} : vector<8x512xf32> to vector<8x128xf32>
    %147 = arith.negf %146 : vector<8x128xf32>
    %148 = math.exp %147 : vector<8x128xf32>
    %cst_44 = arith.constant 1.000000e+00 : f32
    %149 = vector.broadcast %cst_44 : f32 to vector<8x128xf32>
    %150 = arith.addf %149, %148 : vector<8x128xf32>
    %151 = arith.divf %149, %150 : vector<8x128xf32>
    %152 = vector.extract_strided_slice %145 {offsets = [0, 128], sizes = [8, 128], strides = [1, 1]} : vector<8x512xf32> to vector<8x128xf32>
    %153 = arith.negf %152 : vector<8x128xf32>
    %154 = math.exp %153 : vector<8x128xf32>
    %cst_45 = arith.constant 1.000000e+00 : f32
    %155 = vector.broadcast %cst_45 : f32 to vector<8x128xf32>
    %156 = arith.addf %155, %154 : vector<8x128xf32>
    %157 = arith.divf %155, %156 : vector<8x128xf32>
    %158 = vector.extract_strided_slice %145 {offsets = [0, 256], sizes = [8, 128], strides = [1, 1]} : vector<8x512xf32> to vector<8x128xf32>
    %159 = math.tanh %158 : vector<8x128xf32>
    %160 = vector.extract_strided_slice %145 {offsets = [0, 384], sizes = [8, 128], strides = [1, 1]} : vector<8x512xf32> to vector<8x128xf32>
    %161 = arith.negf %160 : vector<8x128xf32>
    %162 = math.exp %161 : vector<8x128xf32>
    %cst_46 = arith.constant 1.000000e+00 : f32
    %163 = vector.broadcast %cst_46 : f32 to vector<8x128xf32>
    %164 = arith.addf %163, %162 : vector<8x128xf32>
    %165 = arith.divf %163, %164 : vector<8x128xf32>
    %166 = arith.mulf %157, %106 : vector<8x128xf32>
    %167 = arith.mulf %151, %159 : vector<8x128xf32>
    %168 = arith.addf %166, %167 : vector<8x128xf32>
    %169 = math.tanh %168 : vector<8x128xf32>
    %170 = arith.mulf %165, %169 : vector<8x128xf32>
    %cst_47 = arith.constant dense<0.000000e+00> : vector<8x512xf32>
    %171 = tpu.matmul %170, %9, %cst_47 {dimension_numbers = #tpu.dot_dimension_numbers<[1], [0], [0], [1], [0, 0, 1, 1], [], []>} : vector<8x128xf32>, vector<128x512xf32>, vector<8x512xf32> -> vector<8x512xf32>
    %172 = arith.addf %141, %171 : vector<8x512xf32>
    %173 = arith.addf %172, %13 : vector<8x512xf32>
    %174 = vector.extract_strided_slice %173 {offsets = [0, 0], sizes = [8, 128], strides = [1, 1]} : vector<8x512xf32> to vector<8x128xf32>
    %175 = arith.negf %174 : vector<8x128xf32>
    %176 = math.exp %175 : vector<8x128xf32>
    %cst_48 = arith.constant 1.000000e+00 : f32
    %177 = vector.broadcast %cst_48 : f32 to vector<8x128xf32>
    %178 = arith.addf %177, %176 : vector<8x128xf32>
    %179 = arith.divf %177, %178 : vector<8x128xf32>
    %180 = vector.extract_strided_slice %173 {offsets = [0, 128], sizes = [8, 128], strides = [1, 1]} : vector<8x512xf32> to vector<8x128xf32>
    %181 = arith.negf %180 : vector<8x128xf32>
    %182 = math.exp %181 : vector<8x128xf32>
    %cst_49 = arith.constant 1.000000e+00 : f32
    %183 = vector.broadcast %cst_49 : f32 to vector<8x128xf32>
    %184 = arith.addf %183, %182 : vector<8x128xf32>
    %185 = arith.divf %183, %184 : vector<8x128xf32>
    %186 = vector.extract_strided_slice %173 {offsets = [0, 256], sizes = [8, 128], strides = [1, 1]} : vector<8x512xf32> to vector<8x128xf32>
    %187 = math.tanh %186 : vector<8x128xf32>
    %188 = vector.extract_strided_slice %173 {offsets = [0, 384], sizes = [8, 128], strides = [1, 1]} : vector<8x512xf32> to vector<8x128xf32>
    %189 = arith.negf %188 : vector<8x128xf32>
    %190 = math.exp %189 : vector<8x128xf32>
    %cst_50 = arith.constant 1.000000e+00 : f32
    %191 = vector.broadcast %cst_50 : f32 to vector<8x128xf32>
    %192 = arith.addf %191, %190 : vector<8x128xf32>
    %193 = arith.divf %191, %192 : vector<8x128xf32>
    %194 = arith.mulf %185, %134 : vector<8x128xf32>
    %195 = arith.mulf %179, %187 : vector<8x128xf32>
    %196 = arith.addf %194, %195 : vector<8x128xf32>
    %197 = math.tanh %196 : vector<8x128xf32>
    %198 = arith.mulf %193, %197 : vector<8x128xf32>
    %199 = arith.index_cast %140 : i32 to index
    %c0_51 = arith.constant 0 : index
    %200 = vector.load %arg12[%199, %c0_51] : memref<64x128xf32, #tpu.memory_space<vmem>>, vector<8x128xf32>
    tpu.vector_store %arg12[%199, %c0_51], %198 {strides = array<i32>} : memref<64x128xf32, #tpu.memory_space<vmem>>, vector<8x128xf32>,
    %c3_i32 = arith.constant 3 : i32
    %c8_i32_52 = arith.constant 8 : i32
    %201 = arith.muli %c3_i32, %c8_i32_52 : i32
    %202 = tpu.assume_multiple %201, 8 : i32
    %cst_53 = arith.constant dense<0.000000e+00> : vector<8x512xf32>
    %203 = tpu.matmul %198, %10, %cst_53 {dimension_numbers = #tpu.dot_dimension_numbers<[1], [0], [0], [1], [0, 0, 1, 1], [], []>} : vector<8x128xf32>, vector<128x512xf32>, vector<8x512xf32> -> vector<8x512xf32>
    %204 = arith.index_cast %202 : i32 to index
    %c0_54 = arith.constant 0 : index
    %205 = vector.load %arg11[%204, %c0_54] : memref<64x512xf32, #tpu.memory_space<vmem>>, vector<8x512xf32>
    %cst_55 = arith.constant dense<0.000000e+00> : vector<8x512xf32>
    %206 = tpu.matmul %170, %8, %cst_55 {dimension_numbers = #tpu.dot_dimension_numbers<[1], [0], [0], [1], [0, 0, 1, 1], [], []>} : vector<8x128xf32>, vector<128x512xf32>, vector<8x512xf32> -> vector<8x512xf32>
    %207 = arith.addf %205, %206 : vector<8x512xf32>
    %208 = vector.extract_strided_slice %207 {offsets = [0, 0], sizes = [8, 128], strides = [1, 1]} : vector<8x512xf32> to vector<8x128xf32>
    %209 = arith.negf %208 : vector<8x128xf32>
    %210 = math.exp %209 : vector<8x128xf32>
    %cst_56 = arith.constant 1.000000e+00 : f32
    %211 = vector.broadcast %cst_56 : f32 to vector<8x128xf32>
    %212 = arith.addf %211, %210 : vector<8x128xf32>
    %213 = arith.divf %211, %212 : vector<8x128xf32>
    %214 = vector.extract_strided_slice %207 {offsets = [0, 128], sizes = [8, 128], strides = [1, 1]} : vector<8x512xf32> to vector<8x128xf32>
    %215 = arith.negf %214 : vector<8x128xf32>
    %216 = math.exp %215 : vector<8x128xf32>
    %cst_57 = arith.constant 1.000000e+00 : f32
    %217 = vector.broadcast %cst_57 : f32 to vector<8x128xf32>
    %218 = arith.addf %217, %216 : vector<8x128xf32>
    %219 = arith.divf %217, %218 : vector<8x128xf32>
    %220 = vector.extract_strided_slice %207 {offsets = [0, 256], sizes = [8, 128], strides = [1, 1]} : vector<8x512xf32> to vector<8x128xf32>
    %221 = math.tanh %220 : vector<8x128xf32>
    %222 = vector.extract_strided_slice %207 {offsets = [0, 384], sizes = [8, 128], strides = [1, 1]} : vector<8x512xf32> to vector<8x128xf32>
    %223 = arith.negf %222 : vector<8x128xf32>
    %224 = math.exp %223 : vector<8x128xf32>
    %cst_58 = arith.constant 1.000000e+00 : f32
    %225 = vector.broadcast %cst_58 : f32 to vector<8x128xf32>
    %226 = arith.addf %225, %224 : vector<8x128xf32>
    %227 = arith.divf %225, %226 : vector<8x128xf32>
    %228 = arith.mulf %219, %168 : vector<8x128xf32>
    %229 = arith.mulf %213, %221 : vector<8x128xf32>
    %230 = arith.addf %228, %229 : vector<8x128xf32>
    %231 = math.tanh %230 : vector<8x128xf32>
    %232 = arith.mulf %227, %231 : vector<8x128xf32>
    %cst_59 = arith.constant dense<0.000000e+00> : vector<8x512xf32>
    %233 = tpu.matmul %232, %9, %cst_59 {dimension_numbers = #tpu.dot_dimension_numbers<[1], [0], [0], [1], [0, 0, 1, 1], [], []>} : vector<8x128xf32>, vector<128x512xf32>, vector<8x512xf32> -> vector<8x512xf32>
    %234 = arith.addf %203, %233 : vector<8x512xf32>
    %235 = arith.addf %234, %13 : vector<8x512xf32>
    %236 = vector.extract_strided_slice %235 {offsets = [0, 0], sizes = [8, 128], strides = [1, 1]} : vector<8x512xf32> to vector<8x128xf32>
    %237 = arith.negf %236 : vector<8x128xf32>
    %238 = math.exp %237 : vector<8x128xf32>
    %cst_60 = arith.constant 1.000000e+00 : f32
    %239 = vector.broadcast %cst_60 : f32 to vector<8x128xf32>
    %240 = arith.addf %239, %238 : vector<8x128xf32>
    %241 = arith.divf %239, %240 : vector<8x128xf32>
    %242 = vector.extract_strided_slice %235 {offsets = [0, 128], sizes = [8, 128], strides = [1, 1]} : vector<8x512xf32> to vector<8x128xf32>
    %243 = arith.negf %242 : vector<8x128xf32>
    %244 = math.exp %243 : vector<8x128xf32>
    %cst_61 = arith.constant 1.000000e+00 : f32
    %245 = vector.broadcast %cst_61 : f32 to vector<8x128xf32>
    %246 = arith.addf %245, %244 : vector<8x128xf32>
    %247 = arith.divf %245, %246 : vector<8x128xf32>
    %248 = vector.extract_strided_slice %235 {offsets = [0, 256], sizes = [8, 128], strides = [1, 1]} : vector<8x512xf32> to vector<8x128xf32>
    %249 = math.tanh %248 : vector<8x128xf32>
    %250 = vector.extract_strided_slice %235 {offsets = [0, 384], sizes = [8, 128], strides = [1, 1]} : vector<8x512xf32> to vector<8x128xf32>
    %251 = arith.negf %250 : vector<8x128xf32>
    %252 = math.exp %251 : vector<8x128xf32>
    %cst_62 = arith.constant 1.000000e+00 : f32
    %253 = vector.broadcast %cst_62 : f32 to vector<8x128xf32>
    %254 = arith.addf %253, %252 : vector<8x128xf32>
    %255 = arith.divf %253, %254 : vector<8x128xf32>
    %256 = arith.mulf %247, %196 : vector<8x128xf32>
    %257 = arith.mulf %241, %249 : vector<8x128xf32>
    %258 = arith.addf %256, %257 : vector<8x128xf32>
    %259 = math.tanh %258 : vector<8x128xf32>
    %260 = arith.mulf %255, %259 : vector<8x128xf32>
    %261 = arith.index_cast %202 : i32 to index
    %c0_63 = arith.constant 0 : index
    %262 = vector.load %arg12[%261, %c0_63] : memref<64x128xf32, #tpu.memory_space<vmem>>, vector<8x128xf32>
    tpu.vector_store %arg12[%261, %c0_63], %260 {strides = array<i32>} : memref<64x128xf32, #tpu.memory_space<vmem>>, vector<8x128xf32>,
    %c4_i32 = arith.constant 4 : i32
    %c8_i32_64 = arith.constant 8 : i32
    %263 = arith.muli %c4_i32, %c8_i32_64 : i32
    %264 = tpu.assume_multiple %263, 8 : i32
    %cst_65 = arith.constant dense<0.000000e+00> : vector<8x512xf32>
    %265 = tpu.matmul %260, %10, %cst_65 {dimension_numbers = #tpu.dot_dimension_numbers<[1], [0], [0], [1], [0, 0, 1, 1], [], []>} : vector<8x128xf32>, vector<128x512xf32>, vector<8x512xf32> -> vector<8x512xf32>
    %266 = arith.index_cast %264 : i32 to index
    %c0_66 = arith.constant 0 : index
    %267 = vector.load %arg11[%266, %c0_66] : memref<64x512xf32, #tpu.memory_space<vmem>>, vector<8x512xf32>
    %cst_67 = arith.constant dense<0.000000e+00> : vector<8x512xf32>
    %268 = tpu.matmul %232, %8, %cst_67 {dimension_numbers = #tpu.dot_dimension_numbers<[1], [0], [0], [1], [0, 0, 1, 1], [], []>} : vector<8x128xf32>, vector<128x512xf32>, vector<8x512xf32> -> vector<8x512xf32>
    %269 = arith.addf %267, %268 : vector<8x512xf32>
    %270 = vector.extract_strided_slice %269 {offsets = [0, 0], sizes = [8, 128], strides = [1, 1]} : vector<8x512xf32> to vector<8x128xf32>
    %271 = arith.negf %270 : vector<8x128xf32>
    %272 = math.exp %271 : vector<8x128xf32>
    %cst_68 = arith.constant 1.000000e+00 : f32
    %273 = vector.broadcast %cst_68 : f32 to vector<8x128xf32>
    %274 = arith.addf %273, %272 : vector<8x128xf32>
    %275 = arith.divf %273, %274 : vector<8x128xf32>
    %276 = vector.extract_strided_slice %269 {offsets = [0, 128], sizes = [8, 128], strides = [1, 1]} : vector<8x512xf32> to vector<8x128xf32>
    %277 = arith.negf %276 : vector<8x128xf32>
    %278 = math.exp %277 : vector<8x128xf32>
    %cst_69 = arith.constant 1.000000e+00 : f32
    %279 = vector.broadcast %cst_69 : f32 to vector<8x128xf32>
    %280 = arith.addf %279, %278 : vector<8x128xf32>
    %281 = arith.divf %279, %280 : vector<8x128xf32>
    %282 = vector.extract_strided_slice %269 {offsets = [0, 256], sizes = [8, 128], strides = [1, 1]} : vector<8x512xf32> to vector<8x128xf32>
    %283 = math.tanh %282 : vector<8x128xf32>
    %284 = vector.extract_strided_slice %269 {offsets = [0, 384], sizes = [8, 128], strides = [1, 1]} : vector<8x512xf32> to vector<8x128xf32>
    %285 = arith.negf %284 : vector<8x128xf32>
    %286 = math.exp %285 : vector<8x128xf32>
    %cst_70 = arith.constant 1.000000e+00 : f32
    %287 = vector.broadcast %cst_70 : f32 to vector<8x128xf32>
    %288 = arith.addf %287, %286 : vector<8x128xf32>
    %289 = arith.divf %287, %288 : vector<8x128xf32>
    %290 = arith.mulf %281, %230 : vector<8x128xf32>
    %291 = arith.mulf %275, %283 : vector<8x128xf32>
    %292 = arith.addf %290, %291 : vector<8x128xf32>
    %293 = math.tanh %292 : vector<8x128xf32>
    %294 = arith.mulf %289, %293 : vector<8x128xf32>
    %cst_71 = arith.constant dense<0.000000e+00> : vector<8x512xf32>
    %295 = tpu.matmul %294, %9, %cst_71 {dimension_numbers = #tpu.dot_dimension_numbers<[1], [0], [0], [1], [0, 0, 1, 1], [], []>} : vector<8x128xf32>, vector<128x512xf32>, vector<8x512xf32> -> vector<8x512xf32>
    %296 = arith.addf %265, %295 : vector<8x512xf32>
    %297 = arith.addf %296, %13 : vector<8x512xf32>
    %298 = vector.extract_strided_slice %297 {offsets = [0, 0], sizes = [8, 128], strides = [1, 1]} : vector<8x512xf32> to vector<8x128xf32>
    %299 = arith.negf %298 : vector<8x128xf32>
    %300 = math.exp %299 : vector<8x128xf32>
    %cst_72 = arith.constant 1.000000e+00 : f32
    %301 = vector.broadcast %cst_72 : f32 to vector<8x128xf32>
    %302 = arith.addf %301, %300 : vector<8x128xf32>
    %303 = arith.divf %301, %302 : vector<8x128xf32>
    %304 = vector.extract_strided_slice %297 {offsets = [0, 128], sizes = [8, 128], strides = [1, 1]} : vector<8x512xf32> to vector<8x128xf32>
    %305 = arith.negf %304 : vector<8x128xf32>
    %306 = math.exp %305 : vector<8x128xf32>
    %cst_73 = arith.constant 1.000000e+00 : f32
    %307 = vector.broadcast %cst_73 : f32 to vector<8x128xf32>
    %308 = arith.addf %307, %306 : vector<8x128xf32>
    %309 = arith.divf %307, %308 : vector<8x128xf32>
    %310 = vector.extract_strided_slice %297 {offsets = [0, 256], sizes = [8, 128], strides = [1, 1]} : vector<8x512xf32> to vector<8x128xf32>
    %311 = math.tanh %310 : vector<8x128xf32>
    %312 = vector.extract_strided_slice %297 {offsets = [0, 384], sizes = [8, 128], strides = [1, 1]} : vector<8x512xf32> to vector<8x128xf32>
    %313 = arith.negf %312 : vector<8x128xf32>
    %314 = math.exp %313 : vector<8x128xf32>
    %cst_74 = arith.constant 1.000000e+00 : f32
    %315 = vector.broadcast %cst_74 : f32 to vector<8x128xf32>
    %316 = arith.addf %315, %314 : vector<8x128xf32>
    %317 = arith.divf %315, %316 : vector<8x128xf32>
    %318 = arith.mulf %309, %258 : vector<8x128xf32>
    %319 = arith.mulf %303, %311 : vector<8x128xf32>
    %320 = arith.addf %318, %319 : vector<8x128xf32>
    %321 = math.tanh %320 : vector<8x128xf32>
    %322 = arith.mulf %317, %321 : vector<8x128xf32>
    %323 = arith.index_cast %264 : i32 to index
    %c0_75 = arith.constant 0 : index
    %324 = vector.load %arg12[%323, %c0_75] : memref<64x128xf32, #tpu.memory_space<vmem>>, vector<8x128xf32>
    tpu.vector_store %arg12[%323, %c0_75], %322 {strides = array<i32>} : memref<64x128xf32, #tpu.memory_space<vmem>>, vector<8x128xf32>,
    %c5_i32 = arith.constant 5 : i32
    %c8_i32_76 = arith.constant 8 : i32
    %325 = arith.muli %c5_i32, %c8_i32_76 : i32
    %326 = tpu.assume_multiple %325, 8 : i32
    %cst_77 = arith.constant dense<0.000000e+00> : vector<8x512xf32>
    %327 = tpu.matmul %322, %10, %cst_77 {dimension_numbers = #tpu.dot_dimension_numbers<[1], [0], [0], [1], [0, 0, 1, 1], [], []>} : vector<8x128xf32>, vector<128x512xf32>, vector<8x512xf32> -> vector<8x512xf32>
    %328 = arith.index_cast %326 : i32 to index
    %c0_78 = arith.constant 0 : index
    %329 = vector.load %arg11[%328, %c0_78] : memref<64x512xf32, #tpu.memory_space<vmem>>, vector<8x512xf32>
    %cst_79 = arith.constant dense<0.000000e+00> : vector<8x512xf32>
    %330 = tpu.matmul %294, %8, %cst_79 {dimension_numbers = #tpu.dot_dimension_numbers<[1], [0], [0], [1], [0, 0, 1, 1], [], []>} : vector<8x128xf32>, vector<128x512xf32>, vector<8x512xf32> -> vector<8x512xf32>
    %331 = arith.addf %329, %330 : vector<8x512xf32>
    %332 = vector.extract_strided_slice %331 {offsets = [0, 0], sizes = [8, 128], strides = [1, 1]} : vector<8x512xf32> to vector<8x128xf32>
    %333 = arith.negf %332 : vector<8x128xf32>
    %334 = math.exp %333 : vector<8x128xf32>
    %cst_80 = arith.constant 1.000000e+00 : f32
    %335 = vector.broadcast %cst_80 : f32 to vector<8x128xf32>
    %336 = arith.addf %335, %334 : vector<8x128xf32>
    %337 = arith.divf %335, %336 : vector<8x128xf32>
    %338 = vector.extract_strided_slice %331 {offsets = [0, 128], sizes = [8, 128], strides = [1, 1]} : vector<8x512xf32> to vector<8x128xf32>
    %339 = arith.negf %338 : vector<8x128xf32>
    %340 = math.exp %339 : vector<8x128xf32>
    %cst_81 = arith.constant 1.000000e+00 : f32
    %341 = vector.broadcast %cst_81 : f32 to vector<8x128xf32>
    %342 = arith.addf %341, %340 : vector<8x128xf32>
    %343 = arith.divf %341, %342 : vector<8x128xf32>
    %344 = vector.extract_strided_slice %331 {offsets = [0, 256], sizes = [8, 128], strides = [1, 1]} : vector<8x512xf32> to vector<8x128xf32>
    %345 = math.tanh %344 : vector<8x128xf32>
    %346 = vector.extract_strided_slice %331 {offsets = [0, 384], sizes = [8, 128], strides = [1, 1]} : vector<8x512xf32> to vector<8x128xf32>
    %347 = arith.negf %346 : vector<8x128xf32>
    %348 = math.exp %347 : vector<8x128xf32>
    %cst_82 = arith.constant 1.000000e+00 : f32
    %349 = vector.broadcast %cst_82 : f32 to vector<8x128xf32>
    %350 = arith.addf %349, %348 : vector<8x128xf32>
    %351 = arith.divf %349, %350 : vector<8x128xf32>
    %352 = arith.mulf %343, %292 : vector<8x128xf32>
    %353 = arith.mulf %337, %345 : vector<8x128xf32>
    %354 = arith.addf %352, %353 : vector<8x128xf32>
    %355 = math.tanh %354 : vector<8x128xf32>
    %356 = arith.mulf %351, %355 : vector<8x128xf32>
    %cst_83 = arith.constant dense<0.000000e+00> : vector<8x512xf32>
    %357 = tpu.matmul %356, %9, %cst_83 {dimension_numbers = #tpu.dot_dimension_numbers<[1], [0], [0], [1], [0, 0, 1, 1], [], []>} : vector<8x128xf32>, vector<128x512xf32>, vector<8x512xf32> -> vector<8x512xf32>
    %358 = arith.addf %327, %357 : vector<8x512xf32>
    %359 = arith.addf %358, %13 : vector<8x512xf32>
    %360 = vector.extract_strided_slice %359 {offsets = [0, 0], sizes = [8, 128], strides = [1, 1]} : vector<8x512xf32> to vector<8x128xf32>
    %361 = arith.negf %360 : vector<8x128xf32>
    %362 = math.exp %361 : vector<8x128xf32>
    %cst_84 = arith.constant 1.000000e+00 : f32
    %363 = vector.broadcast %cst_84 : f32 to vector<8x128xf32>
    %364 = arith.addf %363, %362 : vector<8x128xf32>
    %365 = arith.divf %363, %364 : vector<8x128xf32>
    %366 = vector.extract_strided_slice %359 {offsets = [0, 128], sizes = [8, 128], strides = [1, 1]} : vector<8x512xf32> to vector<8x128xf32>
    %367 = arith.negf %366 : vector<8x128xf32>
    %368 = math.exp %367 : vector<8x128xf32>
    %cst_85 = arith.constant 1.000000e+00 : f32
    %369 = vector.broadcast %cst_85 : f32 to vector<8x128xf32>
    %370 = arith.addf %369, %368 : vector<8x128xf32>
    %371 = arith.divf %369, %370 : vector<8x128xf32>
    %372 = vector.extract_strided_slice %359 {offsets = [0, 256], sizes = [8, 128], strides = [1, 1]} : vector<8x512xf32> to vector<8x128xf32>
    %373 = math.tanh %372 : vector<8x128xf32>
    %374 = vector.extract_strided_slice %359 {offsets = [0, 384], sizes = [8, 128], strides = [1, 1]} : vector<8x512xf32> to vector<8x128xf32>
    %375 = arith.negf %374 : vector<8x128xf32>
    %376 = math.exp %375 : vector<8x128xf32>
    %cst_86 = arith.constant 1.000000e+00 : f32
    %377 = vector.broadcast %cst_86 : f32 to vector<8x128xf32>
    %378 = arith.addf %377, %376 : vector<8x128xf32>
    %379 = arith.divf %377, %378 : vector<8x128xf32>
    %380 = arith.mulf %371, %320 : vector<8x128xf32>
    %381 = arith.mulf %365, %373 : vector<8x128xf32>
    %382 = arith.addf %380, %381 : vector<8x128xf32>
    %383 = math.tanh %382 : vector<8x128xf32>
    %384 = arith.mulf %379, %383 : vector<8x128xf32>
    %385 = arith.index_cast %326 : i32 to index
    %c0_87 = arith.constant 0 : index
    %386 = vector.load %arg12[%385, %c0_87] : memref<64x128xf32, #tpu.memory_space<vmem>>, vector<8x128xf32>
    tpu.vector_store %arg12[%385, %c0_87], %384 {strides = array<i32>} : memref<64x128xf32, #tpu.memory_space<vmem>>, vector<8x128xf32>,
    %c6_i32 = arith.constant 6 : i32
    %c8_i32_88 = arith.constant 8 : i32
    %387 = arith.muli %c6_i32, %c8_i32_88 : i32
    %388 = tpu.assume_multiple %387, 8 : i32
    %cst_89 = arith.constant dense<0.000000e+00> : vector<8x512xf32>
    %389 = tpu.matmul %384, %10, %cst_89 {dimension_numbers = #tpu.dot_dimension_numbers<[1], [0], [0], [1], [0, 0, 1, 1], [], []>} : vector<8x128xf32>, vector<128x512xf32>, vector<8x512xf32> -> vector<8x512xf32>
    %390 = arith.index_cast %388 : i32 to index
    %c0_90 = arith.constant 0 : index
    %391 = vector.load %arg11[%390, %c0_90] : memref<64x512xf32, #tpu.memory_space<vmem>>, vector<8x512xf32>
    %cst_91 = arith.constant dense<0.000000e+00> : vector<8x512xf32>
    %392 = tpu.matmul %356, %8, %cst_91 {dimension_numbers = #tpu.dot_dimension_numbers<[1], [0], [0], [1], [0, 0, 1, 1], [], []>} : vector<8x128xf32>, vector<128x512xf32>, vector<8x512xf32> -> vector<8x512xf32>
    %393 = arith.addf %391, %392 : vector<8x512xf32>
    %394 = vector.extract_strided_slice %393 {offsets = [0, 0], sizes = [8, 128], strides = [1, 1]} : vector<8x512xf32> to vector<8x128xf32>
    %395 = arith.negf %394 : vector<8x128xf32>
    %396 = math.exp %395 : vector<8x128xf32>
    %cst_92 = arith.constant 1.000000e+00 : f32
    %397 = vector.broadcast %cst_92 : f32 to vector<8x128xf32>
    %398 = arith.addf %397, %396 : vector<8x128xf32>
    %399 = arith.divf %397, %398 : vector<8x128xf32>
    %400 = vector.extract_strided_slice %393 {offsets = [0, 128], sizes = [8, 128], strides = [1, 1]} : vector<8x512xf32> to vector<8x128xf32>
    %401 = arith.negf %400 : vector<8x128xf32>
    %402 = math.exp %401 : vector<8x128xf32>
    %cst_93 = arith.constant 1.000000e+00 : f32
    %403 = vector.broadcast %cst_93 : f32 to vector<8x128xf32>
    %404 = arith.addf %403, %402 : vector<8x128xf32>
    %405 = arith.divf %403, %404 : vector<8x128xf32>
    %406 = vector.extract_strided_slice %393 {offsets = [0, 256], sizes = [8, 128], strides = [1, 1]} : vector<8x512xf32> to vector<8x128xf32>
    %407 = math.tanh %406 : vector<8x128xf32>
    %408 = vector.extract_strided_slice %393 {offsets = [0, 384], sizes = [8, 128], strides = [1, 1]} : vector<8x512xf32> to vector<8x128xf32>
    %409 = arith.negf %408 : vector<8x128xf32>
    %410 = math.exp %409 : vector<8x128xf32>
    %cst_94 = arith.constant 1.000000e+00 : f32
    %411 = vector.broadcast %cst_94 : f32 to vector<8x128xf32>
    %412 = arith.addf %411, %410 : vector<8x128xf32>
    %413 = arith.divf %411, %412 : vector<8x128xf32>
    %414 = arith.mulf %405, %354 : vector<8x128xf32>
    %415 = arith.mulf %399, %407 : vector<8x128xf32>
    %416 = arith.addf %414, %415 : vector<8x128xf32>
    %417 = math.tanh %416 : vector<8x128xf32>
    %418 = arith.mulf %413, %417 : vector<8x128xf32>
    %cst_95 = arith.constant dense<0.000000e+00> : vector<8x512xf32>
    %419 = tpu.matmul %418, %9, %cst_95 {dimension_numbers = #tpu.dot_dimension_numbers<[1], [0], [0], [1], [0, 0, 1, 1], [], []>} : vector<8x128xf32>, vector<128x512xf32>, vector<8x512xf32> -> vector<8x512xf32>
    %420 = arith.addf %389, %419 : vector<8x512xf32>
    %421 = arith.addf %420, %13 : vector<8x512xf32>
    %422 = vector.extract_strided_slice %421 {offsets = [0, 0], sizes = [8, 128], strides = [1, 1]} : vector<8x512xf32> to vector<8x128xf32>
    %423 = arith.negf %422 : vector<8x128xf32>
    %424 = math.exp %423 : vector<8x128xf32>
    %cst_96 = arith.constant 1.000000e+00 : f32
    %425 = vector.broadcast %cst_96 : f32 to vector<8x128xf32>
    %426 = arith.addf %425, %424 : vector<8x128xf32>
    %427 = arith.divf %425, %426 : vector<8x128xf32>
    %428 = vector.extract_strided_slice %421 {offsets = [0, 128], sizes = [8, 128], strides = [1, 1]} : vector<8x512xf32> to vector<8x128xf32>
    %429 = arith.negf %428 : vector<8x128xf32>
    %430 = math.exp %429 : vector<8x128xf32>
    %cst_97 = arith.constant 1.000000e+00 : f32
    %431 = vector.broadcast %cst_97 : f32 to vector<8x128xf32>
    %432 = arith.addf %431, %430 : vector<8x128xf32>
    %433 = arith.divf %431, %432 : vector<8x128xf32>
    %434 = vector.extract_strided_slice %421 {offsets = [0, 256], sizes = [8, 128], strides = [1, 1]} : vector<8x512xf32> to vector<8x128xf32>
    %435 = math.tanh %434 : vector<8x128xf32>
    %436 = vector.extract_strided_slice %421 {offsets = [0, 384], sizes = [8, 128], strides = [1, 1]} : vector<8x512xf32> to vector<8x128xf32>
    %437 = arith.negf %436 : vector<8x128xf32>
    %438 = math.exp %437 : vector<8x128xf32>
    %cst_98 = arith.constant 1.000000e+00 : f32
    %439 = vector.broadcast %cst_98 : f32 to vector<8x128xf32>
    %440 = arith.addf %439, %438 : vector<8x128xf32>
    %441 = arith.divf %439, %440 : vector<8x128xf32>
    %442 = arith.mulf %433, %382 : vector<8x128xf32>
    %443 = arith.mulf %427, %435 : vector<8x128xf32>
    %444 = arith.addf %442, %443 : vector<8x128xf32>
    %445 = math.tanh %444 : vector<8x128xf32>
    %446 = arith.mulf %441, %445 : vector<8x128xf32>
    %447 = arith.index_cast %388 : i32 to index
    %c0_99 = arith.constant 0 : index
    %448 = vector.load %arg12[%447, %c0_99] : memref<64x128xf32, #tpu.memory_space<vmem>>, vector<8x128xf32>
    tpu.vector_store %arg12[%447, %c0_99], %446 {strides = array<i32>} : memref<64x128xf32, #tpu.memory_space<vmem>>, vector<8x128xf32>,
    %c7_i32 = arith.constant 7 : i32
    %c8_i32_100 = arith.constant 8 : i32
    %449 = arith.muli %c7_i32, %c8_i32_100 : i32
    %450 = tpu.assume_multiple %449, 8 : i32
    %cst_101 = arith.constant dense<0.000000e+00> : vector<8x512xf32>
    %451 = tpu.matmul %446, %10, %cst_101 {dimension_numbers = #tpu.dot_dimension_numbers<[1], [0], [0], [1], [0, 0, 1, 1], [], []>} : vector<8x128xf32>, vector<128x512xf32>, vector<8x512xf32> -> vector<8x512xf32>
    %452 = arith.index_cast %450 : i32 to index
    %c0_102 = arith.constant 0 : index
    %453 = vector.load %arg11[%452, %c0_102] : memref<64x512xf32, #tpu.memory_space<vmem>>, vector<8x512xf32>
    %cst_103 = arith.constant dense<0.000000e+00> : vector<8x512xf32>
    %454 = tpu.matmul %418, %8, %cst_103 {dimension_numbers = #tpu.dot_dimension_numbers<[1], [0], [0], [1], [0, 0, 1, 1], [], []>} : vector<8x128xf32>, vector<128x512xf32>, vector<8x512xf32> -> vector<8x512xf32>
    %455 = arith.addf %453, %454 : vector<8x512xf32>
    %456 = vector.extract_strided_slice %455 {offsets = [0, 0], sizes = [8, 128], strides = [1, 1]} : vector<8x512xf32> to vector<8x128xf32>
    %457 = arith.negf %456 : vector<8x128xf32>
    %458 = math.exp %457 : vector<8x128xf32>
    %cst_104 = arith.constant 1.000000e+00 : f32
    %459 = vector.broadcast %cst_104 : f32 to vector<8x128xf32>
    %460 = arith.addf %459, %458 : vector<8x128xf32>
    %461 = arith.divf %459, %460 : vector<8x128xf32>
    %462 = vector.extract_strided_slice %455 {offsets = [0, 128], sizes = [8, 128], strides = [1, 1]} : vector<8x512xf32> to vector<8x128xf32>
    %463 = arith.negf %462 : vector<8x128xf32>
    %464 = math.exp %463 : vector<8x128xf32>
    %cst_105 = arith.constant 1.000000e+00 : f32
    %465 = vector.broadcast %cst_105 : f32 to vector<8x128xf32>
    %466 = arith.addf %465, %464 : vector<8x128xf32>
    %467 = arith.divf %465, %466 : vector<8x128xf32>
    %468 = vector.extract_strided_slice %455 {offsets = [0, 256], sizes = [8, 128], strides = [1, 1]} : vector<8x512xf32> to vector<8x128xf32>
    %469 = math.tanh %468 : vector<8x128xf32>
    %470 = vector.extract_strided_slice %455 {offsets = [0, 384], sizes = [8, 128], strides = [1, 1]} : vector<8x512xf32> to vector<8x128xf32>
    %471 = arith.negf %470 : vector<8x128xf32>
    %472 = math.exp %471 : vector<8x128xf32>
    %cst_106 = arith.constant 1.000000e+00 : f32
    %473 = vector.broadcast %cst_106 : f32 to vector<8x128xf32>
    %474 = arith.addf %473, %472 : vector<8x128xf32>
    %475 = arith.divf %473, %474 : vector<8x128xf32>
    %476 = arith.mulf %467, %416 : vector<8x128xf32>
    %477 = arith.mulf %461, %469 : vector<8x128xf32>
    %478 = arith.addf %476, %477 : vector<8x128xf32>
    %479 = math.tanh %478 : vector<8x128xf32>
    %480 = arith.mulf %475, %479 : vector<8x128xf32>
    %cst_107 = arith.constant dense<0.000000e+00> : vector<8x512xf32>
    %481 = tpu.matmul %480, %9, %cst_107 {dimension_numbers = #tpu.dot_dimension_numbers<[1], [0], [0], [1], [0, 0, 1, 1], [], []>} : vector<8x128xf32>, vector<128x512xf32>, vector<8x512xf32> -> vector<8x512xf32>
    %482 = arith.addf %451, %481 : vector<8x512xf32>
    %483 = arith.addf %482, %13 : vector<8x512xf32>
    %484 = vector.extract_strided_slice %483 {offsets = [0, 0], sizes = [8, 128], strides = [1, 1]} : vector<8x512xf32> to vector<8x128xf32>
    %485 = arith.negf %484 : vector<8x128xf32>
    %486 = math.exp %485 : vector<8x128xf32>
    %cst_108 = arith.constant 1.000000e+00 : f32
    %487 = vector.broadcast %cst_108 : f32 to vector<8x128xf32>
    %488 = arith.addf %487, %486 : vector<8x128xf32>
    %489 = arith.divf %487, %488 : vector<8x128xf32>
    %490 = vector.extract_strided_slice %483 {offsets = [0, 128], sizes = [8, 128], strides = [1, 1]} : vector<8x512xf32> to vector<8x128xf32>
    %491 = arith.negf %490 : vector<8x128xf32>
    %492 = math.exp %491 : vector<8x128xf32>
    %cst_109 = arith.constant 1.000000e+00 : f32
    %493 = vector.broadcast %cst_109 : f32 to vector<8x128xf32>
    %494 = arith.addf %493, %492 : vector<8x128xf32>
    %495 = arith.divf %493, %494 : vector<8x128xf32>
    %496 = vector.extract_strided_slice %483 {offsets = [0, 256], sizes = [8, 128], strides = [1, 1]} : vector<8x512xf32> to vector<8x128xf32>
    %497 = math.tanh %496 : vector<8x128xf32>
    %498 = vector.extract_strided_slice %483 {offsets = [0, 384], sizes = [8, 128], strides = [1, 1]} : vector<8x512xf32> to vector<8x128xf32>
    %499 = arith.negf %498 : vector<8x128xf32>
    %500 = math.exp %499 : vector<8x128xf32>
    %cst_110 = arith.constant 1.000000e+00 : f32
    %501 = vector.broadcast %cst_110 : f32 to vector<8x128xf32>
    %502 = arith.addf %501, %500 : vector<8x128xf32>
    %503 = arith.divf %501, %502 : vector<8x128xf32>
    %504 = arith.mulf %495, %444 : vector<8x128xf32>
    %505 = arith.mulf %489, %497 : vector<8x128xf32>
    %506 = arith.addf %504, %505 : vector<8x128xf32>
    %507 = math.tanh %506 : vector<8x128xf32>
    %508 = arith.mulf %503, %507 : vector<8x128xf32>
    %509 = arith.index_cast %450 : i32 to index
    %c0_111 = arith.constant 0 : index
    %510 = vector.load %arg12[%509, %c0_111] : memref<64x128xf32, #tpu.memory_space<vmem>>, vector<8x128xf32>
    tpu.vector_store %arg12[%509, %c0_111], %508 {strides = array<i32>} : memref<64x128xf32, #tpu.memory_space<vmem>>, vector<8x128xf32>,
    %c8_i32_112 = arith.constant 8 : i32
    %c0_113 = arith.constant 0 : index
    %c0_114 = arith.constant 0 : index
    %511 = vector.load %arg12[%c0_113, %c0_114] : memref<64x128xf32, #tpu.memory_space<vmem>>, vector<64x128xf32>
    %c0_115 = arith.constant 0 : index
    %c0_116 = arith.constant 0 : index
    %512 = vector.load %arg8[%c0_115, %c0_116] : memref<128x1xf32, #tpu.memory_space<vmem>>, vector<128x1xf32>
    %cst_117 = arith.constant dense<0.000000e+00> : vector<64x1xf32>
    %513 = tpu.matmul %511, %512, %cst_117 {dimension_numbers = #tpu.dot_dimension_numbers<[1], [0], [0], [1], [0, 0, 1, 1], [], []>} : vector<64x128xf32>, vector<128x1xf32>, vector<64x1xf32> -> vector<64x1xf32>
    %c0_118 = arith.constant 0 : index
    %c0_119 = arith.constant 0 : index
    %514 = memref.load %arg9[%c0_118, %c0_119] : memref<1x1xf32, #tpu.memory_space<smem>>
    %515 = vector.broadcast %514 : f32 to vector<64x1xf32>
    %516 = arith.addf %513, %515 : vector<64x1xf32>
    %c0_120 = arith.constant 0 : index
    %c0_121 = arith.constant 0 : index
    %c0_122 = arith.constant 0 : index
    %517 = vector.load %arg10[%c0_120, %c0_121, %c0_122] : memref<1x64x1xf32, #tpu.memory_space<vmem>>, vector<1x64x1xf32>
    %518 = vector.shape_cast %517 : vector<1x64x1xf32> to vector<64x1xf32>
    %519 = vector.shape_cast %516 : vector<64x1xf32> to vector<1x64x1xf32>
    tpu.vector_store %arg10[%c0_120, %c0_121, %c0_122], %519 {strides = array<i32>} : memref<1x64x1xf32, #tpu.memory_space<vmem>>, vector<1x64x1xf32>,
    return
  }
  func.func @transform_0(%arg0: i32) -> (i32, i32, i32) {
    %c0_i32 = arith.constant 0 : i32
    %c0_i32_0 = arith.constant 0 : i32
    %c0_i32_1 = arith.constant 0 : i32
    return %arg0, %c0_i32, %c0_i32_0 : i32, i32, i32
  }
  func.func @transform_1(%arg0: i32) -> (i32, i32) {
    %c0_i32 = arith.constant 0 : i32
    %c0_i32_0 = arith.constant 0 : i32
    %c0_i32_1 = arith.constant 0 : i32
    return %c0_i32, %c0_i32_0 : i32, i32
  }
  func.func @transform_2(%arg0: i32) -> (i32, i32) {
    %c0_i32 = arith.constant 0 : i32
    %c0_i32_0 = arith.constant 0 : i32
    %c0_i32_1 = arith.constant 0 : i32
    return %c0_i32, %c0_i32_0 : i32, i32
  }
  func.func @transform_3(%arg0: i32) -> (i32, i32) {
    %c0_i32 = arith.constant 0 : i32
    %c0_i32_0 = arith.constant 0 : i32
    %c0_i32_1 = arith.constant 0 : i32
    return %c0_i32, %c0_i32_0 : i32, i32
  }
  func.func @transform_4(%arg0: i32) -> (i32, i32) {
    %c0_i32 = arith.constant 0 : i32
    %c0_i32_0 = arith.constant 0 : i32
    %c0_i32_1 = arith.constant 0 : i32
    return %c0_i32, %c0_i32_0 : i32, i32
  }
  func.func @transform_5(%arg0: i32) -> (i32, i32) {
    %c0_i32 = arith.constant 0 : i32
    %c0_i32_0 = arith.constant 0 : i32
    %c0_i32_1 = arith.constant 0 : i32
    return %c0_i32, %c0_i32_0 : i32, i32
  }
  func.func @transform_6(%arg0: i32) -> (i32, i32) {
    %c0_i32 = arith.constant 0 : i32
    %c0_i32_0 = arith.constant 0 : i32
    %c0_i32_1 = arith.constant 0 : i32
    return %c0_i32, %c0_i32_0 : i32, i32
  }
  func.func @transform_7(%arg0: i32) -> (i32, i32) {
    %c0_i32 = arith.constant 0 : i32
    %c0_i32_0 = arith.constant 0 : i32
    %c0_i32_1 = arith.constant 0 : i32
    return %c0_i32, %c0_i32_0 : i32, i32
  }
  func.func @transform_8(%arg0: i32) -> (i32, i32) {
    %c0_i32 = arith.constant 0 : i32
    %c0_i32_0 = arith.constant 0 : i32
    %c0_i32_1 = arith.constant 0 : i32
    return %c0_i32, %c0_i32_0 : i32, i32
  }
  func.func @transform_9(%arg0: i32) -> (i32, i32, i32) {
    %c0_i32 = arith.constant 0 : i32
    %c0_i32_0 = arith.constant 0 : i32
    %c0_i32_1 = arith.constant 0 : i32
    return %arg0, %c0_i32, %c0_i32_0 : i32, i32, i32
  }
}

</mosaic_0001>

<llo_original>
// kernel: tpu_custom_call.1
$region0: #{tpu_custom_call.1}
  #allocation0 [shape = 'u32[]', space=smem, size = 0x4, offset = 0x4, fixed_abs, tag = 'smem constant byte address 0x4 - core index']
  #allocation1 [shape = 'u32[72,128]{1,0:T(1,128)}', space=vmem, size = 0x9000, scoped, tag = 'internal scratch']
  #allocation2 [shape = 'f32[64,512]{1,0:T(8,128)}', space=vmem, size = 0x20000, scoped, tag = 'scratch operand']
  #allocation3 [shape = 'f32[64,128]{1,0:T(8,128)}', space=vmem, size = 0x8000, scoped, tag = 'scratch operand']
  #allocation4 [shape = 'f32[1,1]{1,0:T(1,128)S(6)}', space=smem, size = 0x200, scoped, tag = 'scoped memory for tpu_custom_call.1']
  %s0 = inlined_call_operand.vmem [shape: f32[1,64,8], index: 0, kind: input, shape index: {}]
  %s1 = inlined_call_operand.vmem [shape: f32[8,512], index: 1, kind: input, shape index: {}]
  %s2 = inlined_call_operand.vmem [shape: f32[1,512], index: 2, kind: input, shape index: {}]
  %s3 = inlined_call_operand.hbm [shape: f32[128,512], index: 3, kind: input, shape index: {}]
  %s4 = inlined_call_operand.hbm [shape: f32[128,512], index: 4, kind: input, shape index: {}]
  %s5 = inlined_call_operand.hbm [shape: f32[128,512], index: 5, kind: input, shape index: {}]
  %s6 = inlined_call_operand.vmem [shape: f32[1,512], index: 6, kind: input, shape index: {}]
  %s7 = inlined_call_operand.vmem [shape: f32[128,1], index: 7, kind: input, shape index: {}]
  %s8 = inlined_call_operand.<no memory space> [shape: f32[1,1], index: 8, kind: input, shape index: {}]
  %s9 = inlined_call_operand.vmem [shape: f32[1,64,1], index: 9, kind: output, shape index: {}]
  %s10 = sld [smem:[#allocation0]]
  $region58: #{tpu_custom_call.1} parent=0
    _
  %s12 = ssub.s32 1, %s10
  %s13 = scalar_select 0, %s12, %s10
  %14 = sst [smem:[#allocation4]] %s8
  $region1: #{tpu_custom_call.1} parent=0
    #allocation5 [shape = 'u8[262144]{0}', space=vmem, size = 0x40000, scoped, tag = 'input window, operand 3, single buffered']
    #allocation6 [shape = 's32[1]{0}', space=sflag, size = 0x4, scoped, tag = 'scoped memory for tpu_custom_call.1']
    #allocation7 [shape = 'u8[262144]{0}', space=vmem, size = 0x40000, scoped, tag = 'input window, operand 4, single buffered']
    #allocation8 [shape = 's32[1]{0}', space=sflag, size = 0x4, scoped, tag = 'scoped memory for tpu_custom_call.1']
    #allocation9 [shape = 'u8[262144]{0}', space=vmem, size = 0x40000, scoped, tag = 'input window, operand 5, single buffered']
    %15 = vsyncpa [#allocation6], 0
    %16 = vsyncpa [#allocation8], 0
    // Predicated region
    $region2: #{tpu_custom_call.1} parent=1 // pred_check
      _
    $region3: #{tpu_custom_call.1} parent=1 // pred_check_branch
      %18 = sbr.rel (0) target = $region5
    $region4: #{tpu_custom_call.1} parent=1 // pred_region
      _
    $region5: #{tpu_custom_call.1} parent=1 // pred_fallthru
      _
    // Predicated region
    $region6: #{tpu_custom_call.1} parent=1 // pred_check
      _
    $region7: #{tpu_custom_call.1} parent=1 // pred_check_branch
      %20 = sbr.rel (0) target = $region9
    $region8: #{tpu_custom_call.1} parent=1 // pred_region
      _
    $region9: #{tpu_custom_call.1} parent=1 // pred_fallthru
      _
    // Predicated region
    $region10: #{tpu_custom_call.1} parent=1 // pred_check
      _
    $region11: #{tpu_custom_call.1} parent=1 // pred_check_branch
      %22 = sbr.rel (0) target = $region13
    $region12: #{tpu_custom_call.1} parent=1 // pred_region
      _
    $region13: #{tpu_custom_call.1} parent=1 // pred_fallthru
      _
    // Predicated region
    $region14: #{tpu_custom_call.1} parent=1 // pred_check
      _
    $region15: #{tpu_custom_call.1} parent=1 // pred_check_branch
      %24 = sbr.rel (0) target = $region17
    $region16: #{tpu_custom_call.1} parent=1 // pred_region
      %26 = vsyncadd [#allocation6], 0
      %s27 = sshll.u32 %s3, 4
      %s28 = int_to_ptr.hbm [resolvable:$true] %s27
      %s29 = sshll.u32 [#allocation5], 4
      %s30 = int_to_ptr.vmem [resolvable:$true] %s29
      %35 = dma.hbm_to_vmem [thread:$0]  %s28, 8192, %s30, [#allocation6], 512, 512, 32
    $region17: #{tpu_custom_call.1} parent=1 // pred_fallthru
      _
    // Predicated region
    $region18: #{tpu_custom_call.1} parent=1 // pred_check
      _
    $region19: #{tpu_custom_call.1} parent=1 // pred_check_branch
      %37 = sbr.rel (0) target = $region21
    $region20: #{tpu_custom_call.1} parent=1 // pred_region
      %39 = vsyncadd [#allocation8], 0
      %s40 = sshll.u32 %s4, 4
      %s41 = int_to_ptr.hbm [resolvable:$true] %s40
      %s42 = sshll.u32 [#allocation7], 4
      %s43 = int_to_ptr.vmem [resolvable:$true] %s42
      %48 = dma.hbm_to_vmem [thread:$0]  %s41, 8192, %s43, [#allocation8], 512, 512, 32
    $region21: #{tpu_custom_call.1} parent=1 // pred_fallthru
      _
    // Predicated region
    $region22: #{tpu_custom_call.1} parent=1 // pred_check
      _
    $region23: #{tpu_custom_call.1} parent=1 // pred_check_branch
      %50 = sbr.rel (0) target = $region25
    $region24: #{tpu_custom_call.1} parent=1 // pred_region
      %52 = vsyncadd [#allocation8], 0
      %s53 = sshll.u32 %s5, 4
      %s54 = int_to_ptr.hbm [resolvable:$true] %s53
      %s55 = sshll.u32 [#allocation9], 4
      %s56 = int_to_ptr.vmem [resolvable:$true] %s55
      %61 = dma.hbm_to_vmem [thread:$0]  %s54, 8192, %s56, [#allocation8], 512, 512, 32
    $region25: #{tpu_custom_call.1} parent=1 // pred_fallthru
      _
    // Predicated region
    $region26: #{tpu_custom_call.1} parent=1 // pred_check
      _
    $region27: #{tpu_custom_call.1} parent=1 // pred_check_branch
      %63 = sbr.rel (0) target = $region29
    $region28: #{tpu_custom_call.1} parent=1 // pred_region
      _
    $region29: #{tpu_custom_call.1} parent=1 // pred_fallthru
      _
    // Predicated region
    $region30: #{tpu_custom_call.1} parent=1 // pred_check
      _
    $region31: #{tpu_custom_call.1} parent=1 // pred_check_branch
      %65 = sbr.rel (0) target = $region33
    $region32: #{tpu_custom_call.1} parent=1 // pred_region
      _
    $region33: #{tpu_custom_call.1} parent=1 // pred_fallthru
      _
    // Predicated region
    $region34: #{tpu_custom_call.1} parent=1 // pred_check
      _
    $region35: #{tpu_custom_call.1} parent=1 // pred_check_branch
      %67 = sbr.rel (0) target = $region37
    $region36: #{tpu_custom_call.1} parent=1 // pred_region
      _
    $region37: #{tpu_custom_call.1} parent=1 // pred_fallthru
      _
    // Predicated region
    $region38: #{tpu_custom_call.1} parent=1 // pred_check
      _
    $region39: #{tpu_custom_call.1} parent=1 // pred_check_branch
      %69 = sbr.rel (0) target = $region41
    $region40: #{tpu_custom_call.1} parent=1 // pred_region
      %71 = dma.done [#allocation6], 8192
    $region41: #{tpu_custom_call.1} parent=1 // pred_fallthru
      _
    // Predicated region
    $region42: #{tpu_custom_call.1} parent=1 // pred_check
      _
    $region43: #{tpu_custom_call.1} parent=1 // pred_check_branch
      %73 = sbr.rel (0) target = $region45
    $region44: #{tpu_custom_call.1} parent=1 // pred_region
      %75 = dma.done [#allocation8], 8192
    $region45: #{tpu_custom_call.1} parent=1 // pred_fallthru
      _
    // Predicated region
    $region46: #{tpu_custom_call.1} parent=1 // pred_check
      _
    $region47: #{tpu_custom_call.1} parent=1 // pred_check_branch
      %77 = sbr.rel (0) target = $region49
    $region48: #{tpu_custom_call.1} parent=1 // pred_region
      %79 = dma.done [#allocation8], 8192
    $region49: #{tpu_custom_call.1} parent=1 // pred_fallthru
      _
    %v80 = vld [vmem:[%s0] sm:$0xff]
    %v81 = vld [vmem:[%s0 + $0x8] sm:$0xff]
    %v82 = vld [vmem:[%s0 + $0x10] sm:$0xff]
    %v83 = vld [vmem:[%s0 + $0x18] sm:$0xff]
    %v84 = vld [vmem:[%s0 + $0x20] sm:$0xff]
    %v85 = vld [vmem:[%s0 + $0x28] sm:$0xff]
    %v86 = vld [vmem:[%s0 + $0x30] sm:$0xff]
    %v87 = vld [vmem:[%s0 + $0x38] sm:$0xff]
    %v88 = vld [vmem:[%s1] sm:$0xff]
    %v89 = vld [vmem:[%s1 + $0x8] sm:$0xff]
    %v90 = vld [vmem:[%s1 + $0x10] sm:$0xff]
    %v91 = vld [vmem:[%s1 + $0x18] sm:$0xff]
    %v92 = vld [vmem:[%s2] sm:$0xf]
    %v94 = vperm.slane %v92, 0
    %v95 = vperm.slane %v92, 1
    %v96 = vperm.slane %v92, 2
    %v97 = vperm.slane %v92, 3
    %vm102 = vcmask 64512
    %v104 = vsel %vm102, %v80, 0
    %v107 = vsel %vm102, %v81, 0
    %v110 = vsel %vm102, %v82, 0
    %v113 = vsel %vm102, %v83, 0
    %v116 = vsel %vm102, %v84, 0
    %v119 = vsel %vm102, %v85, 0
    %v122 = vsel %vm102, %v86, 0
    %v125 = vsel %vm102, %v87, 0
    %127 = vmatpush.msra.mxu0 0.0
    %128 = vmatpush.msra.mxu0 0.0
    %129 = vmatpush.msra.mxu0 0.0
    %130 = vmatpush.msra.mxu0 0.0
    %131 = vmatpush.msra.mxu0 0.0
    %132 = vmatpush.msra.mxu0 0.0
    %133 = vmatpush.msra.mxu0 0.0
    %134 = vmatpush.msra.mxu0 0.0
    %135 = vmatpush.msra.mxu0 0.0
    %136 = vmatpush.msra.mxu0 0.0
    %137 = vmatpush.msra.mxu0 0.0
    %138 = vmatpush.msra.mxu0 0.0
    %139 = vmatpush.msra.mxu0 0.0
    %140 = vmatpush.msra.mxu0 0.0
    %141 = vmatpush.msra.mxu0 0.0
    %142 = vmatpush.msra.mxu0 %v88
    %143 = vmatmul.f32.gmra.mxu0 %v104
    %v144 = vpop.f32.mrf.mxu0
    %v145 = vadd.f32 %v94, %v144
    %146 = vmatmul.f32.gmra.mxu0 %v107
    %v147 = vpop.f32.mrf.mxu0
    %v148 = vadd.f32 %v94, %v147
    %149 = vmatmul.f32.gmra.mxu0 %v110
    %v150 = vpop.f32.mrf.mxu0
    %v151 = vadd.f32 %v94, %v150
    %152 = vmatmul.f32.gmra.mxu0 %v113
    %v153 = vpop.f32.mrf.mxu0
    %v154 = vadd.f32 %v94, %v153
    %155 = vmatmul.f32.gmra.mxu0 %v116
    %v156 = vpop.f32.mrf.mxu0
    %v157 = vadd.f32 %v94, %v156
    %158 = vmatmul.f32.gmra.mxu0 %v119
    %v159 = vpop.f32.mrf.mxu0
    %v160 = vadd.f32 %v94, %v159
    %161 = vmatmul.f32.gmra.mxu0 %v122
    %v162 = vpop.f32.mrf.mxu0
    %v163 = vadd.f32 %v94, %v162
    %164 = vmatmul.f32.gmra.mxu0 %v125
    %v165 = vpop.f32.mrf.mxu0
    %v166 = vadd.f32 %v94, %v165
    %167 = vdwg.mxu0
    %168 = vmatpush.msra.mxu0 0.0
    %169 = vmatpush.msra.mxu0 0.0
    %170 = vmatpush.msra.mxu0 0.0
    %171 = vmatpush.msra.mxu0 0.0
    %172 = vmatpush.msra.mxu0 0.0
    %173 = vmatpush.msra.mxu0 0.0
    %174 = vmatpush.msra.mxu0 0.0
    %175 = vmatpush.msra.mxu0 0.0
    %176 = vmatpush.msra.mxu0 0.0
    %177 = vmatpush.msra.mxu0 0.0
    %178 = vmatpush.msra.mxu0 0.0
    %179 = vmatpush.msra.mxu0 0.0
    %180 = vmatpush.msra.mxu0 0.0
    %181 = vmatpush.msra.mxu0 0.0
    %182 = vmatpush.msra.mxu0 0.0
    %183 = vmatpush.msra.mxu0 %v89
    %184 = vmatmul.f32.gmra.mxu0 %v104
    %v185 = vpop.f32.mrf.mxu0
    %v186 = vadd.f32 %v95, %v185
    %187 = vmatmul.f32.gmra.mxu0 %v107
    %v188 = vpop.f32.mrf.mxu0
    %v189 = vadd.f32 %v95, %v188
    %190 = vmatmul.f32.gmra.mxu0 %v110
    %v191 = vpop.f32.mrf.mxu0
    %v192 = vadd.f32 %v95, %v191
    %193 = vmatmul.f32.gmra.mxu0 %v113
    %v194 = vpop.f32.mrf.mxu0
    %v195 = vadd.f32 %v95, %v194
    %196 = vmatmul.f32.gmra.mxu0 %v116
    %v197 = vpop.f32.mrf.mxu0
    %v198 = vadd.f32 %v95, %v197
    %199 = vmatmul.f32.gmra.mxu0 %v119
    %v200 = vpop.f32.mrf.mxu0
    %v201 = vadd.f32 %v95, %v200
    %202 = vmatmul.f32.gmra.mxu0 %v122
    %v203 = vpop.f32.mrf.mxu0
    %v204 = vadd.f32 %v95, %v203
    %205 = vmatmul.f32.gmra.mxu0 %v125
    %v206 = vpop.f32.mrf.mxu0
    %v207 = vadd.f32 %v95, %v206
    %208 = vdwg.mxu0
    %209 = vmatpush.msra.mxu0 0.0
    %210 = vmatpush.msra.mxu0 0.0
    %211 = vmatpush.msra.mxu0 0.0
    %212 = vmatpush.msra.mxu0 0.0
    %213 = vmatpush.msra.mxu0 0.0
    %214 = vmatpush.msra.mxu0 0.0
    %215 = vmatpush.msra.mxu0 0.0
    %216 = vmatpush.msra.mxu0 0.0
    %217 = vmatpush.msra.mxu0 0.0
    %218 = vmatpush.msra.mxu0 0.0
    %219 = vmatpush.msra.mxu0 0.0
    %220 = vmatpush.msra.mxu0 0.0
    %221 = vmatpush.msra.mxu0 0.0
    %222 = vmatpush.msra.mxu0 0.0
    %223 = vmatpush.msra.mxu0 0.0
    %224 = vmatpush.msra.mxu0 %v90
    %225 = vmatmul.f32.gmra.mxu0 %v104
    %v226 = vpop.f32.mrf.mxu0
    %v227 = vadd.f32 %v96, %v226
    %228 = vmatmul.f32.gmra.mxu0 %v107
    %v229 = vpop.f32.mrf.mxu0
    %v230 = vadd.f32 %v96, %v229
    %231 = vmatmul.f32.gmra.mxu0 %v110
    %v232 = vpop.f32.mrf.mxu0
    %v233 = vadd.f32 %v96, %v232
    %234 = vmatmul.f32.gmra.mxu0 %v113
    %v235 = vpop.f32.mrf.mxu0
    %v236 = vadd.f32 %v96, %v235
    %237 = vmatmul.f32.gmra.mxu0 %v116
    %v238 = vpop.f32.mrf.mxu0
    %v239 = vadd.f32 %v96, %v238
    %240 = vmatmul.f32.gmra.mxu0 %v119
    %v241 = vpop.f32.mrf.mxu0
    %v242 = vadd.f32 %v96, %v241
    %243 = vmatmul.f32.gmra.mxu0 %v122
    %v244 = vpop.f32.mrf.mxu0
    %v245 = vadd.f32 %v96, %v244
    %246 = vmatmul.f32.gmra.mxu0 %v125
    %v247 = vpop.f32.mrf.mxu0
    %v248 = vadd.f32 %v96, %v247
    %249 = vdwg.mxu0
    %250 = vmatpush.msra.mxu0 0.0
    %251 = vmatpush.msra.mxu0 0.0
    %252 = vmatpush.msra.mxu0 0.0
    %253 = vmatpush.msra.mxu0 0.0
    %254 = vmatpush.msra.mxu0 0.0
    %255 = vmatpush.msra.mxu0 0.0
    %256 = vmatpush.msra.mxu0 0.0
    %257 = vmatpush.msra.mxu0 0.0
    %258 = vmatpush.msra.mxu0 0.0
    %259 = vmatpush.msra.mxu0 0.0
    %260 = vmatpush.msra.mxu0 0.0
    %261 = vmatpush.msra.mxu0 0.0
    %262 = vmatpush.msra.mxu0 0.0
    %263 = vmatpush.msra.mxu0 0.0
    %264 = vmatpush.msra.mxu0 0.0
    %265 = vmatpush.msra.mxu0 %v91
    %266 = vmatmul.f32.gmra.mxu0 %v104
    %v267 = vpop.f32.mrf.mxu0
    %v268 = vadd.f32 %v97, %v267
    %269 = vmatmul.f32.gmra.mxu0 %v107
    %v270 = vpop.f32.mrf.mxu0
    %v271 = vadd.f32 %v97, %v270
    %272 = vmatmul.f32.gmra.mxu0 %v110
    %v273 = vpop.f32.mrf.mxu0
    %v274 = vadd.f32 %v97, %v273
    %275 = vmatmul.f32.gmra.mxu0 %v113
    %v276 = vpop.f32.mrf.mxu0
    %v277 = vadd.f32 %v97, %v276
    %278 = vmatmul.f32.gmra.mxu0 %v116
    %v279 = vpop.f32.mrf.mxu0
    %v280 = vadd.f32 %v97, %v279
    %281 = vmatmul.f32.gmra.mxu0 %v119
    %v282 = vpop.f32.mrf.mxu0
    %v283 = vadd.f32 %v97, %v282
    %284 = vmatmul.f32.gmra.mxu0 %v122
    %v285 = vpop.f32.mrf.mxu0
    %v286 = vadd.f32 %v97, %v285
    %287 = vmatmul.f32.gmra.mxu0 %v125
    %v288 = vpop.f32.mrf.mxu0
    %v289 = vadd.f32 %v97, %v288
    %290 = vdwg.mxu0
    %291 = vst [vmem:[#allocation2] sm:$0xff] %v145
    %292 = vst [vmem:[#allocation2 + $0x8] sm:$0xff] %v186
    %293 = vst [vmem:[#allocation2 + $0x10] sm:$0xff] %v227
    %294 = vst [vmem:[#allocation2 + $0x18] sm:$0xff] %v268
    %295 = vst [vmem:[#allocation2 + $0x20] sm:$0xff] %v148
    %296 = vst [vmem:[#allocation2 + $0x28] sm:$0xff] %v189
    %297 = vst [vmem:[#allocation2 + $0x30] sm:$0xff] %v230
    %298 = vst [vmem:[#allocation2 + $0x38] sm:$0xff] %v271
    %299 = vst [vmem:[#allocation2 + $0x40] sm:$0xff] %v151
    %300 = vst [vmem:[#allocation2 + $0x48] sm:$0xff] %v192
    %301 = vst [vmem:[#allocation2 + $0x50] sm:$0xff] %v233
    %302 = vst [vmem:[#allocation2 + $0x58] sm:$0xff] %v274
    %303 = vst [vmem:[#allocation2 + $0x60] sm:$0xff] %v154
    %304 = vst [vmem:[#allocation2 + $0x68] sm:$0xff] %v195
    %305 = vst [vmem:[#allocation2 + $0x70] sm:$0xff] %v236
    %306 = vst [vmem:[#allocation2 + $0x78] sm:$0xff] %v277
    %307 = vst [vmem:[#allocation2 + $0x80] sm:$0xff] %v157
    %308 = vst [vmem:[#allocation2 + $0x88] sm:$0xff] %v198
    %309 = vst [vmem:[#allocation2 + $0x90] sm:$0xff] %v239
    %310 = vst [vmem:[#allocation2 + $0x98] sm:$0xff] %v280
    %311 = vst [vmem:[#allocation2 + $0xa0] sm:$0xff] %v160
    %312 = vst [vmem:[#allocation2 + $0xa8] sm:$0xff] %v201
    %313 = vst [vmem:[#allocation2 + $0xb0] sm:$0xff] %v242
    %314 = vst [vmem:[#allocation2 + $0xb8] sm:$0xff] %v283
    %315 = vst [vmem:[#allocation2 + $0xc0] sm:$0xff] %v163
    %316 = vst [vmem:[#allocation2 + $0xc8] sm:$0xff] %v204
    %317 = vst [vmem:[#allocation2 + $0xd0] sm:$0xff] %v245
    %318 = vst [vmem:[#allocation2 + $0xd8] sm:$0xff] %v286
    %319 = vst [vmem:[#allocation2 + $0xe0] sm:$0xff] %v166
    %320 = vst [vmem:[#allocation2 + $0xe8] sm:$0xff] %v207
    %321 = vst [vmem:[#allocation2 + $0xf0] sm:$0xff] %v248
    %322 = vst [vmem:[#allocation2 + $0xf8] sm:$0xff] %v289
    %v323 = vld [vmem:[#allocation5] sm:$0xff]
    %v324 = vld [vmem:[#allocation5 + $0x8] sm:$0xff]
    %v325 = vld [vmem:[#allocation5 + $0x10] sm:$0xff]
    %v326 = vld [vmem:[#allocation5 + $0x18] sm:$0xff]
    %v327 = vld [vmem:[#allocation5 + $0x20] sm:$0xff]
    %v328 = vld [vmem:[#allocation5 + $0x28] sm:$0xff]
    %v329 = vld [vmem:[#allocation5 + $0x30] sm:$0xff]
    %v330 = vld [vmem:[#allocation5 + $0x38] sm:$0xff]
    %v331 = vld [vmem:[#allocation5 + $0x40] sm:$0xff]
    %v332 = vld [vmem:[#allocation5 + $0x48] sm:$0xff]
    %v333 = vld [vmem:[#allocation5 + $0x50] sm:$0xff]
    %v334 = vld [vmem:[#allocation5 + $0x58] sm:$0xff]
    %v335 = vld [vmem:[#allocation5 + $0x60] sm:$0xff]
    %v336 = vld [vmem:[#allocation5 + $0x68] sm:$0xff]
    %v337 = vld [vmem:[#allocation5 + $0x70] sm:$0xff]
    %v338 = vld [vmem:[#allocation5 + $0x78] sm:$0xff]
    %v339 = vld [vmem:[#allocation5 + $0x80] sm:$0xff]
    %v340 = vld [vmem:[#allocation5 + $0x88] sm:$0xff]
    %v341 = vld [vmem:[#allocation5 + $0x90] sm:$0xff]
    %v342 = vld [vmem:[#allocation5 + $0x98] sm:$0xff]
    %v343 = vld [vmem:[#allocation5 + $0xa0] sm:$0xff]
    %v344 = vld [vmem:[#allocation5 + $0xa8] sm:$0xff]
    %v345 = vld [vmem:[#allocation5 + $0xb0] sm:$0xff]
    %v346 = vld [vmem:[#allocation5 + $0xb8] sm:$0xff]
    %v347 = vld [vmem:[#allocation5 + $0xc0] sm:$0xff]
    %v348 = vld [vmem:[#allocation5 + $0xc8] sm:$0xff]
    %v349 = vld [vmem:[#allocation5 + $0xd0] sm:$0xff]
    %v350 = vld [vmem:[#allocation5 + $0xd8] sm:$0xff]
    %v351 = vld [vmem:[#allocation5 + $0xe0] sm:$0xff]
    %v352 = vld [vmem:[#allocation5 + $0xe8] sm:$0xff]
    %v353 = vld [vmem:[#allocation5 + $0xf0] sm:$0xff]
    %v354 = vld [vmem:[#allocation5 + $0xf8] sm:$0xff]
    %v355 = vld [vmem:[#allocation5 + $0x100] sm:$0xff]
    %v356 = vld [vmem:[#allocation5 + $0x108] sm:$0xff]
    %v357 = vld [vmem:[#allocation5 + $0x110] sm:$0xff]
    %v358 = vld [vmem:[#allocation5 + $0x118] sm:$0xff]
    %v359 = vld [vmem:[#allocation5 + $0x120] sm:$0xff]
    %v360 = vld [vmem:[#allocation5 + $0x128] sm:$0xff]
    %v361 = vld [vmem:[#allocation5 + $0x130] sm:$0xff]
    %v362 = vld [vmem:[#allocation5 + $0x138] sm:$0xff]
    %v363 = vld [vmem:[#allocation5 + $0x140] sm:$0xff]
    %v364 = vld [vmem:[#allocation5 + $0x148] sm:$0xff]
    %v365 = vld [vmem:[#allocation5 + $0x150] sm:$0xff]
    %v366 = vld [vmem:[#allocation5 + $0x158] sm:$0xff]
    %v367 = vld [vmem:[#allocation5 + $0x160] sm:$0xff]
    %v368 = vld [vmem:[#allocation5 + $0x168] sm:$0xff]
    %v369 = vld [vmem:[#allocation5 + $0x170] sm:$0xff]
    %v370 = vld [vmem:[#allocation5 + $0x178] sm:$0xff]
    %v371 = vld [vmem:[#allocation5 + $0x180] sm:$0xff]
    %v372 = vld [vmem:[#allocation5 + $0x188] sm:$0xff]
    %v373 = vld [vmem:[#allocation5 + $0x190] sm:$0xff]
    %v374 = vld [vmem:[#allocation5 + $0x198] sm:$0xff]
    %v375 = vld [vmem:[#allocation5 + $0x1a0] sm:$0xff]
    %v376 = vld [vmem:[#allocation5 + $0x1a8] sm:$0xff]
    %v377 = vld [vmem:[#allocation5 + $0x1b0] sm:$0xff]
    %v378 = vld [vmem:[#allocation5 + $0x1b8] sm:$0xff]
    %v379 = vld [vmem:[#allocation5 + $0x1c0] sm:$0xff]
    %v380 = vld [vmem:[#allocation5 + $0x1c8] sm:$0xff]
    %v381 = vld [vmem:[#allocation5 + $0x1d0] sm:$0xff]
    %v382 = vld [vmem:[#allocation5 + $0x1d8] sm:$0xff]
    %v383 = vld [vmem:[#allocation5 + $0x1e0] sm:$0xff]
    %v384 = vld [vmem:[#allocation5 + $0x1e8] sm:$0xff]
    %v385 = vld [vmem:[#allocation5 + $0x1f0] sm:$0xff]
    %v386 = vld [vmem:[#allocation5 + $0x1f8] sm:$0xff]
    %v387 = vld [vmem:[#allocation7] sm:$0xff]
    %v388 = vld [vmem:[#allocation7 + $0x8] sm:$0xff]
    %v389 = vld [vmem:[#allocation7 + $0x10] sm:$0xff]
    %v390 = vld [vmem:[#allocation7 + $0x18] sm:$0xff]
    %v391 = vld [vmem:[#allocation7 + $0x20] sm:$0xff]
    %v392 = vld [vmem:[#allocation7 + $0x28] sm:$0xff]
    %v393 = vld [vmem:[#allocation7 + $0x30] sm:$0xff]
    %v394 = vld [vmem:[#allocation7 + $0x38] sm:$0xff]
    %v395 = vld [vmem:[#allocation7 + $0x40] sm:$0xff]
    %v396 = vld [vmem:[#allocation7 + $0x48] sm:$0xff]
    %v397 = vld [vmem:[#allocation7 + $0x50] sm:$0xff]
    %v398 = vld [vmem:[#allocation7 + $0x58] sm:$0xff]
    %v399 = vld [vmem:[#allocation7 + $0x60] sm:$0xff]
    %v400 = vld [vmem:[#allocation7 + $0x68] sm:$0xff]
    %v401 = vld [vmem:[#allocation7 + $0x70] sm:$0xff]
    %v402 = vld [vmem:[#allocation7 + $0x78] sm:$0xff]
    %v403 = vld [vmem:[#allocation7 + $0x80] sm:$0xff]
    %v404 = vld [vmem:[#allocation7 + $0x88] sm:$0xff]
    %v405 = vld [vmem:[#allocation7 + $0x90] sm:$0xff]
    %v406 = vld [vmem:[#allocation7 + $0x98] sm:$0xff]
    %v407 = vld [vmem:[#allocation7 + $0xa0] sm:$0xff]
    %v408 = vld [vmem:[#allocation7 + $0xa8] sm:$0xff]
    %v409 = vld [vmem:[#allocation7 + $0xb0] sm:$0xff]
    %v410 = vld [vmem:[#allocation7 + $0xb8] sm:$0xff]
    %v411 = vld [vmem:[#allocation7 + $0xc0] sm:$0xff]
    %v412 = vld [vmem:[#allocation7 + $0xc8] sm:$0xff]
    %v413 = vld [vmem:[#allocation7 + $0xd0] sm:$0xff]
    %v414 = vld [vmem:[#allocation7 + $0xd8] sm:$0xff]
    %v415 = vld [vmem:[#allocation7 + $0xe0] sm:$0xff]
    %v416 = vld [vmem:[#allocation7 + $0xe8] sm:$0xff]
    %v417 = vld [vmem:[#allocation7 + $0xf0] sm:$0xff]
    %v418 = vld [vmem:[#allocation7 + $0xf8] sm:$0xff]
    %v419 = vld [vmem:[#allocation7 + $0x100] sm:$0xff]
    %v420 = vld [vmem:[#allocation7 + $0x108] sm:$0xff]
    %v421 = vld [vmem:[#allocation7 + $0x110] sm:$0xff]
    %v422 = vld [vmem:[#allocation7 + $0x118] sm:$0xff]
    %v423 = vld [vmem:[#allocation7 + $0x120] sm:$0xff]
    %v424 = vld [vmem:[#allocation7 + $0x128] sm:$0xff]
    %v425 = vld [vmem:[#allocation7 + $0x130] sm:$0xff]
    %v426 = vld [vmem:[#allocation7 + $0x138] sm:$0xff]
    %v427 = vld [vmem:[#allocation7 + $0x140] sm:$0xff]
    %v428 = vld [vmem:[#allocation7 + $0x148] sm:$0xff]
    %v429 = vld [vmem:[#allocation7 + $0x150] sm:$0xff]
    %v430 = vld [vmem:[#allocation7 + $0x158] sm:$0xff]
    %v431 = vld [vmem:[#allocation7 + $0x160] sm:$0xff]
    %v432 = vld [vmem:[#allocation7 + $0x168] sm:$0xff]
    %v433 = vld [vmem:[#allocation7 + $0x170] sm:$0xff]
    %v434 = vld [vmem:[#allocation7 + $0x178] sm:$0xff]
    %v435 = vld [vmem:[#allocation7 + $0x180] sm:$0xff]
    %v436 = vld [vmem:[#allocation7 + $0x188] sm:$0xff]
    %v437 = vld [vmem:[#allocation7 + $0x190] sm:$0xff]
    %v438 = vld [vmem:[#allocation7 + $0x198] sm:$0xff]
    %v439 = vld [vmem:[#allocation7 + $0x1a0] sm:$0xff]
    %v440 = vld [vmem:[#allocation7 + $0x1a8] sm:$0xff]
    %v441 = vld [vmem:[#allocation7 + $0x1b0] sm:$0xff]
    %v442 = vld [vmem:[#allocation7 + $0x1b8] sm:$0xff]
    %v443 = vld [vmem:[#allocation7 + $0x1c0] sm:$0xff]
    %v444 = vld [vmem:[#allocation7 + $0x1c8] sm:$0xff]
    %v445 = vld [vmem:[#allocation7 + $0x1d0] sm:$0xff]
    %v446 = vld [vmem:[#allocation7 + $0x1d8] sm:$0xff]
    %v447 = vld [vmem:[#allocation7 + $0x1e0] sm:$0xff]
    %v448 = vld [vmem:[#allocation7 + $0x1e8] sm:$0xff]
    %v449 = vld [vmem:[#allocation7 + $0x1f0] sm:$0xff]
    %v450 = vld [vmem:[#allocation7 + $0x1f8] sm:$0xff]
    %v451 = vld [vmem:[#allocation9] sm:$0xff]
    %v452 = vld [vmem:[#allocation9 + $0x8] sm:$0xff]
    %v453 = vld [vmem:[#allocation9 + $0x10] sm:$0xff]
    %v454 = vld [vmem:[#allocation9 + $0x18] sm:$0xff]
    %v455 = vld [vmem:[#allocation9 + $0x20] sm:$0xff]
    %v456 = vld [vmem:[#allocation9 + $0x28] sm:$0xff]
    %v457 = vld [vmem:[#allocation9 + $0x30] sm:$0xff]
    %v458 = vld [vmem:[#allocation9 + $0x38] sm:$0xff]
    %v459 = vld [vmem:[#allocation9 + $0x40] sm:$0xff]
    %v460 = vld [vmem:[#allocation9 + $0x48] sm:$0xff]
    %v461 = vld [vmem:[#allocation9 + $0x50] sm:$0xff]
    %v462 = vld [vmem:[#allocation9 + $0x58] sm:$0xff]
    %v463 = vld [vmem:[#allocation9 + $0x60] sm:$0xff]
    %v464 = vld [vmem:[#allocation9 + $0x68] sm:$0xff]
    %v465 = vld [vmem:[#allocation9 + $0x70] sm:$0xff]
    %v466 = vld [vmem:[#allocation9 + $0x78] sm:$0xff]
    %v467 = vld [vmem:[#allocation9 + $0x80] sm:$0xff]
    %v468 = vld [vmem:[#allocation9 + $0x88] sm:$0xff]
    %v469 = vld [vmem:[#allocation9 + $0x90] sm:$0xff]
    %v470 = vld [vmem:[#allocation9 + $0x98] sm:$0xff]
    %v471 = vld [vmem:[#allocation9 + $0xa0] sm:$0xff]
    %v472 = vld [vmem:[#allocation9 + $0xa8] sm:$0xff]
    %v473 = vld [vmem:[#allocation9 + $0xb0] sm:$0xff]
    %v474 = vld [vmem:[#allocation9 + $0xb8] sm:$0xff]
    %v475 = vld [vmem:[#allocation9 + $0xc0] sm:$0xff]
    %v476 = vld [vmem:[#allocation9 + $0xc8] sm:$0xff]
    %v477 = vld [vmem:[#allocation9 + $0xd0] sm:$0xff]
    %v478 = vld [vmem:[#allocation9 + $0xd8] sm:$0xff]
    %v479 = vld [vmem:[#allocation9 + $0xe0] sm:$0xff]
    %v480 = vld [vmem:[#allocation9 + $0xe8] sm:$0xff]
    %v481 = vld [vmem:[#allocation9 + $0xf0] sm:$0xff]
    %v482 = vld [vmem:[#allocation9 + $0xf8] sm:$0xff]
    %v483 = vld [vmem:[#allocation9 + $0x100] sm:$0xff]
    %v484 = vld [vmem:[#allocation9 + $0x108] sm:$0xff]
    %v485 = vld [vmem:[#allocation9 + $0x110] sm:$0xff]
    %v486 = vld [vmem:[#allocation9 + $0x118] sm:$0xff]
    %v487 = vld [vmem:[#allocation9 + $0x120] sm:$0xff]
    %v488 = vld [vmem:[#allocation9 + $0x128] sm:$0xff]
    %v489 = vld [vmem:[#allocation9 + $0x130] sm:$0xff]
    %v490 = vld [vmem:[#allocation9 + $0x138] sm:$0xff]
    %v491 = vld [vmem:[#allocation9 + $0x140] sm:$0xff]
    %v492 = vld [vmem:[#allocation9 + $0x148] sm:$0xff]
    %v493 = vld [vmem:[#allocation9 + $0x150] sm:$0xff]
    %v494 = vld [vmem:[#allocation9 + $0x158] sm:$0xff]
    %v495 = vld [vmem:[#allocation9 + $0x160] sm:$0xff]
    %v496 = vld [vmem:[#allocation9 + $0x168] sm:$0xff]
    %v497 = vld [vmem:[#allocation9 + $0x170] sm:$0xff]
    %v498 = vld [vmem:[#allocation9 + $0x178] sm:$0xff]
    %v499 = vld [vmem:[#allocation9 + $0x180] sm:$0xff]
    %v500 = vld [vmem:[#allocation9 + $0x188] sm:$0xff]
    %v501 = vld [vmem:[#allocation9 + $0x190] sm:$0xff]
    %v502 = vld [vmem:[#allocation9 + $0x198] sm:$0xff]
    %v503 = vld [vmem:[#allocation9 + $0x1a0] sm:$0xff]
    %v504 = vld [vmem:[#allocation9 + $0x1a8] sm:$0xff]
    %v505 = vld [vmem:[#allocation9 + $0x1b0] sm:$0xff]
    %v506 = vld [vmem:[#allocation9 + $0x1b8] sm:$0xff]
    %v507 = vld [vmem:[#allocation9 + $0x1c0] sm:$0xff]
    %v508 = vld [vmem:[#allocation9 + $0x1c8] sm:$0xff]
    %v509 = vld [vmem:[#allocation9 + $0x1d0] sm:$0xff]
    %v510 = vld [vmem:[#allocation9 + $0x1d8] sm:$0xff]
    %v511 = vld [vmem:[#allocation9 + $0x1e0] sm:$0xff]
    %v512 = vld [vmem:[#allocation9 + $0x1e8] sm:$0xff]
    %v513 = vld [vmem:[#allocation9 + $0x1f0] sm:$0xff]
    %v514 = vld [vmem:[#allocation9 + $0x1f8] sm:$0xff]
    %v515 = vld [vmem:[%s6] sm:$0xf]
    %v517 = vperm.slane %v515, 0
    %v518 = vperm.slane %v515, 1
    %v519 = vperm.slane %v515, 2
    %v520 = vperm.slane %v515, 3
    %s525 = smul.u32 0, 4
    %s526 = smul.addr %s525, 8
    %s527 = scalar_lea.vmem [#allocation2], %s526
    %v528 = vld [vmem:[%s527] sm:$0xff]
    %v529 = vld [vmem:[%s527 + $0x8] sm:$0xff]
    %v530 = vld [vmem:[%s527 + $0x10] sm:$0xff]
    %v531 = vld [vmem:[%s527 + $0x18] sm:$0xff]
    %532 = vmatpush.msra.mxu0 %v383
    %533 = vmatpush.msra.mxu0 %v379
    %534 = vmatpush.msra.mxu0 %v375
    %535 = vmatpush.msra.mxu0 %v371
    %536 = vmatpush.msra.mxu0 %v367
    %537 = vmatpush.msra.mxu0 %v363
    %538 = vmatpush.msra.mxu0 %v359
    %539 = vmatpush.msra.mxu0 %v355
    %540 = vmatpush.msra.mxu0 %v351
    %541 = vmatpush.msra.mxu0 %v347
    %542 = vmatpush.msra.mxu0 %v343
    %543 = vmatpush.msra.mxu0 %v339
    %544 = vmatpush.msra.mxu0 %v335
    %545 = vmatpush.msra.mxu0 %v331
    %546 = vmatpush.msra.mxu0 %v327
    %547 = vmatpush.msra.mxu0 %v323
    %548 = vmatmul.f32.gmra.mxu0 0.0
    %v549 = vpop.f32.mrf.mxu0
    %v550 = vadd.f32 0.0, %v549
    %551 = vdwg.mxu0
    %552 = vmatpush.msra.mxu0 %v384
    %553 = vmatpush.msra.mxu0 %v380
    %554 = vmatpush.msra.mxu0 %v376
    %555 = vmatpush.msra.mxu0 %v372
    %556 = vmatpush.msra.mxu0 %v368
    %557 = vmatpush.msra.mxu0 %v364
    %558 = vmatpush.msra.mxu0 %v360
    %559 = vmatpush.msra.mxu0 %v356
    %560 = vmatpush.msra.mxu0 %v352
    %561 = vmatpush.msra.mxu0 %v348
    %562 = vmatpush.msra.mxu0 %v344
    %563 = vmatpush.msra.mxu0 %v340
    %564 = vmatpush.msra.mxu0 %v336
    %565 = vmatpush.msra.mxu0 %v332
    %566 = vmatpush.msra.mxu0 %v328
    %567 = vmatpush.msra.mxu0 %v324
    %568 = vmatmul.f32.gmra.mxu0 0.0
    %v569 = vpop.f32.mrf.mxu0
    %v570 = vadd.f32 0.0, %v569
    %571 = vdwg.mxu0
    %572 = vmatpush.msra.mxu0 %v385
    %573 = vmatpush.msra.mxu0 %v381
    %574 = vmatpush.msra.mxu0 %v377
    %575 = vmatpush.msra.mxu0 %v373
    %576 = vmatpush.msra.mxu0 %v369
    %577 = vmatpush.msra.mxu0 %v365
    %578 = vmatpush.msra.mxu0 %v361
    %579 = vmatpush.msra.mxu0 %v357
    %580 = vmatpush.msra.mxu0 %v353
    %581 = vmatpush.msra.mxu0 %v349
    %582 = vmatpush.msra.mxu0 %v345
    %583 = vmatpush.msra.mxu0 %v341
    %584 = vmatpush.msra.mxu0 %v337
    %585 = vmatpush.msra.mxu0 %v333
    %586 = vmatpush.msra.mxu0 %v329
    %587 = vmatpush.msra.mxu0 %v325
    %588 = vmatmul.f32.gmra.mxu0 0.0
    %v589 = vpop.f32.mrf.mxu0
    %v590 = vadd.f32 0.0, %v589
    %591 = vdwg.mxu0
    %592 = vmatpush.msra.mxu0 %v386
    %593 = vmatpush.msra.mxu0 %v382
    %594 = vmatpush.msra.mxu0 %v378
    %595 = vmatpush.msra.mxu0 %v374
    %596 = vmatpush.msra.mxu0 %v370
    %597 = vmatpush.msra.mxu0 %v366
    %598 = vmatpush.msra.mxu0 %v362
    %599 = vmatpush.msra.mxu0 %v358
    %600 = vmatpush.msra.mxu0 %v354
    %601 = vmatpush.msra.mxu0 %v350
    %602 = vmatpush.msra.mxu0 %v346
    %603 = vmatpush.msra.mxu0 %v342
    %604 = vmatpush.msra.mxu0 %v338
    %605 = vmatpush.msra.mxu0 %v334
    %606 = vmatpush.msra.mxu0 %v330
    %607 = vmatpush.msra.mxu0 %v326
    %608 = vmatmul.f32.gmra.mxu0 0.0
    %v609 = vpop.f32.mrf.mxu0
    %v610 = vadd.f32 0.0, %v609
    %611 = vdwg.mxu0
    %v612 = vadd.f32 %v528, %v550
    %v613 = vadd.f32 %v529, %v570
    %v614 = vadd.f32 %v530, %v590
    %v615 = vadd.f32 %v531, %v610
    %v616 = vxor.u32 %v612, 2147483648
    %v617 = vmul.f32 %v616, 1.442695
    %v618 = vpow.pop %v617
    %v619 = vadd.f32 %v618, 1.0
    %v620 = vrcp.pop %v619
    %v621 = vmul.f32 %v619, %v620
    %v622 = vsub.f32 1.0, %v621
    %v623 = vmul.f32 %v620, %v622
    %v624 = vadd.f32 %v620, %v623
    %vm625 = vweird.f32 %v619
    %vm626 = vweird.f32 %v620
    %vm627 = vmor %vm625, %vm626
    %v628 = vsel %vm627, %v620, %v624
    %v629 = vand.u32 2147483647, %v619
    %vm630 = vcmp.eq.f32.partialorder %v629, 8.507059e+37
    %v631 = vand.u32 %v619, 2147483648
    %v632 = vor.u32 1.1754944e-38, %v631
    %v633 = vsel %vm630, %v632, %v628
    %v634 = vmul.f32 1.0, %v633
    %v635 = vxor.u32 %v613, 2147483648
    %v636 = vmul.f32 %v635, 1.442695
    %v637 = vpow.pop %v636
    %v638 = vadd.f32 %v637, 1.0
    %v639 = vrcp.pop %v638
    %v640 = vmul.f32 %v638, %v639
    %v641 = vsub.f32 1.0, %v640
    %v642 = vmul.f32 %v639, %v641
    %v643 = vadd.f32 %v639, %v642
    %vm644 = vweird.f32 %v638
    %vm645 = vweird.f32 %v639
    %vm646 = vmor %vm644, %vm645
    %v647 = vsel %vm646, %v639, %v643
    %v648 = vand.u32 2147483647, %v638
    %vm649 = vcmp.eq.f32.partialorder %v648, 8.507059e+37
    %v650 = vand.u32 %v638, 2147483648
    %v651 = vor.u32 1.1754944e-38, %v650
    %v652 = vsel %vm649, %v651, %v647
    %v653 = vmul.f32 1.0, %v652
    %v654 = vtanh.pop %v614
    %v655 = vxor.u32 %v615, 2147483648
    %v656 = vmul.f32 %v655, 1.442695
    %v657 = vpow.pop %v656
    %v658 = vadd.f32 %v657, 1.0
    %v659 = vrcp.pop %v658
    %v660 = vmul.f32 %v658, %v659
    %v661 = vsub.f32 1.0, %v660
    %v662 = vmul.f32 %v659, %v661
    %v663 = vadd.f32 %v659, %v662
    %vm664 = vweird.f32 %v658
    %vm665 = vweird.f32 %v659
    %vm666 = vmor %vm664, %vm665
    %v667 = vsel %vm666, %v659, %v663
    %v668 = vand.u32 2147483647, %v658
    %vm669 = vcmp.eq.f32.partialorder %v668, 8.507059e+37
    %v670 = vand.u32 %v658, 2147483648
    %v671 = vor.u32 1.1754944e-38, %v670
    %v672 = vsel %vm669, %v671, %v667
    %v673 = vmul.f32 1.0, %v672
    %v674 = vmul.f32 %v653, 0.0
    %v675 = vmul.f32 %v634, %v654
    %v676 = vadd.f32 %v674, %v675
    %v677 = vtanh.pop %v676
    %v678 = vmul.f32 %v673, %v677
    %679 = vmatpush.msra.mxu0 %v447
    %680 = vmatpush.msra.mxu0 %v443
    %681 = vmatpush.msra.mxu0 %v439
    %682 = vmatpush.msra.mxu0 %v435
    %683 = vmatpush.msra.mxu0 %v431
    %684 = vmatpush.msra.mxu0 %v427
    %685 = vmatpush.msra.mxu0 %v423
    %686 = vmatpush.msra.mxu0 %v419
    %687 = vmatpush.msra.mxu0 %v415
    %688 = vmatpush.msra.mxu0 %v411
    %689 = vmatpush.msra.mxu0 %v407
    %690 = vmatpush.msra.mxu0 %v403
    %691 = vmatpush.msra.mxu0 %v399
    %692 = vmatpush.msra.mxu0 %v395
    %693 = vmatpush.msra.mxu0 %v391
    %694 = vmatpush.msra.mxu0 %v387
    %695 = vmatmul.f32.gmra.mxu0 %v678
    %v696 = vpop.f32.mrf.mxu0
    %v697 = vadd.f32 0.0, %v696
    %698 = vdwg.mxu0
    %699 = vmatpush.msra.mxu0 %v448
    %700 = vmatpush.msra.mxu0 %v444
    %701 = vmatpush.msra.mxu0 %v440
    %702 = vmatpush.msra.mxu0 %v436
    %703 = vmatpush.msra.mxu0 %v432
    %704 = vmatpush.msra.mxu0 %v428
    %705 = vmatpush.msra.mxu0 %v424
    %706 = vmatpush.msra.mxu0 %v420
    %707 = vmatpush.msra.mxu0 %v416
    %708 = vmatpush.msra.mxu0 %v412
    %709 = vmatpush.msra.mxu0 %v408
    %710 = vmatpush.msra.mxu0 %v404
    %711 = vmatpush.msra.mxu0 %v400
    %712 = vmatpush.msra.mxu0 %v396
    %713 = vmatpush.msra.mxu0 %v392
    %714 = vmatpush.msra.mxu0 %v388
    %715 = vmatmul.f32.gmra.mxu0 %v678
    %v716 = vpop.f32.mrf.mxu0
    %v717 = vadd.f32 0.0, %v716
    %718 = vdwg.mxu0
    %719 = vmatpush.msra.mxu0 %v449
    %720 = vmatpush.msra.mxu0 %v445
    %721 = vmatpush.msra.mxu0 %v441
    %722 = vmatpush.msra.mxu0 %v437
    %723 = vmatpush.msra.mxu0 %v433
    %724 = vmatpush.msra.mxu0 %v429
    %725 = vmatpush.msra.mxu0 %v425
    %726 = vmatpush.msra.mxu0 %v421
    %727 = vmatpush.msra.mxu0 %v417
    %728 = vmatpush.msra.mxu0 %v413
    %729 = vmatpush.msra.mxu0 %v409
    %730 = vmatpush.msra.mxu0 %v405
    %731 = vmatpush.msra.mxu0 %v401
    %732 = vmatpush.msra.mxu0 %v397
    %733 = vmatpush.msra.mxu0 %v393
    %734 = vmatpush.msra.mxu0 %v389
    %735 = vmatmul.f32.gmra.mxu0 %v678
    %v736 = vpop.f32.mrf.mxu0
    %v737 = vadd.f32 0.0, %v736
    %738 = vdwg.mxu0
    %739 = vmatpush.msra.mxu0 %v450
    %740 = vmatpush.msra.mxu0 %v446
    %741 = vmatpush.msra.mxu0 %v442
    %742 = vmatpush.msra.mxu0 %v438
    %743 = vmatpush.msra.mxu0 %v434
    %744 = vmatpush.msra.mxu0 %v430
    %745 = vmatpush.msra.mxu0 %v426
    %746 = vmatpush.msra.mxu0 %v422
    %747 = vmatpush.msra.mxu0 %v418
    %748 = vmatpush.msra.mxu0 %v414
    %749 = vmatpush.msra.mxu0 %v410
    %750 = vmatpush.msra.mxu0 %v406
    %751 = vmatpush.msra.mxu0 %v402
    %752 = vmatpush.msra.mxu0 %v398
    %753 = vmatpush.msra.mxu0 %v394
    %754 = vmatpush.msra.mxu0 %v390
    %755 = vmatmul.f32.gmra.mxu0 %v678
    %v756 = vpop.f32.mrf.mxu0
    %v757 = vadd.f32 0.0, %v756
    %758 = vdwg.mxu0
    %759 = vmatpush.msra.mxu0 %v511
    %760 = vmatpush.msra.mxu0 %v507
    %761 = vmatpush.msra.mxu0 %v503
    %762 = vmatpush.msra.mxu0 %v499
    %763 = vmatpush.msra.mxu0 %v495
    %764 = vmatpush.msra.mxu0 %v491
    %765 = vmatpush.msra.mxu0 %v487
    %766 = vmatpush.msra.mxu0 %v483
    %767 = vmatpush.msra.mxu0 %v479
    %768 = vmatpush.msra.mxu0 %v475
    %769 = vmatpush.msra.mxu0 %v471
    %770 = vmatpush.msra.mxu0 %v467
    %771 = vmatpush.msra.mxu0 %v463
    %772 = vmatpush.msra.mxu0 %v459
    %773 = vmatpush.msra.mxu0 %v455
    %774 = vmatpush.msra.mxu0 %v451
    %775 = vmatmul.f32.gmra.mxu0 0.0
    %v776 = vpop.f32.mrf.mxu0
    %v777 = vadd.f32 %v697, %v776
    %778 = vdwg.mxu0
    %779 = vmatpush.msra.mxu0 %v512
    %780 = vmatpush.msra.mxu0 %v508
    %781 = vmatpush.msra.mxu0 %v504
    %782 = vmatpush.msra.mxu0 %v500
    %783 = vmatpush.msra.mxu0 %v496
    %784 = vmatpush.msra.mxu0 %v492
    %785 = vmatpush.msra.mxu0 %v488
    %786 = vmatpush.msra.mxu0 %v484
    %787 = vmatpush.msra.mxu0 %v480
    %788 = vmatpush.msra.mxu0 %v476
    %789 = vmatpush.msra.mxu0 %v472
    %790 = vmatpush.msra.mxu0 %v468
    %791 = vmatpush.msra.mxu0 %v464
    %792 = vmatpush.msra.mxu0 %v460
    %793 = vmatpush.msra.mxu0 %v456
    %794 = vmatpush.msra.mxu0 %v452
    %795 = vmatmul.f32.gmra.mxu0 0.0
    %v796 = vpop.f32.mrf.mxu0
    %v797 = vadd.f32 %v717, %v796
    %798 = vdwg.mxu0
    %799 = vmatpush.msra.mxu0 %v513
    %800 = vmatpush.msra.mxu0 %v509
    %801 = vmatpush.msra.mxu0 %v505
    %802 = vmatpush.msra.mxu0 %v501
    %803 = vmatpush.msra.mxu0 %v497
    %804 = vmatpush.msra.mxu0 %v493
    %805 = vmatpush.msra.mxu0 %v489
    %806 = vmatpush.msra.mxu0 %v485
    %807 = vmatpush.msra.mxu0 %v481
    %808 = vmatpush.msra.mxu0 %v477
    %809 = vmatpush.msra.mxu0 %v473
    %810 = vmatpush.msra.mxu0 %v469
    %811 = vmatpush.msra.mxu0 %v465
    %812 = vmatpush.msra.mxu0 %v461
    %813 = vmatpush.msra.mxu0 %v457
    %814 = vmatpush.msra.mxu0 %v453
    %815 = vmatmul.f32.gmra.mxu0 0.0
    %v816 = vpop.f32.mrf.mxu0
    %v817 = vadd.f32 %v737, %v816
    %818 = vdwg.mxu0
    %819 = vmatpush.msra.mxu0 %v514
    %820 = vmatpush.msra.mxu0 %v510
    %821 = vmatpush.msra.mxu0 %v506
    %822 = vmatpush.msra.mxu0 %v502
    %823 = vmatpush.msra.mxu0 %v498
    %824 = vmatpush.msra.mxu0 %v494
    %825 = vmatpush.msra.mxu0 %v490
    %826 = vmatpush.msra.mxu0 %v486
    %827 = vmatpush.msra.mxu0 %v482
    %828 = vmatpush.msra.mxu0 %v478
    %829 = vmatpush.msra.mxu0 %v474
    %830 = vmatpush.msra.mxu0 %v470
    %831 = vmatpush.msra.mxu0 %v466
    %832 = vmatpush.msra.mxu0 %v462
    %833 = vmatpush.msra.mxu0 %v458
    %834 = vmatpush.msra.mxu0 %v454
    %835 = vmatmul.f32.gmra.mxu0 0.0
    %v836 = vpop.f32.mrf.mxu0
    %v837 = vadd.f32 %v757, %v836
    %838 = vdwg.mxu0
    %v839 = vadd.f32 %v777, %v517
    %v840 = vadd.f32 %v797, %v518
    %v841 = vadd.f32 %v817, %v519
    %v842 = vadd.f32 %v837, %v520
    %v843 = vxor.u32 %v839, 2147483648
    %v844 = vmul.f32 %v843, 1.442695
    %v845 = vpow.pop %v844
    %v846 = vadd.f32 %v845, 1.0
    %v847 = vrcp.pop %v846
    %v848 = vmul.f32 %v846, %v847
    %v849 = vsub.f32 1.0, %v848
    %v850 = vmul.f32 %v847, %v849
    %v851 = vadd.f32 %v847, %v850
    %vm852 = vweird.f32 %v846
    %vm853 = vweird.f32 %v847
    %vm854 = vmor %vm852, %vm853
    %v855 = vsel %vm854, %v847, %v851
    %v856 = vand.u32 2147483647, %v846
    %vm857 = vcmp.eq.f32.partialorder %v856, 8.507059e+37
    %v858 = vand.u32 %v846, 2147483648
    %v859 = vor.u32 1.1754944e-38, %v858
    %v860 = vsel %vm857, %v859, %v855
    %v861 = vmul.f32 1.0, %v860
    %v862 = vxor.u32 %v840, 2147483648
    %v863 = vmul.f32 %v862, 1.442695
    %v864 = vpow.pop %v863
    %v865 = vadd.f32 %v864, 1.0
    %v866 = vrcp.pop %v865
    %v867 = vmul.f32 %v865, %v866
    %v868 = vsub.f32 1.0, %v867
    %v869 = vmul.f32 %v866, %v868
    %v870 = vadd.f32 %v866, %v869
    %vm871 = vweird.f32 %v865
    %vm872 = vweird.f32 %v866
    %vm873 = vmor %vm871, %vm872
    %v874 = vsel %vm873, %v866, %v870
    %v875 = vand.u32 2147483647, %v865
    %vm876 = vcmp.eq.f32.partialorder %v875, 8.507059e+37
    %v877 = vand.u32 %v865, 2147483648
    %v878 = vor.u32 1.1754944e-38, %v877
    %v879 = vsel %vm876, %v878, %v874
    %v880 = vmul.f32 1.0, %v879
    %v881 = vtanh.pop %v841
    %v882 = vxor.u32 %v842, 2147483648
    %v883 = vmul.f32 %v882, 1.442695
    %v884 = vpow.pop %v883
    %v885 = vadd.f32 %v884, 1.0
    %v886 = vrcp.pop %v885
    %v887 = vmul.f32 %v885, %v886
    %v888 = vsub.f32 1.0, %v887
    %v889 = vmul.f32 %v886, %v888
    %v890 = vadd.f32 %v886, %v889
    %vm891 = vweird.f32 %v885
    %vm892 = vweird.f32 %v886
    %vm893 = vmor %vm891, %vm892
    %v894 = vsel %vm893, %v886, %v890
    %v895 = vand.u32 2147483647, %v885
    %vm896 = vcmp.eq.f32.partialorder %v895, 8.507059e+37
    %v897 = vand.u32 %v885, 2147483648
    %v898 = vor.u32 1.1754944e-38, %v897
    %v899 = vsel %vm896, %v898, %v894
    %v900 = vmul.f32 1.0, %v899
    %v901 = vmul.f32 %v880, 0.0
    %v902 = vmul.f32 %v861, %v881
    %v903 = vadd.f32 %v901, %v902
    %v904 = vtanh.pop %v903
    %v905 = vmul.f32 %v900, %v904
    %906 = vst [vmem:[#allocation3] sm:$0xff] %v905
    %s907 = smul.u32 1, 4
    %s908 = smul.addr %s907, 8
    %s909 = scalar_lea.vmem [#allocation2], %s908
    %v910 = vld [vmem:[%s909] sm:$0xff]
    %v911 = vld [vmem:[%s909 + $0x8] sm:$0xff]
    %v912 = vld [vmem:[%s909 + $0x10] sm:$0xff]
    %v913 = vld [vmem:[%s909 + $0x18] sm:$0xff]
    %914 = vmatpush.msra.mxu0 %v383
    %915 = vmatpush.msra.mxu0 %v379
    %916 = vmatpush.msra.mxu0 %v375
    %917 = vmatpush.msra.mxu0 %v371
    %918 = vmatpush.msra.mxu0 %v367
    %919 = vmatpush.msra.mxu0 %v363
    %920 = vmatpush.msra.mxu0 %v359
    %921 = vmatpush.msra.mxu0 %v355
    %922 = vmatpush.msra.mxu0 %v351
    %923 = vmatpush.msra.mxu0 %v347
    %924 = vmatpush.msra.mxu0 %v343
    %925 = vmatpush.msra.mxu0 %v339
    %926 = vmatpush.msra.mxu0 %v335
    %927 = vmatpush.msra.mxu0 %v331
    %928 = vmatpush.msra.mxu0 %v327
    %929 = vmatpush.msra.mxu0 %v323
    %930 = vmatmul.f32.gmra.mxu0 %v678
    %v931 = vpop.f32.mrf.mxu0
    %v932 = vadd.f32 0.0, %v931
    %933 = vdwg.mxu0
    %934 = vmatpush.msra.mxu0 %v384
    %935 = vmatpush.msra.mxu0 %v380
    %936 = vmatpush.msra.mxu0 %v376
    %937 = vmatpush.msra.mxu0 %v372
    %938 = vmatpush.msra.mxu0 %v368
    %939 = vmatpush.msra.mxu0 %v364
    %940 = vmatpush.msra.mxu0 %v360
    %941 = vmatpush.msra.mxu0 %v356
    %942 = vmatpush.msra.mxu0 %v352
    %943 = vmatpush.msra.mxu0 %v348
    %944 = vmatpush.msra.mxu0 %v344
    %945 = vmatpush.msra.mxu0 %v340
    %946 = vmatpush.msra.mxu0 %v336
    %947 = vmatpush.msra.mxu0 %v332
    %948 = vmatpush.msra.mxu0 %v328
    %949 = vmatpush.msra.mxu0 %v324
    %950 = vmatmul.f32.gmra.mxu0 %v678
    %v951 = vpop.f32.mrf.mxu0
    %v952 = vadd.f32 0.0, %v951
    %953 = vdwg.mxu0
    %954 = vmatpush.msra.mxu0 %v385
    %955 = vmatpush.msra.mxu0 %v381
    %956 = vmatpush.msra.mxu0 %v377
    %957 = vmatpush.msra.mxu0 %v373
    %958 = vmatpush.msra.mxu0 %v369
    %959 = vmatpush.msra.mxu0 %v365
    %960 = vmatpush.msra.mxu0 %v361
    %961 = vmatpush.msra.mxu0 %v357
    %962 = vmatpush.msra.mxu0 %v353
    %963 = vmatpush.msra.mxu0 %v349
    %964 = vmatpush.msra.mxu0 %v345
    %965 = vmatpush.msra.mxu0 %v341
    %966 = vmatpush.msra.mxu0 %v337
    %967 = vmatpush.msra.mxu0 %v333
    %968 = vmatpush.msra.mxu0 %v329
    %969 = vmatpush.msra.mxu0 %v325
    %970 = vmatmul.f32.gmra.mxu0 %v678
    %v971 = vpop.f32.mrf.mxu0
    %v972 = vadd.f32 0.0, %v971
    %973 = vdwg.mxu0
    %974 = vmatpush.msra.mxu0 %v386
    %975 = vmatpush.msra.mxu0 %v382
    %976 = vmatpush.msra.mxu0 %v378
    %977 = vmatpush.msra.mxu0 %v374
    %978 = vmatpush.msra.mxu0 %v370
    %979 = vmatpush.msra.mxu0 %v366
    %980 = vmatpush.msra.mxu0 %v362
    %981 = vmatpush.msra.mxu0 %v358
    %982 = vmatpush.msra.mxu0 %v354
    %983 = vmatpush.msra.mxu0 %v350
    %984 = vmatpush.msra.mxu0 %v346
    %985 = vmatpush.msra.mxu0 %v342
    %986 = vmatpush.msra.mxu0 %v338
    %987 = vmatpush.msra.mxu0 %v334
    %988 = vmatpush.msra.mxu0 %v330
    %989 = vmatpush.msra.mxu0 %v326
    %990 = vmatmul.f32.gmra.mxu0 %v678
    %v991 = vpop.f32.mrf.mxu0
    %v992 = vadd.f32 0.0, %v991
    %993 = vdwg.mxu0
    %v994 = vadd.f32 %v910, %v932
    %v995 = vadd.f32 %v911, %v952
    %v996 = vadd.f32 %v912, %v972
    %v997 = vadd.f32 %v913, %v992
    %v998 = vxor.u32 %v994, 2147483648
    %v999 = vmul.f32 %v998, 1.442695
    %v1000 = vpow.pop %v999
    %v1001 = vadd.f32 %v1000, 1.0
    %v1002 = vrcp.pop %v1001
    %v1003 = vmul.f32 %v1001, %v1002
    %v1004 = vsub.f32 1.0, %v1003
    %v1005 = vmul.f32 %v1002, %v1004
    %v1006 = vadd.f32 %v1002, %v1005
    %vm1007 = vweird.f32 %v1001
    %vm1008 = vweird.f32 %v1002
    %vm1009 = vmor %vm1007, %vm1008
    %v1010 = vsel %vm1009, %v1002, %v1006
    %v1011 = vand.u32 2147483647, %v1001
    %vm1012 = vcmp.eq.f32.partialorder %v1011, 8.507059e+37
    %v1013 = vand.u32 %v1001, 2147483648
    %v1014 = vor.u32 1.1754944e-38, %v1013
    %v1015 = vsel %vm1012, %v1014, %v1010
    %v1016 = vmul.f32 1.0, %v1015
    %v1017 = vxor.u32 %v995, 2147483648
    %v1018 = vmul.f32 %v1017, 1.442695
    %v1019 = vpow.pop %v1018
    %v1020 = vadd.f32 %v1019, 1.0
    %v1021 = vrcp.pop %v1020
    %v1022 = vmul.f32 %v1020, %v1021
    %v1023 = vsub.f32 1.0, %v1022
    %v1024 = vmul.f32 %v1021, %v1023
    %v1025 = vadd.f32 %v1021, %v1024
    %vm1026 = vweird.f32 %v1020
    %vm1027 = vweird.f32 %v1021
    %vm1028 = vmor %vm1026, %vm1027
    %v1029 = vsel %vm1028, %v1021, %v1025
    %v1030 = vand.u32 2147483647, %v1020
    %vm1031 = vcmp.eq.f32.partialorder %v1030, 8.507059e+37
    %v1032 = vand.u32 %v1020, 2147483648
    %v1033 = vor.u32 1.1754944e-38, %v1032
    %v1034 = vsel %vm1031, %v1033, %v1029
    %v1035 = vmul.f32 1.0, %v1034
    %v1036 = vtanh.pop %v996
    %v1037 = vxor.u32 %v997, 2147483648
    %v1038 = vmul.f32 %v1037, 1.442695
    %v1039 = vpow.pop %v1038
    %v1040 = vadd.f32 %v1039, 1.0
    %v1041 = vrcp.pop %v1040
    %v1042 = vmul.f32 %v1040, %v1041
    %v1043 = vsub.f32 1.0, %v1042
    %v1044 = vmul.f32 %v1041, %v1043
    %v1045 = vadd.f32 %v1041, %v1044
    %vm1046 = vweird.f32 %v1040
    %vm1047 = vweird.f32 %v1041
    %vm1048 = vmor %vm1046, %vm1047
    %v1049 = vsel %vm1048, %v1041, %v1045
    %v1050 = vand.u32 2147483647, %v1040
    %vm1051 = vcmp.eq.f32.partialorder %v1050, 8.507059e+37
    %v1052 = vand.u32 %v1040, 2147483648
    %v1053 = vor.u32 1.1754944e-38, %v1052
    %v1054 = vsel %vm1051, %v1053, %v1049
    %v1055 = vmul.f32 1.0, %v1054
    %v1056 = vmul.f32 %v1035, %v676
    %v1057 = vmul.f32 %v1016, %v1036
    %v1058 = vadd.f32 %v1056, %v1057
    %v1059 = vtanh.pop %v1058
    %v1060 = vmul.f32 %v1055, %v1059
    %1061 = vmatpush.msra.mxu0 %v447
    %1062 = vmatpush.msra.mxu0 %v443
    %1063 = vmatpush.msra.mxu0 %v439
    %1064 = vmatpush.msra.mxu0 %v435
    %1065 = vmatpush.msra.mxu0 %v431
    %1066 = vmatpush.msra.mxu0 %v427
    %1067 = vmatpush.msra.mxu0 %v423
    %1068 = vmatpush.msra.mxu0 %v419
    %1069 = vmatpush.msra.mxu0 %v415
    %1070 = vmatpush.msra.mxu0 %v411
    %1071 = vmatpush.msra.mxu0 %v407
    %1072 = vmatpush.msra.mxu0 %v403
    %1073 = vmatpush.msra.mxu0 %v399
    %1074 = vmatpush.msra.mxu0 %v395
    %1075 = vmatpush.msra.mxu0 %v391
    %1076 = vmatpush.msra.mxu0 %v387
    %1077 = vmatmul.f32.gmra.mxu0 %v1060
    %v1078 = vpop.f32.mrf.mxu0
    %v1079 = vadd.f32 0.0, %v1078
    %1080 = vdwg.mxu0
    %1081 = vmatpush.msra.mxu0 %v448
    %1082 = vmatpush.msra.mxu0 %v444
    %1083 = vmatpush.msra.mxu0 %v440
    %1084 = vmatpush.msra.mxu0 %v436
    %1085 = vmatpush.msra.mxu0 %v432
    %1086 = vmatpush.msra.mxu0 %v428
    %1087 = vmatpush.msra.mxu0 %v424
    %1088 = vmatpush.msra.mxu0 %v420
    %1089 = vmatpush.msra.mxu0 %v416
    %1090 = vmatpush.msra.mxu0 %v412
    %1091 = vmatpush.msra.mxu0 %v408
    %1092 = vmatpush.msra.mxu0 %v404
    %1093 = vmatpush.msra.mxu0 %v400
    %1094 = vmatpush.msra.mxu0 %v396
    %1095 = vmatpush.msra.mxu0 %v392
    %1096 = vmatpush.msra.mxu0 %v388
    %1097 = vmatmul.f32.gmra.mxu0 %v1060
    %v1098 = vpop.f32.mrf.mxu0
    %v1099 = vadd.f32 0.0, %v1098
    %1100 = vdwg.mxu0
    %1101 = vmatpush.msra.mxu0 %v449
    %1102 = vmatpush.msra.mxu0 %v445
    %1103 = vmatpush.msra.mxu0 %v441
    %1104 = vmatpush.msra.mxu0 %v437
    %1105 = vmatpush.msra.mxu0 %v433
    %1106 = vmatpush.msra.mxu0 %v429
    %1107 = vmatpush.msra.mxu0 %v425
    %1108 = vmatpush.msra.mxu0 %v421
    %1109 = vmatpush.msra.mxu0 %v417
    %1110 = vmatpush.msra.mxu0 %v413
    %1111 = vmatpush.msra.mxu0 %v409
    %1112 = vmatpush.msra.mxu0 %v405
    %1113 = vmatpush.msra.mxu0 %v401
    %1114 = vmatpush.msra.mxu0 %v397
    %1115 = vmatpush.msra.mxu0 %v393
    %1116 = vmatpush.msra.mxu0 %v389
    %1117 = vmatmul.f32.gmra.mxu0 %v1060
    %v1118 = vpop.f32.mrf.mxu0
    %v1119 = vadd.f32 0.0, %v1118
    %1120 = vdwg.mxu0
    %1121 = vmatpush.msra.mxu0 %v450
    %1122 = vmatpush.msra.mxu0 %v446
    %1123 = vmatpush.msra.mxu0 %v442
    %1124 = vmatpush.msra.mxu0 %v438
    %1125 = vmatpush.msra.mxu0 %v434
    %1126 = vmatpush.msra.mxu0 %v430
    %1127 = vmatpush.msra.mxu0 %v426
    %1128 = vmatpush.msra.mxu0 %v422
    %1129 = vmatpush.msra.mxu0 %v418
    %1130 = vmatpush.msra.mxu0 %v414
    %1131 = vmatpush.msra.mxu0 %v410
    %1132 = vmatpush.msra.mxu0 %v406
    %1133 = vmatpush.msra.mxu0 %v402
    %1134 = vmatpush.msra.mxu0 %v398
    %1135 = vmatpush.msra.mxu0 %v394
    %1136 = vmatpush.msra.mxu0 %v390
    %1137 = vmatmul.f32.gmra.mxu0 %v1060
    %v1138 = vpop.f32.mrf.mxu0
    %v1139 = vadd.f32 0.0, %v1138
    %1140 = vdwg.mxu0
    %1141 = vmatpush.msra.mxu0 %v511
    %1142 = vmatpush.msra.mxu0 %v507
    %1143 = vmatpush.msra.mxu0 %v503
    %1144 = vmatpush.msra.mxu0 %v499
    %1145 = vmatpush.msra.mxu0 %v495
    %1146 = vmatpush.msra.mxu0 %v491
    %1147 = vmatpush.msra.mxu0 %v487
    %1148 = vmatpush.msra.mxu0 %v483
    %1149 = vmatpush.msra.mxu0 %v479
    %1150 = vmatpush.msra.mxu0 %v475
    %1151 = vmatpush.msra.mxu0 %v471
    %1152 = vmatpush.msra.mxu0 %v467
    %1153 = vmatpush.msra.mxu0 %v463
    %1154 = vmatpush.msra.mxu0 %v459
    %1155 = vmatpush.msra.mxu0 %v455
    %1156 = vmatpush.msra.mxu0 %v451
    %1157 = vmatmul.f32.gmra.mxu0 %v905
    %v1158 = vpop.f32.mrf.mxu0
    %v1159 = vadd.f32 %v1079, %v1158
    %1160 = vdwg.mxu0
    %1161 = vmatpush.msra.mxu0 %v512
    %1162 = vmatpush.msra.mxu0 %v508
    %1163 = vmatpush.msra.mxu0 %v504
    %1164 = vmatpush.msra.mxu0 %v500
    %1165 = vmatpush.msra.mxu0 %v496
    %1166 = vmatpush.msra.mxu0 %v492
    %1167 = vmatpush.msra.mxu0 %v488
    %1168 = vmatpush.msra.mxu0 %v484
    %1169 = vmatpush.msra.mxu0 %v480
    %1170 = vmatpush.msra.mxu0 %v476
    %1171 = vmatpush.msra.mxu0 %v472
    %1172 = vmatpush.msra.mxu0 %v468
    %1173 = vmatpush.msra.mxu0 %v464
    %1174 = vmatpush.msra.mxu0 %v460
    %1175 = vmatpush.msra.mxu0 %v456
    %1176 = vmatpush.msra.mxu0 %v452
    %1177 = vmatmul.f32.gmra.mxu0 %v905
    %v1178 = vpop.f32.mrf.mxu0
    %v1179 = vadd.f32 %v1099, %v1178
    %1180 = vdwg.mxu0
    %1181 = vmatpush.msra.mxu0 %v513
    %1182 = vmatpush.msra.mxu0 %v509
    %1183 = vmatpush.msra.mxu0 %v505
    %1184 = vmatpush.msra.mxu0 %v501
    %1185 = vmatpush.msra.mxu0 %v497
    %1186 = vmatpush.msra.mxu0 %v493
    %1187 = vmatpush.msra.mxu0 %v489
    %1188 = vmatpush.msra.mxu0 %v485
    %1189 = vmatpush.msra.mxu0 %v481
    %1190 = vmatpush.msra.mxu0 %v477
    %1191 = vmatpush.msra.mxu0 %v473
    %1192 = vmatpush.msra.mxu0 %v469
    %1193 = vmatpush.msra.mxu0 %v465
    %1194 = vmatpush.msra.mxu0 %v461
    %1195 = vmatpush.msra.mxu0 %v457
    %1196 = vmatpush.msra.mxu0 %v453
    %1197 = vmatmul.f32.gmra.mxu0 %v905
    %v1198 = vpop.f32.mrf.mxu0
    %v1199 = vadd.f32 %v1119, %v1198
    %1200 = vdwg.mxu0
    %1201 = vmatpush.msra.mxu0 %v514
    %1202 = vmatpush.msra.mxu0 %v510
    %1203 = vmatpush.msra.mxu0 %v506
    %1204 = vmatpush.msra.mxu0 %v502
    %1205 = vmatpush.msra.mxu0 %v498
    %1206 = vmatpush.msra.mxu0 %v494
    %1207 = vmatpush.msra.mxu0 %v490
    %1208 = vmatpush.msra.mxu0 %v486
    %1209 = vmatpush.msra.mxu0 %v482
    %1210 = vmatpush.msra.mxu0 %v478
    %1211 = vmatpush.msra.mxu0 %v474
    %1212 = vmatpush.msra.mxu0 %v470
    %1213 = vmatpush.msra.mxu0 %v466
    %1214 = vmatpush.msra.mxu0 %v462
    %1215 = vmatpush.msra.mxu0 %v458
    %1216 = vmatpush.msra.mxu0 %v454
    %1217 = vmatmul.f32.gmra.mxu0 %v905
    %v1218 = vpop.f32.mrf.mxu0
    %v1219 = vadd.f32 %v1139, %v1218
    %1220 = vdwg.mxu0
    %v1221 = vadd.f32 %v1159, %v517
    %v1222 = vadd.f32 %v1179, %v518
    %v1223 = vadd.f32 %v1199, %v519
    %v1224 = vadd.f32 %v1219, %v520
    %v1225 = vxor.u32 %v1221, 2147483648
    %v1226 = vmul.f32 %v1225, 1.442695
    %v1227 = vpow.pop %v1226
    %v1228 = vadd.f32 %v1227, 1.0
    %v1229 = vrcp.pop %v1228
    %v1230 = vmul.f32 %v1228, %v1229
    %v1231 = vsub.f32 1.0, %v1230
    %v1232 = vmul.f32 %v1229, %v1231
    %v1233 = vadd.f32 %v1229, %v1232
    %vm1234 = vweird.f32 %v1228
    %vm1235 = vweird.f32 %v1229
    %vm1236 = vmor %vm1234, %vm1235
    %v1237 = vsel %vm1236, %v1229, %v1233
    %v1238 = vand.u32 2147483647, %v1228
    %vm1239 = vcmp.eq.f32.partialorder %v1238, 8.507059e+37
    %v1240 = vand.u32 %v1228, 2147483648
    %v1241 = vor.u32 1.1754944e-38, %v1240
    %v1242 = vsel %vm1239, %v1241, %v1237
    %v1243 = vmul.f32 1.0, %v1242
    %v1244 = vxor.u32 %v1222, 2147483648
    %v1245 = vmul.f32 %v1244, 1.442695
    %v1246 = vpow.pop %v1245
    %v1247 = vadd.f32 %v1246, 1.0
    %v1248 = vrcp.pop %v1247
    %v1249 = vmul.f32 %v1247, %v1248
    %v1250 = vsub.f32 1.0, %v1249
    %v1251 = vmul.f32 %v1248, %v1250
    %v1252 = vadd.f32 %v1248, %v1251
    %vm1253 = vweird.f32 %v1247
    %vm1254 = vweird.f32 %v1248
    %vm1255 = vmor %vm1253, %vm1254
    %v1256 = vsel %vm1255, %v1248, %v1252
    %v1257 = vand.u32 2147483647, %v1247
    %vm1258 = vcmp.eq.f32.partialorder %v1257, 8.507059e+37
    %v1259 = vand.u32 %v1247, 2147483648
    %v1260 = vor.u32 1.1754944e-38, %v1259
    %v1261 = vsel %vm1258, %v1260, %v1256
    %v1262 = vmul.f32 1.0, %v1261
    %v1263 = vtanh.pop %v1223
    %v1264 = vxor.u32 %v1224, 2147483648
    %v1265 = vmul.f32 %v1264, 1.442695
    %v1266 = vpow.pop %v1265
    %v1267 = vadd.f32 %v1266, 1.0
    %v1268 = vrcp.pop %v1267
    %v1269 = vmul.f32 %v1267, %v1268
    %v1270 = vsub.f32 1.0, %v1269
    %v1271 = vmul.f32 %v1268, %v1270
    %v1272 = vadd.f32 %v1268, %v1271
    %vm1273 = vweird.f32 %v1267
    %vm1274 = vweird.f32 %v1268
    %vm1275 = vmor %vm1273, %vm1274
    %v1276 = vsel %vm1275, %v1268, %v1272
    %v1277 = vand.u32 2147483647, %v1267
    %vm1278 = vcmp.eq.f32.partialorder %v1277, 8.507059e+37
    %v1279 = vand.u32 %v1267, 2147483648
    %v1280 = vor.u32 1.1754944e-38, %v1279
    %v1281 = vsel %vm1278, %v1280, %v1276
    %v1282 = vmul.f32 1.0, %v1281
    %v1283 = vmul.f32 %v1262, %v903
    %v1284 = vmul.f32 %v1243, %v1263
    %v1285 = vadd.f32 %v1283, %v1284
    %v1286 = vtanh.pop %v1285
    %v1287 = vmul.f32 %v1282, %v1286
    %s1288 = scalar_lea.vmem [#allocation3], 8
    %1289 = vst [vmem:[%s1288] sm:$0xff] %v1287
    %s1290 = smul.u32 2, 4
    %s1291 = smul.addr %s1290, 8
    %s1292 = scalar_lea.vmem [#allocation2], %s1291
    %v1293 = vld [vmem:[%s1292] sm:$0xff]
    %v1294 = vld [vmem:[%s1292 + $0x8] sm:$0xff]
    %v1295 = vld [vmem:[%s1292 + $0x10] sm:$0xff]
    %v1296 = vld [vmem:[%s1292 + $0x18] sm:$0xff]
    %1297 = vmatpush.msra.mxu0 %v383
    %1298 = vmatpush.msra.mxu0 %v379
    %1299 = vmatpush.msra.mxu0 %v375
    %1300 = vmatpush.msra.mxu0 %v371
    %1301 = vmatpush.msra.mxu0 %v367
    %1302 = vmatpush.msra.mxu0 %v363
    %1303 = vmatpush.msra.mxu0 %v359
    %1304 = vmatpush.msra.mxu0 %v355
    %1305 = vmatpush.msra.mxu0 %v351
    %1306 = vmatpush.msra.mxu0 %v347
    %1307 = vmatpush.msra.mxu0 %v343
    %1308 = vmatpush.msra.mxu0 %v339
    %1309 = vmatpush.msra.mxu0 %v335
    %1310 = vmatpush.msra.mxu0 %v331
    %1311 = vmatpush.msra.mxu0 %v327
    %1312 = vmatpush.msra.mxu0 %v323
    %1313 = vmatmul.f32.gmra.mxu0 %v1060
    %v1314 = vpop.f32.mrf.mxu0
    %v1315 = vadd.f32 0.0, %v1314
    %1316 = vdwg.mxu0
    %1317 = vmatpush.msra.mxu0 %v384
    %1318 = vmatpush.msra.mxu0 %v380
    %1319 = vmatpush.msra.mxu0 %v376
    %1320 = vmatpush.msra.mxu0 %v372
    %1321 = vmatpush.msra.mxu0 %v368
    %1322 = vmatpush.msra.mxu0 %v364
    %1323 = vmatpush.msra.mxu0 %v360
    %1324 = vmatpush.msra.mxu0 %v356
    %1325 = vmatpush.msra.mxu0 %v352
    %1326 = vmatpush.msra.mxu0 %v348
    %1327 = vmatpush.msra.mxu0 %v344
    %1328 = vmatpush.msra.mxu0 %v340
    %1329 = vmatpush.msra.mxu0 %v336
    %1330 = vmatpush.msra.mxu0 %v332
    %1331 = vmatpush.msra.mxu0 %v328
    %1332 = vmatpush.msra.mxu0 %v324
    %1333 = vmatmul.f32.gmra.mxu0 %v1060
    %v1334 = vpop.f32.mrf.mxu0
    %v1335 = vadd.f32 0.0, %v1334
    %1336 = vdwg.mxu0
    %1337 = vmatpush.msra.mxu0 %v385
    %1338 = vmatpush.msra.mxu0 %v381
    %1339 = vmatpush.msra.mxu0 %v377
    %1340 = vmatpush.msra.mxu0 %v373
    %1341 = vmatpush.msra.mxu0 %v369
    %1342 = vmatpush.msra.mxu0 %v365
    %1343 = vmatpush.msra.mxu0 %v361
    %1344 = vmatpush.msra.mxu0 %v357
    %1345 = vmatpush.msra.mxu0 %v353
    %1346 = vmatpush.msra.mxu0 %v349
    %1347 = vmatpush.msra.mxu0 %v345
    %1348 = vmatpush.msra.mxu0 %v341
    %1349 = vmatpush.msra.mxu0 %v337
    %1350 = vmatpush.msra.mxu0 %v333
    %1351 = vmatpush.msra.mxu0 %v329
    %1352 = vmatpush.msra.mxu0 %v325
    %1353 = vmatmul.f32.gmra.mxu0 %v1060
    %v1354 = vpop.f32.mrf.mxu0
    %v1355 = vadd.f32 0.0, %v1354
    %1356 = vdwg.mxu0
    %1357 = vmatpush.msra.mxu0 %v386
    %1358 = vmatpush.msra.mxu0 %v382
    %1359 = vmatpush.msra.mxu0 %v378
    %1360 = vmatpush.msra.mxu0 %v374
    %1361 = vmatpush.msra.mxu0 %v370
    %1362 = vmatpush.msra.mxu0 %v366
    %1363 = vmatpush.msra.mxu0 %v362
    %1364 = vmatpush.msra.mxu0 %v358
    %1365 = vmatpush.msra.mxu0 %v354
    %1366 = vmatpush.msra.mxu0 %v350
    %1367 = vmatpush.msra.mxu0 %v346
    %1368 = vmatpush.msra.mxu0 %v342
    %1369 = vmatpush.msra.mxu0 %v338
    %1370 = vmatpush.msra.mxu0 %v334
    %1371 = vmatpush.msra.mxu0 %v330
    %1372 = vmatpush.msra.mxu0 %v326
    %1373 = vmatmul.f32.gmra.mxu0 %v1060
    %v1374 = vpop.f32.mrf.mxu0
    %v1375 = vadd.f32 0.0, %v1374
    %1376 = vdwg.mxu0
    %v1377 = vadd.f32 %v1293, %v1315
    %v1378 = vadd.f32 %v1294, %v1335
    %v1379 = vadd.f32 %v1295, %v1355
    %v1380 = vadd.f32 %v1296, %v1375
    %v1381 = vxor.u32 %v1377, 2147483648
    %v1382 = vmul.f32 %v1381, 1.442695
    %v1383 = vpow.pop %v1382
    %v1384 = vadd.f32 %v1383, 1.0
    %v1385 = vrcp.pop %v1384
    %v1386 = vmul.f32 %v1384, %v1385
    %v1387 = vsub.f32 1.0, %v1386
    %v1388 = vmul.f32 %v1385, %v1387
    %v1389 = vadd.f32 %v1385, %v1388
    %vm1390 = vweird.f32 %v1384
    %vm1391 = vweird.f32 %v1385
    %vm1392 = vmor %vm1390, %vm1391
    %v1393 = vsel %vm1392, %v1385, %v1389
    %v1394 = vand.u32 2147483647, %v1384
    %vm1395 = vcmp.eq.f32.partialorder %v1394, 8.507059e+37
    %v1396 = vand.u32 %v1384, 2147483648
    %v1397 = vor.u32 1.1754944e-38, %v1396
    %v1398 = vsel %vm1395, %v1397, %v1393
    %v1399 = vmul.f32 1.0, %v1398
    %v1400 = vxor.u32 %v1378, 2147483648
    %v1401 = vmul.f32 %v1400, 1.442695
    %v1402 = vpow.pop %v1401
    %v1403 = vadd.f32 %v1402, 1.0
    %v1404 = vrcp.pop %v1403
    %v1405 = vmul.f32 %v1403, %v1404
    %v1406 = vsub.f32 1.0, %v1405
    %v1407 = vmul.f32 %v1404, %v1406
    %v1408 = vadd.f32 %v1404, %v1407
    %vm1409 = vweird.f32 %v1403
    %vm1410 = vweird.f32 %v1404
    %vm1411 = vmor %vm1409, %vm1410
    %v1412 = vsel %vm1411, %v1404, %v1408
    %v1413 = vand.u32 2147483647, %v1403
    %vm1414 = vcmp.eq.f32.partialorder %v1413, 8.507059e+37
    %v1415 = vand.u32 %v1403, 2147483648
    %v1416 = vor.u32 1.1754944e-38, %v1415
    %v1417 = vsel %vm1414, %v1416, %v1412
    %v1418 = vmul.f32 1.0, %v1417
    %v1419 = vtanh.pop %v1379
    %v1420 = vxor.u32 %v1380, 2147483648
    %v1421 = vmul.f32 %v1420, 1.442695
    %v1422 = vpow.pop %v1421
    %v1423 = vadd.f32 %v1422, 1.0
    %v1424 = vrcp.pop %v1423
    %v1425 = vmul.f32 %v1423, %v1424
    %v1426 = vsub.f32 1.0, %v1425
    %v1427 = vmul.f32 %v1424, %v1426
    %v1428 = vadd.f32 %v1424, %v1427
    %vm1429 = vweird.f32 %v1423
    %vm1430 = vweird.f32 %v1424
    %vm1431 = vmor %vm1429, %vm1430
    %v1432 = vsel %vm1431, %v1424, %v1428
    %v1433 = vand.u32 2147483647, %v1423
    %vm1434 = vcmp.eq.f32.partialorder %v1433, 8.507059e+37
    %v1435 = vand.u32 %v1423, 2147483648
    %v1436 = vor.u32 1.1754944e-38, %v1435
    %v1437 = vsel %vm1434, %v1436, %v1432
    %v1438 = vmul.f32 1.0, %v1437
    %v1439 = vmul.f32 %v1418, %v1058
    %v1440 = vmul.f32 %v1399, %v1419
    %v1441 = vadd.f32 %v1439, %v1440
    %v1442 = vtanh.pop %v1441
    %v1443 = vmul.f32 %v1438, %v1442
    %1444 = vmatpush.msra.mxu0 %v447
    %1445 = vmatpush.msra.mxu0 %v443
    %1446 = vmatpush.msra.mxu0 %v439
    %1447 = vmatpush.msra.mxu0 %v435
    %1448 = vmatpush.msra.mxu0 %v431
    %1449 = vmatpush.msra.mxu0 %v427
    %1450 = vmatpush.msra.mxu0 %v423
    %1451 = vmatpush.msra.mxu0 %v419
    %1452 = vmatpush.msra.mxu0 %v415
    %1453 = vmatpush.msra.mxu0 %v411
    %1454 = vmatpush.msra.mxu0 %v407
    %1455 = vmatpush.msra.mxu0 %v403
    %1456 = vmatpush.msra.mxu0 %v399
    %1457 = vmatpush.msra.mxu0 %v395
    %1458 = vmatpush.msra.mxu0 %v391
    %1459 = vmatpush.msra.mxu0 %v387
    %1460 = vmatmul.f32.gmra.mxu0 %v1443
    %v1461 = vpop.f32.mrf.mxu0
    %v1462 = vadd.f32 0.0, %v1461
    %1463 = vdwg.mxu0
    %1464 = vmatpush.msra.mxu0 %v448
    %1465 = vmatpush.msra.mxu0 %v444
    %1466 = vmatpush.msra.mxu0 %v440
    %1467 = vmatpush.msra.mxu0 %v436
    %1468 = vmatpush.msra.mxu0 %v432
    %1469 = vmatpush.msra.mxu0 %v428
    %1470 = vmatpush.msra.mxu0 %v424
    %1471 = vmatpush.msra.mxu0 %v420
    %1472 = vmatpush.msra.mxu0 %v416
    %1473 = vmatpush.msra.mxu0 %v412
    %1474 = vmatpush.msra.mxu0 %v408
    %1475 = vmatpush.msra.mxu0 %v404
    %1476 = vmatpush.msra.mxu0 %v400
    %1477 = vmatpush.msra.mxu0 %v396
    %1478 = vmatpush.msra.mxu0 %v392
    %1479 = vmatpush.msra.mxu0 %v388
    %1480 = vmatmul.f32.gmra.mxu0 %v1443
    %v1481 = vpop.f32.mrf.mxu0
    %v1482 = vadd.f32 0.0, %v1481
    %1483 = vdwg.mxu0
    %1484 = vmatpush.msra.mxu0 %v449
    %1485 = vmatpush.msra.mxu0 %v445
    %1486 = vmatpush.msra.mxu0 %v441
    %1487 = vmatpush.msra.mxu0 %v437
    %1488 = vmatpush.msra.mxu0 %v433
    %1489 = vmatpush.msra.mxu0 %v429
    %1490 = vmatpush.msra.mxu0 %v425
    %1491 = vmatpush.msra.mxu0 %v421
    %1492 = vmatpush.msra.mxu0 %v417
    %1493 = vmatpush.msra.mxu0 %v413
    %1494 = vmatpush.msra.mxu0 %v409
    %1495 = vmatpush.msra.mxu0 %v405
    %1496 = vmatpush.msra.mxu0 %v401
    %1497 = vmatpush.msra.mxu0 %v397
    %1498 = vmatpush.msra.mxu0 %v393
    %1499 = vmatpush.msra.mxu0 %v389
    %1500 = vmatmul.f32.gmra.mxu0 %v1443
    %v1501 = vpop.f32.mrf.mxu0
    %v1502 = vadd.f32 0.0, %v1501
    %1503 = vdwg.mxu0
    %1504 = vmatpush.msra.mxu0 %v450
    %1505 = vmatpush.msra.mxu0 %v446
    %1506 = vmatpush.msra.mxu0 %v442
    %1507 = vmatpush.msra.mxu0 %v438
    %1508 = vmatpush.msra.mxu0 %v434
    %1509 = vmatpush.msra.mxu0 %v430
    %1510 = vmatpush.msra.mxu0 %v426
    %1511 = vmatpush.msra.mxu0 %v422
    %1512 = vmatpush.msra.mxu0 %v418
    %1513 = vmatpush.msra.mxu0 %v414
    %1514 = vmatpush.msra.mxu0 %v410
    %1515 = vmatpush.msra.mxu0 %v406
    %1516 = vmatpush.msra.mxu0 %v402
    %1517 = vmatpush.msra.mxu0 %v398
    %1518 = vmatpush.msra.mxu0 %v394
    %1519 = vmatpush.msra.mxu0 %v390
    %1520 = vmatmul.f32.gmra.mxu0 %v1443
    %v1521 = vpop.f32.mrf.mxu0
    %v1522 = vadd.f32 0.0, %v1521
    %1523 = vdwg.mxu0
    %1524 = vmatpush.msra.mxu0 %v511
    %1525 = vmatpush.msra.mxu0 %v507
    %1526 = vmatpush.msra.mxu0 %v503
    %1527 = vmatpush.msra.mxu0 %v499
    %1528 = vmatpush.msra.mxu0 %v495
    %1529 = vmatpush.msra.mxu0 %v491
    %1530 = vmatpush.msra.mxu0 %v487
    %1531 = vmatpush.msra.mxu0 %v483
    %1532 = vmatpush.msra.mxu0 %v479
    %1533 = vmatpush.msra.mxu0 %v475
    %1534 = vmatpush.msra.mxu0 %v471
    %1535 = vmatpush.msra.mxu0 %v467
    %1536 = vmatpush.msra.mxu0 %v463
    %1537 = vmatpush.msra.mxu0 %v459
    %1538 = vmatpush.msra.mxu0 %v455
    %1539 = vmatpush.msra.mxu0 %v451
    %1540 = vmatmul.f32.gmra.mxu0 %v1287
    %v1541 = vpop.f32.mrf.mxu0
    %v1542 = vadd.f32 %v1462, %v1541
    %1543 = vdwg.mxu0
    %1544 = vmatpush.msra.mxu0 %v512
    %1545 = vmatpush.msra.mxu0 %v508
    %1546 = vmatpush.msra.mxu0 %v504
    %1547 = vmatpush.msra.mxu0 %v500
    %1548 = vmatpush.msra.mxu0 %v496
    %1549 = vmatpush.msra.mxu0 %v492
    %1550 = vmatpush.msra.mxu0 %v488
    %1551 = vmatpush.msra.mxu0 %v484
    %1552 = vmatpush.msra.mxu0 %v480
    %1553 = vmatpush.msra.mxu0 %v476
    %1554 = vmatpush.msra.mxu0 %v472
    %1555 = vmatpush.msra.mxu0 %v468
    %1556 = vmatpush.msra.mxu0 %v464
    %1557 = vmatpush.msra.mxu0 %v460
    %1558 = vmatpush.msra.mxu0 %v456
    %1559 = vmatpush.msra.mxu0 %v452
    %1560 = vmatmul.f32.gmra.mxu0 %v1287
    %v1561 = vpop.f32.mrf.mxu0
    %v1562 = vadd.f32 %v1482, %v1561
    %1563 = vdwg.mxu0
    %1564 = vmatpush.msra.mxu0 %v513
    %1565 = vmatpush.msra.mxu0 %v509
    %1566 = vmatpush.msra.mxu0 %v505
    %1567 = vmatpush.msra.mxu0 %v501
    %1568 = vmatpush.msra.mxu0 %v497
    %1569 = vmatpush.msra.mxu0 %v493
    %1570 = vmatpush.msra.mxu0 %v489
    %1571 = vmatpush.msra.mxu0 %v485
    %1572 = vmatpush.msra.mxu0 %v481
    %1573 = vmatpush.msra.mxu0 %v477
    %1574 = vmatpush.msra.mxu0 %v473
    %1575 = vmatpush.msra.mxu0 %v469
    %1576 = vmatpush.msra.mxu0 %v465
    %1577 = vmatpush.msra.mxu0 %v461
    %1578 = vmatpush.msra.mxu0 %v457
    %1579 = vmatpush.msra.mxu0 %v453
    %1580 = vmatmul.f32.gmra.mxu0 %v1287
    %v1581 = vpop.f32.mrf.mxu0
    %v1582 = vadd.f32 %v1502, %v1581
    %1583 = vdwg.mxu0
    %1584 = vmatpush.msra.mxu0 %v514
    %1585 = vmatpush.msra.mxu0 %v510
    %1586 = vmatpush.msra.mxu0 %v506
    %1587 = vmatpush.msra.mxu0 %v502
    %1588 = vmatpush.msra.mxu0 %v498
    %1589 = vmatpush.msra.mxu0 %v494
    %1590 = vmatpush.msra.mxu0 %v490
    %1591 = vmatpush.msra.mxu0 %v486
    %1592 = vmatpush.msra.mxu0 %v482
    %1593 = vmatpush.msra.mxu0 %v478
    %1594 = vmatpush.msra.mxu0 %v474
    %1595 = vmatpush.msra.mxu0 %v470
    %1596 = vmatpush.msra.mxu0 %v466
    %1597 = vmatpush.msra.mxu0 %v462
    %1598 = vmatpush.msra.mxu0 %v458
    %1599 = vmatpush.msra.mxu0 %v454
    %1600 = vmatmul.f32.gmra.mxu0 %v1287
    %v1601 = vpop.f32.mrf.mxu0
    %v1602 = vadd.f32 %v1522, %v1601
    %1603 = vdwg.mxu0
    %v1604 = vadd.f32 %v1542, %v517
    %v1605 = vadd.f32 %v1562, %v518
    %v1606 = vadd.f32 %v1582, %v519
    %v1607 = vadd.f32 %v1602, %v520
    %v1608 = vxor.u32 %v1604, 2147483648
    %v1609 = vmul.f32 %v1608, 1.442695
    %v1610 = vpow.pop %v1609
    %v1611 = vadd.f32 %v1610, 1.0
    %v1612 = vrcp.pop %v1611
    %v1613 = vmul.f32 %v1611, %v1612
    %v1614 = vsub.f32 1.0, %v1613
    %v1615 = vmul.f32 %v1612, %v1614
    %v1616 = vadd.f32 %v1612, %v1615
    %vm1617 = vweird.f32 %v1611
    %vm1618 = vweird.f32 %v1612
    %vm1619 = vmor %vm1617, %vm1618
    %v1620 = vsel %vm1619, %v1612, %v1616
    %v1621 = vand.u32 2147483647, %v1611
    %vm1622 = vcmp.eq.f32.partialorder %v1621, 8.507059e+37
    %v1623 = vand.u32 %v1611, 2147483648
    %v1624 = vor.u32 1.1754944e-38, %v1623
    %v1625 = vsel %vm1622, %v1624, %v1620
    %v1626 = vmul.f32 1.0, %v1625
    %v1627 = vxor.u32 %v1605, 2147483648
    %v1628 = vmul.f32 %v1627, 1.442695
    %v1629 = vpow.pop %v1628
    %v1630 = vadd.f32 %v1629, 1.0
    %v1631 = vrcp.pop %v1630
    %v1632 = vmul.f32 %v1630, %v1631
    %v1633 = vsub.f32 1.0, %v1632
    %v1634 = vmul.f32 %v1631, %v1633
    %v1635 = vadd.f32 %v1631, %v1634
    %vm1636 = vweird.f32 %v1630
    %vm1637 = vweird.f32 %v1631
    %vm1638 = vmor %vm1636, %vm1637
    %v1639 = vsel %vm1638, %v1631, %v1635
    %v1640 = vand.u32 2147483647, %v1630
    %vm1641 = vcmp.eq.f32.partialorder %v1640, 8.507059e+37
    %v1642 = vand.u32 %v1630, 2147483648
    %v1643 = vor.u32 1.1754944e-38, %v1642
    %v1644 = vsel %vm1641, %v1643, %v1639
    %v1645 = vmul.f32 1.0, %v1644
    %v1646 = vtanh.pop %v1606
    %v1647 = vxor.u32 %v1607, 2147483648
    %v1648 = vmul.f32 %v1647, 1.442695
    %v1649 = vpow.pop %v1648
    %v1650 = vadd.f32 %v1649, 1.0
    %v1651 = vrcp.pop %v1650
    %v1652 = vmul.f32 %v1650, %v1651
    %v1653 = vsub.f32 1.0, %v1652
    %v1654 = vmul.f32 %v1651, %v1653
    %v1655 = vadd.f32 %v1651, %v1654
    %vm1656 = vweird.f32 %v1650
    %vm1657 = vweird.f32 %v1651
    %vm1658 = vmor %vm1656, %vm1657
    %v1659 = vsel %vm1658, %v1651, %v1655
    %v1660 = vand.u32 2147483647, %v1650
    %vm1661 = vcmp.eq.f32.partialorder %v1660, 8.507059e+37
    %v1662 = vand.u32 %v1650, 2147483648
    %v1663 = vor.u32 1.1754944e-38, %v1662
    %v1664 = vsel %vm1661, %v1663, %v1659
    %v1665 = vmul.f32 1.0, %v1664
    %v1666 = vmul.f32 %v1645, %v1285
    %v1667 = vmul.f32 %v1626, %v1646
    %v1668 = vadd.f32 %v1666, %v1667
    %v1669 = vtanh.pop %v1668
    %v1670 = vmul.f32 %v1665, %v1669
    %s1671 = scalar_lea.vmem [#allocation3], 16
    %1672 = vst [vmem:[%s1671] sm:$0xff] %v1670
    %s1673 = smul.u32 3, 4
    %s1674 = smul.addr %s1673, 8
    %s1675 = scalar_lea.vmem [#allocation2], %s1674
    %v1676 = vld [vmem:[%s1675] sm:$0xff]
    %v1677 = vld [vmem:[%s1675 + $0x8] sm:$0xff]
    %v1678 = vld [vmem:[%s1675 + $0x10] sm:$0xff]
    %v1679 = vld [vmem:[%s1675 + $0x18] sm:$0xff]
    %1680 = vmatpush.msra.mxu0 %v383
    %1681 = vmatpush.msra.mxu0 %v379
    %1682 = vmatpush.msra.mxu0 %v375
    %1683 = vmatpush.msra.mxu0 %v371
    %1684 = vmatpush.msra.mxu0 %v367
    %1685 = vmatpush.msra.mxu0 %v363
    %1686 = vmatpush.msra.mxu0 %v359
    %1687 = vmatpush.msra.mxu0 %v355
    %1688 = vmatpush.msra.mxu0 %v351
    %1689 = vmatpush.msra.mxu0 %v347
    %1690 = vmatpush.msra.mxu0 %v343
    %1691 = vmatpush.msra.mxu0 %v339
    %1692 = vmatpush.msra.mxu0 %v335
    %1693 = vmatpush.msra.mxu0 %v331
    %1694 = vmatpush.msra.mxu0 %v327
    %1695 = vmatpush.msra.mxu0 %v323
    %1696 = vmatmul.f32.gmra.mxu0 %v1443
    %v1697 = vpop.f32.mrf.mxu0
    %v1698 = vadd.f32 0.0, %v1697
    %1699 = vdwg.mxu0
    %1700 = vmatpush.msra.mxu0 %v384
    %1701 = vmatpush.msra.mxu0 %v380
    %1702 = vmatpush.msra.mxu0 %v376
    %1703 = vmatpush.msra.mxu0 %v372
    %1704 = vmatpush.msra.mxu0 %v368
    %1705 = vmatpush.msra.mxu0 %v364
    %1706 = vmatpush.msra.mxu0 %v360
    %1707 = vmatpush.msra.mxu0 %v356
    %1708 = vmatpush.msra.mxu0 %v352
    %1709 = vmatpush.msra.mxu0 %v348
    %1710 = vmatpush.msra.mxu0 %v344
    %1711 = vmatpush.msra.mxu0 %v340
    %1712 = vmatpush.msra.mxu0 %v336
    %1713 = vmatpush.msra.mxu0 %v332
    %1714 = vmatpush.msra.mxu0 %v328
    %1715 = vmatpush.msra.mxu0 %v324
    %1716 = vmatmul.f32.gmra.mxu0 %v1443
    %v1717 = vpop.f32.mrf.mxu0
    %v1718 = vadd.f32 0.0, %v1717
    %1719 = vdwg.mxu0
    %1720 = vmatpush.msra.mxu0 %v385
    %1721 = vmatpush.msra.mxu0 %v381
    %1722 = vmatpush.msra.mxu0 %v377
    %1723 = vmatpush.msra.mxu0 %v373
    %1724 = vmatpush.msra.mxu0 %v369
    %1725 = vmatpush.msra.mxu0 %v365
    %1726 = vmatpush.msra.mxu0 %v361
    %1727 = vmatpush.msra.mxu0 %v357
    %1728 = vmatpush.msra.mxu0 %v353
    %1729 = vmatpush.msra.mxu0 %v349
    %1730 = vmatpush.msra.mxu0 %v345
    %1731 = vmatpush.msra.mxu0 %v341
    %1732 = vmatpush.msra.mxu0 %v337
    %1733 = vmatpush.msra.mxu0 %v333
    %1734 = vmatpush.msra.mxu0 %v329
    %1735 = vmatpush.msra.mxu0 %v325
    %1736 = vmatmul.f32.gmra.mxu0 %v1443
    %v1737 = vpop.f32.mrf.mxu0
    %v1738 = vadd.f32 0.0, %v1737
    %1739 = vdwg.mxu0
    %1740 = vmatpush.msra.mxu0 %v386
    %1741 = vmatpush.msra.mxu0 %v382
    %1742 = vmatpush.msra.mxu0 %v378
    %1743 = vmatpush.msra.mxu0 %v374
    %1744 = vmatpush.msra.mxu0 %v370
    %1745 = vmatpush.msra.mxu0 %v366
    %1746 = vmatpush.msra.mxu0 %v362
    %1747 = vmatpush.msra.mxu0 %v358
    %1748 = vmatpush.msra.mxu0 %v354
    %1749 = vmatpush.msra.mxu0 %v350
    %1750 = vmatpush.msra.mxu0 %v346
    %1751 = vmatpush.msra.mxu0 %v342
    %1752 = vmatpush.msra.mxu0 %v338
    %1753 = vmatpush.msra.mxu0 %v334
    %1754 = vmatpush.msra.mxu0 %v330
    %1755 = vmatpush.msra.mxu0 %v326
    %1756 = vmatmul.f32.gmra.mxu0 %v1443
    %v1757 = vpop.f32.mrf.mxu0
    %v1758 = vadd.f32 0.0, %v1757
    %1759 = vdwg.mxu0
    %v1760 = vadd.f32 %v1676, %v1698
    %v1761 = vadd.f32 %v1677, %v1718
    %v1762 = vadd.f32 %v1678, %v1738
    %v1763 = vadd.f32 %v1679, %v1758
    %v1764 = vxor.u32 %v1760, 2147483648
    %v1765 = vmul.f32 %v1764, 1.442695
    %v1766 = vpow.pop %v1765
    %v1767 = vadd.f32 %v1766, 1.0
    %v1768 = vrcp.pop %v1767
    %v1769 = vmul.f32 %v1767, %v1768
    %v1770 = vsub.f32 1.0, %v1769
    %v1771 = vmul.f32 %v1768, %v1770
    %v1772 = vadd.f32 %v1768, %v1771
    %vm1773 = vweird.f32 %v1767
    %vm1774 = vweird.f32 %v1768
    %vm1775 = vmor %vm1773, %vm1774
    %v1776 = vsel %vm1775, %v1768, %v1772
    %v1777 = vand.u32 2147483647, %v1767
    %vm1778 = vcmp.eq.f32.partialorder %v1777, 8.507059e+37
    %v1779 = vand.u32 %v1767, 2147483648
    %v1780 = vor.u32 1.1754944e-38, %v1779
    %v1781 = vsel %vm1778, %v1780, %v1776
    %v1782 = vmul.f32 1.0, %v1781
    %v1783 = vxor.u32 %v1761, 2147483648
    %v1784 = vmul.f32 %v1783, 1.442695
    %v1785 = vpow.pop %v1784
    %v1786 = vadd.f32 %v1785, 1.0
    %v1787 = vrcp.pop %v1786
    %v1788 = vmul.f32 %v1786, %v1787
    %v1789 = vsub.f32 1.0, %v1788
    %v1790 = vmul.f32 %v1787, %v1789
    %v1791 = vadd.f32 %v1787, %v1790
    %vm1792 = vweird.f32 %v1786
    %vm1793 = vweird.f32 %v1787
    %vm1794 = vmor %vm1792, %vm1793
    %v1795 = vsel %vm1794, %v1787, %v1791
    %v1796 = vand.u32 2147483647, %v1786
    %vm1797 = vcmp.eq.f32.partialorder %v1796, 8.507059e+37
    %v1798 = vand.u32 %v1786, 2147483648
    %v1799 = vor.u32 1.1754944e-38, %v1798
    %v1800 = vsel %vm1797, %v1799, %v1795
    %v1801 = vmul.f32 1.0, %v1800
    %v1802 = vtanh.pop %v1762
    %v1803 = vxor.u32 %v1763, 2147483648
    %v1804 = vmul.f32 %v1803, 1.442695
    %v1805 = vpow.pop %v1804
    %v1806 = vadd.f32 %v1805, 1.0
    %v1807 = vrcp.pop %v1806
    %v1808 = vmul.f32 %v1806, %v1807
    %v1809 = vsub.f32 1.0, %v1808
    %v1810 = vmul.f32 %v1807, %v1809
    %v1811 = vadd.f32 %v1807, %v1810
    %vm1812 = vweird.f32 %v1806
    %vm1813 = vweird.f32 %v1807
    %vm1814 = vmor %vm1812, %vm1813
    %v1815 = vsel %vm1814, %v1807, %v1811
    %v1816 = vand.u32 2147483647, %v1806
    %vm1817 = vcmp.eq.f32.partialorder %v1816, 8.507059e+37
    %v1818 = vand.u32 %v1806, 2147483648
    %v1819 = vor.u32 1.1754944e-38, %v1818
    %v1820 = vsel %vm1817, %v1819, %v1815
    %v1821 = vmul.f32 1.0, %v1820
    %v1822 = vmul.f32 %v1801, %v1441
    %v1823 = vmul.f32 %v1782, %v1802
    %v1824 = vadd.f32 %v1822, %v1823
    %v1825 = vtanh.pop %v1824
    %v1826 = vmul.f32 %v1821, %v1825
    %1827 = vmatpush.msra.mxu0 %v447
    %1828 = vmatpush.msra.mxu0 %v443
    %1829 = vmatpush.msra.mxu0 %v439
    %1830 = vmatpush.msra.mxu0 %v435
    %1831 = vmatpush.msra.mxu0 %v431
    %1832 = vmatpush.msra.mxu0 %v427
    %1833 = vmatpush.msra.mxu0 %v423
    %1834 = vmatpush.msra.mxu0 %v419
    %1835 = vmatpush.msra.mxu0 %v415
    %1836 = vmatpush.msra.mxu0 %v411
    %1837 = vmatpush.msra.mxu0 %v407
    %1838 = vmatpush.msra.mxu0 %v403
    %1839 = vmatpush.msra.mxu0 %v399
    %1840 = vmatpush.msra.mxu0 %v395
    %1841 = vmatpush.msra.mxu0 %v391
    %1842 = vmatpush.msra.mxu0 %v387
    %1843 = vmatmul.f32.gmra.mxu0 %v1826
    %v1844 = vpop.f32.mrf.mxu0
    %v1845 = vadd.f32 0.0, %v1844
    %1846 = vdwg.mxu0
    %1847 = vmatpush.msra.mxu0 %v448
    %1848 = vmatpush.msra.mxu0 %v444
    %1849 = vmatpush.msra.mxu0 %v440
    %1850 = vmatpush.msra.mxu0 %v436
    %1851 = vmatpush.msra.mxu0 %v432
    %1852 = vmatpush.msra.mxu0 %v428
    %1853 = vmatpush.msra.mxu0 %v424
    %1854 = vmatpush.msra.mxu0 %v420
    %1855 = vmatpush.msra.mxu0 %v416
    %1856 = vmatpush.msra.mxu0 %v412
    %1857 = vmatpush.msra.mxu0 %v408
    %1858 = vmatpush.msra.mxu0 %v404
    %1859 = vmatpush.msra.mxu0 %v400
    %1860 = vmatpush.msra.mxu0 %v396
    %1861 = vmatpush.msra.mxu0 %v392
    %1862 = vmatpush.msra.mxu0 %v388
    %1863 = vmatmul.f32.gmra.mxu0 %v1826
    %v1864 = vpop.f32.mrf.mxu0
    %v1865 = vadd.f32 0.0, %v1864
    %1866 = vdwg.mxu0
    %1867 = vmatpush.msra.mxu0 %v449
    %1868 = vmatpush.msra.mxu0 %v445
    %1869 = vmatpush.msra.mxu0 %v441
    %1870 = vmatpush.msra.mxu0 %v437
    %1871 = vmatpush.msra.mxu0 %v433
    %1872 = vmatpush.msra.mxu0 %v429
    %1873 = vmatpush.msra.mxu0 %v425
    %1874 = vmatpush.msra.mxu0 %v421
    %1875 = vmatpush.msra.mxu0 %v417
    %1876 = vmatpush.msra.mxu0 %v413
    %1877 = vmatpush.msra.mxu0 %v409
    %1878 = vmatpush.msra.mxu0 %v405
    %1879 = vmatpush.msra.mxu0 %v401
    %1880 = vmatpush.msra.mxu0 %v397
    %1881 = vmatpush.msra.mxu0 %v393
    %1882 = vmatpush.msra.mxu0 %v389
    %1883 = vmatmul.f32.gmra.mxu0 %v1826
    %v1884 = vpop.f32.mrf.mxu0
    %v1885 = vadd.f32 0.0, %v1884
    %1886 = vdwg.mxu0
    %1887 = vmatpush.msra.mxu0 %v450
    %1888 = vmatpush.msra.mxu0 %v446
    %1889 = vmatpush.msra.mxu0 %v442
    %1890 = vmatpush.msra.mxu0 %v438
    %1891 = vmatpush.msra.mxu0 %v434
    %1892 = vmatpush.msra.mxu0 %v430
    %1893 = vmatpush.msra.mxu0 %v426
    %1894 = vmatpush.msra.mxu0 %v422
    %1895 = vmatpush.msra.mxu0 %v418
    %1896 = vmatpush.msra.mxu0 %v414
    %1897 = vmatpush.msra.mxu0 %v410
    %1898 = vmatpush.msra.mxu0 %v406
    %1899 = vmatpush.msra.mxu0 %v402
    %1900 = vmatpush.msra.mxu0 %v398
    %1901 = vmatpush.msra.mxu0 %v394
    %1902 = vmatpush.msra.mxu0 %v390
    %1903 = vmatmul.f32.gmra.mxu0 %v1826
    %v1904 = vpop.f32.mrf.mxu0
    %v1905 = vadd.f32 0.0, %v1904
    %1906 = vdwg.mxu0
    %1907 = vmatpush.msra.mxu0 %v511
    %1908 = vmatpush.msra.mxu0 %v507
    %1909 = vmatpush.msra.mxu0 %v503
    %1910 = vmatpush.msra.mxu0 %v499
    %1911 = vmatpush.msra.mxu0 %v495
    %1912 = vmatpush.msra.mxu0 %v491
    %1913 = vmatpush.msra.mxu0 %v487
    %1914 = vmatpush.msra.mxu0 %v483
    %1915 = vmatpush.msra.mxu0 %v479
    %1916 = vmatpush.msra.mxu0 %v475
    %1917 = vmatpush.msra.mxu0 %v471
    %1918 = vmatpush.msra.mxu0 %v467
    %1919 = vmatpush.msra.mxu0 %v463
    %1920 = vmatpush.msra.mxu0 %v459
    %1921 = vmatpush.msra.mxu0 %v455
    %1922 = vmatpush.msra.mxu0 %v451
    %1923 = vmatmul.f32.gmra.mxu0 %v1670
    %v1924 = vpop.f32.mrf.mxu0
    %v1925 = vadd.f32 %v1845, %v1924
    %1926 = vdwg.mxu0
    %1927 = vmatpush.msra.mxu0 %v512
    %1928 = vmatpush.msra.mxu0 %v508
    %1929 = vmatpush.msra.mxu0 %v504
    %1930 = vmatpush.msra.mxu0 %v500
    %1931 = vmatpush.msra.mxu0 %v496
    %1932 = vmatpush.msra.mxu0 %v492
    %1933 = vmatpush.msra.mxu0 %v488
    %1934 = vmatpush.msra.mxu0 %v484
    %1935 = vmatpush.msra.mxu0 %v480
    %1936 = vmatpush.msra.mxu0 %v476
    %1937 = vmatpush.msra.mxu0 %v472
    %1938 = vmatpush.msra.mxu0 %v468
    %1939 = vmatpush.msra.mxu0 %v464
    %1940 = vmatpush.msra.mxu0 %v460
    %1941 = vmatpush.msra.mxu0 %v456
    %1942 = vmatpush.msra.mxu0 %v452
    %1943 = vmatmul.f32.gmra.mxu0 %v1670
    %v1944 = vpop.f32.mrf.mxu0
    %v1945 = vadd.f32 %v1865, %v1944
    %1946 = vdwg.mxu0
    %1947 = vmatpush.msra.mxu0 %v513
    %1948 = vmatpush.msra.mxu0 %v509
    %1949 = vmatpush.msra.mxu0 %v505
    %1950 = vmatpush.msra.mxu0 %v501
    %1951 = vmatpush.msra.mxu0 %v497
    %1952 = vmatpush.msra.mxu0 %v493
    %1953 = vmatpush.msra.mxu0 %v489
    %1954 = vmatpush.msra.mxu0 %v485
    %1955 = vmatpush.msra.mxu0 %v481
    %1956 = vmatpush.msra.mxu0 %v477
    %1957 = vmatpush.msra.mxu0 %v473
    %1958 = vmatpush.msra.mxu0 %v469
    %1959 = vmatpush.msra.mxu0 %v465
    %1960 = vmatpush.msra.mxu0 %v461
    %1961 = vmatpush.msra.mxu0 %v457
    %1962 = vmatpush.msra.mxu0 %v453
    %1963 = vmatmul.f32.gmra.mxu0 %v1670
    %v1964 = vpop.f32.mrf.mxu0
    %v1965 = vadd.f32 %v1885, %v1964
    %1966 = vdwg.mxu0
    %1967 = vmatpush.msra.mxu0 %v514
    %1968 = vmatpush.msra.mxu0 %v510
    %1969 = vmatpush.msra.mxu0 %v506
    %1970 = vmatpush.msra.mxu0 %v502
    %1971 = vmatpush.msra.mxu0 %v498
    %1972 = vmatpush.msra.mxu0 %v494
    %1973 = vmatpush.msra.mxu0 %v490
    %1974 = vmatpush.msra.mxu0 %v486
    %1975 = vmatpush.msra.mxu0 %v482
    %1976 = vmatpush.msra.mxu0 %v478
    %1977 = vmatpush.msra.mxu0 %v474
    %1978 = vmatpush.msra.mxu0 %v470
    %1979 = vmatpush.msra.mxu0 %v466
    %1980 = vmatpush.msra.mxu0 %v462
    %1981 = vmatpush.msra.mxu0 %v458
    %1982 = vmatpush.msra.mxu0 %v454
    %1983 = vmatmul.f32.gmra.mxu0 %v1670
    %v1984 = vpop.f32.mrf.mxu0
    %v1985 = vadd.f32 %v1905, %v1984
    %1986 = vdwg.mxu0
    %v1987 = vadd.f32 %v1925, %v517
    %v1988 = vadd.f32 %v1945, %v518
    %v1989 = vadd.f32 %v1965, %v519
    %v1990 = vadd.f32 %v1985, %v520
    %v1991 = vxor.u32 %v1987, 2147483648
    %v1992 = vmul.f32 %v1991, 1.442695
    %v1993 = vpow.pop %v1992
    %v1994 = vadd.f32 %v1993, 1.0
    %v1995 = vrcp.pop %v1994
    %v1996 = vmul.f32 %v1994, %v1995
    %v1997 = vsub.f32 1.0, %v1996
    %v1998 = vmul.f32 %v1995, %v1997
    %v1999 = vadd.f32 %v1995, %v1998
    %vm2000 = vweird.f32 %v1994
    %vm2001 = vweird.f32 %v1995
    %vm2002 = vmor %vm2000, %vm2001
    %v2003 = vsel %vm2002, %v1995, %v1999
    %v2004 = vand.u32 2147483647, %v1994
    %vm2005 = vcmp.eq.f32.partialorder %v2004, 8.507059e+37
    %v2006 = vand.u32 %v1994, 2147483648
    %v2007 = vor.u32 1.1754944e-38, %v2006
    %v2008 = vsel %vm2005, %v2007, %v2003
    %v2009 = vmul.f32 1.0, %v2008
    %v2010 = vxor.u32 %v1988, 2147483648
    %v2011 = vmul.f32 %v2010, 1.442695
    %v2012 = vpow.pop %v2011
    %v2013 = vadd.f32 %v2012, 1.0
    %v2014 = vrcp.pop %v2013
    %v2015 = vmul.f32 %v2013, %v2014
    %v2016 = vsub.f32 1.0, %v2015
    %v2017 = vmul.f32 %v2014, %v2016
    %v2018 = vadd.f32 %v2014, %v2017
    %vm2019 = vweird.f32 %v2013
    %vm2020 = vweird.f32 %v2014
    %vm2021 = vmor %vm2019, %vm2020
    %v2022 = vsel %vm2021, %v2014, %v2018
    %v2023 = vand.u32 2147483647, %v2013
    %vm2024 = vcmp.eq.f32.partialorder %v2023, 8.507059e+37
    %v2025 = vand.u32 %v2013, 2147483648
    %v2026 = vor.u32 1.1754944e-38, %v2025
    %v2027 = vsel %vm2024, %v2026, %v2022
    %v2028 = vmul.f32 1.0, %v2027
    %v2029 = vtanh.pop %v1989
    %v2030 = vxor.u32 %v1990, 2147483648
    %v2031 = vmul.f32 %v2030, 1.442695
    %v2032 = vpow.pop %v2031
    %v2033 = vadd.f32 %v2032, 1.0
    %v2034 = vrcp.pop %v2033
    %v2035 = vmul.f32 %v2033, %v2034
    %v2036 = vsub.f32 1.0, %v2035
    %v2037 = vmul.f32 %v2034, %v2036
    %v2038 = vadd.f32 %v2034, %v2037
    %vm2039 = vweird.f32 %v2033
    %vm2040 = vweird.f32 %v2034
    %vm2041 = vmor %vm2039, %vm2040
    %v2042 = vsel %vm2041, %v2034, %v2038
    %v2043 = vand.u32 2147483647, %v2033
    %vm2044 = vcmp.eq.f32.partialorder %v2043, 8.507059e+37
    %v2045 = vand.u32 %v2033, 2147483648
    %v2046 = vor.u32 1.1754944e-38, %v2045
    %v2047 = vsel %vm2044, %v2046, %v2042
    %v2048 = vmul.f32 1.0, %v2047
    %v2049 = vmul.f32 %v2028, %v1668
    %v2050 = vmul.f32 %v2009, %v2029
    %v2051 = vadd.f32 %v2049, %v2050
    %v2052 = vtanh.pop %v2051
    %v2053 = vmul.f32 %v2048, %v2052
    %s2054 = scalar_lea.vmem [#allocation3], 24
    %2055 = vst [vmem:[%s2054] sm:$0xff] %v2053
    %s2056 = smul.u32 4, 4
    %s2057 = smul.addr %s2056, 8
    %s2058 = scalar_lea.vmem [#allocation2], %s2057
    %v2059 = vld [vmem:[%s2058] sm:$0xff]
    %v2060 = vld [vmem:[%s2058 + $0x8] sm:$0xff]
    %v2061 = vld [vmem:[%s2058 + $0x10] sm:$0xff]
    %v2062 = vld [vmem:[%s2058 + $0x18] sm:$0xff]
    %2063 = vmatpush.msra.mxu0 %v383
    %2064 = vmatpush.msra.mxu0 %v379
    %2065 = vmatpush.msra.mxu0 %v375
    %2066 = vmatpush.msra.mxu0 %v371
    %2067 = vmatpush.msra.mxu0 %v367
    %2068 = vmatpush.msra.mxu0 %v363
    %2069 = vmatpush.msra.mxu0 %v359
    %2070 = vmatpush.msra.mxu0 %v355
    %2071 = vmatpush.msra.mxu0 %v351
    %2072 = vmatpush.msra.mxu0 %v347
    %2073 = vmatpush.msra.mxu0 %v343
    %2074 = vmatpush.msra.mxu0 %v339
    %2075 = vmatpush.msra.mxu0 %v335
    %2076 = vmatpush.msra.mxu0 %v331
    %2077 = vmatpush.msra.mxu0 %v327
    %2078 = vmatpush.msra.mxu0 %v323
    %2079 = vmatmul.f32.gmra.mxu0 %v1826
    %v2080 = vpop.f32.mrf.mxu0
    %v2081 = vadd.f32 0.0, %v2080
    %2082 = vdwg.mxu0
    %2083 = vmatpush.msra.mxu0 %v384
    %2084 = vmatpush.msra.mxu0 %v380
    %2085 = vmatpush.msra.mxu0 %v376
    %2086 = vmatpush.msra.mxu0 %v372
    %2087 = vmatpush.msra.mxu0 %v368
    %2088 = vmatpush.msra.mxu0 %v364
    %2089 = vmatpush.msra.mxu0 %v360
    %2090 = vmatpush.msra.mxu0 %v356
    %2091 = vmatpush.msra.mxu0 %v352
    %2092 = vmatpush.msra.mxu0 %v348
    %2093 = vmatpush.msra.mxu0 %v344
    %2094 = vmatpush.msra.mxu0 %v340
    %2095 = vmatpush.msra.mxu0 %v336
    %2096 = vmatpush.msra.mxu0 %v332
    %2097 = vmatpush.msra.mxu0 %v328
    %2098 = vmatpush.msra.mxu0 %v324
    %2099 = vmatmul.f32.gmra.mxu0 %v1826
    %v2100 = vpop.f32.mrf.mxu0
    %v2101 = vadd.f32 0.0, %v2100
    %2102 = vdwg.mxu0
    %2103 = vmatpush.msra.mxu0 %v385
    %2104 = vmatpush.msra.mxu0 %v381
    %2105 = vmatpush.msra.mxu0 %v377
    %2106 = vmatpush.msra.mxu0 %v373
    %2107 = vmatpush.msra.mxu0 %v369
    %2108 = vmatpush.msra.mxu0 %v365
    %2109 = vmatpush.msra.mxu0 %v361
    %2110 = vmatpush.msra.mxu0 %v357
    %2111 = vmatpush.msra.mxu0 %v353
    %2112 = vmatpush.msra.mxu0 %v349
    %2113 = vmatpush.msra.mxu0 %v345
    %2114 = vmatpush.msra.mxu0 %v341
    %2115 = vmatpush.msra.mxu0 %v337
    %2116 = vmatpush.msra.mxu0 %v333
    %2117 = vmatpush.msra.mxu0 %v329
    %2118 = vmatpush.msra.mxu0 %v325
    %2119 = vmatmul.f32.gmra.mxu0 %v1826
    %v2120 = vpop.f32.mrf.mxu0
    %v2121 = vadd.f32 0.0, %v2120
    %2122 = vdwg.mxu0
    %2123 = vmatpush.msra.mxu0 %v386
    %2124 = vmatpush.msra.mxu0 %v382
    %2125 = vmatpush.msra.mxu0 %v378
    %2126 = vmatpush.msra.mxu0 %v374
    %2127 = vmatpush.msra.mxu0 %v370
    %2128 = vmatpush.msra.mxu0 %v366
    %2129 = vmatpush.msra.mxu0 %v362
    %2130 = vmatpush.msra.mxu0 %v358
    %2131 = vmatpush.msra.mxu0 %v354
    %2132 = vmatpush.msra.mxu0 %v350
    %2133 = vmatpush.msra.mxu0 %v346
    %2134 = vmatpush.msra.mxu0 %v342
    %2135 = vmatpush.msra.mxu0 %v338
    %2136 = vmatpush.msra.mxu0 %v334
    %2137 = vmatpush.msra.mxu0 %v330
    %2138 = vmatpush.msra.mxu0 %v326
    %2139 = vmatmul.f32.gmra.mxu0 %v1826
    %v2140 = vpop.f32.mrf.mxu0
    %v2141 = vadd.f32 0.0, %v2140
    %2142 = vdwg.mxu0
    %v2143 = vadd.f32 %v2059, %v2081
    %v2144 = vadd.f32 %v2060, %v2101
    %v2145 = vadd.f32 %v2061, %v2121
    %v2146 = vadd.f32 %v2062, %v2141
    %v2147 = vxor.u32 %v2143, 2147483648
    %v2148 = vmul.f32 %v2147, 1.442695
    %v2149 = vpow.pop %v2148
    %v2150 = vadd.f32 %v2149, 1.0
    %v2151 = vrcp.pop %v2150
    %v2152 = vmul.f32 %v2150, %v2151
    %v2153 = vsub.f32 1.0, %v2152
    %v2154 = vmul.f32 %v2151, %v2153
    %v2155 = vadd.f32 %v2151, %v2154
    %vm2156 = vweird.f32 %v2150
    %vm2157 = vweird.f32 %v2151
    %vm2158 = vmor %vm2156, %vm2157
    %v2159 = vsel %vm2158, %v2151, %v2155
    %v2160 = vand.u32 2147483647, %v2150
    %vm2161 = vcmp.eq.f32.partialorder %v2160, 8.507059e+37
    %v2162 = vand.u32 %v2150, 2147483648
    %v2163 = vor.u32 1.1754944e-38, %v2162
    %v2164 = vsel %vm2161, %v2163, %v2159
    %v2165 = vmul.f32 1.0, %v2164
    %v2166 = vxor.u32 %v2144, 2147483648
    %v2167 = vmul.f32 %v2166, 1.442695
    %v2168 = vpow.pop %v2167
    %v2169 = vadd.f32 %v2168, 1.0
    %v2170 = vrcp.pop %v2169
    %v2171 = vmul.f32 %v2169, %v2170
    %v2172 = vsub.f32 1.0, %v2171
    %v2173 = vmul.f32 %v2170, %v2172
    %v2174 = vadd.f32 %v2170, %v2173
    %vm2175 = vweird.f32 %v2169
    %vm2176 = vweird.f32 %v2170
    %vm2177 = vmor %vm2175, %vm2176
    %v2178 = vsel %vm2177, %v2170, %v2174
    %v2179 = vand.u32 2147483647, %v2169
    %vm2180 = vcmp.eq.f32.partialorder %v2179, 8.507059e+37
    %v2181 = vand.u32 %v2169, 2147483648
    %v2182 = vor.u32 1.1754944e-38, %v2181
    %v2183 = vsel %vm2180, %v2182, %v2178
    %v2184 = vmul.f32 1.0, %v2183
    %v2185 = vtanh.pop %v2145
    %v2186 = vxor.u32 %v2146, 2147483648
    %v2187 = vmul.f32 %v2186, 1.442695
    %v2188 = vpow.pop %v2187
    %v2189 = vadd.f32 %v2188, 1.0
    %v2190 = vrcp.pop %v2189
    %v2191 = vmul.f32 %v2189, %v2190
    %v2192 = vsub.f32 1.0, %v2191
    %v2193 = vmul.f32 %v2190, %v2192
    %v2194 = vadd.f32 %v2190, %v2193
    %vm2195 = vweird.f32 %v2189
    %vm2196 = vweird.f32 %v2190
    %vm2197 = vmor %vm2195, %vm2196
    %v2198 = vsel %vm2197, %v2190, %v2194
    %v2199 = vand.u32 2147483647, %v2189
    %vm2200 = vcmp.eq.f32.partialorder %v2199, 8.507059e+37
    %v2201 = vand.u32 %v2189, 2147483648
    %v2202 = vor.u32 1.1754944e-38, %v2201
    %v2203 = vsel %vm2200, %v2202, %v2198
    %v2204 = vmul.f32 1.0, %v2203
    %v2205 = vmul.f32 %v2184, %v1824
    %v2206 = vmul.f32 %v2165, %v2185
    %v2207 = vadd.f32 %v2205, %v2206
    %v2208 = vtanh.pop %v2207
    %v2209 = vmul.f32 %v2204, %v2208
    %2210 = vmatpush.msra.mxu0 %v447
    %2211 = vmatpush.msra.mxu0 %v443
    %2212 = vmatpush.msra.mxu0 %v439
    %2213 = vmatpush.msra.mxu0 %v435
    %2214 = vmatpush.msra.mxu0 %v431
    %2215 = vmatpush.msra.mxu0 %v427
    %2216 = vmatpush.msra.mxu0 %v423
    %2217 = vmatpush.msra.mxu0 %v419
    %2218 = vmatpush.msra.mxu0 %v415
    %2219 = vmatpush.msra.mxu0 %v411
    %2220 = vmatpush.msra.mxu0 %v407
    %2221 = vmatpush.msra.mxu0 %v403
    %2222 = vmatpush.msra.mxu0 %v399
    %2223 = vmatpush.msra.mxu0 %v395
    %2224 = vmatpush.msra.mxu0 %v391
    %2225 = vmatpush.msra.mxu0 %v387
    %2226 = vmatmul.f32.gmra.mxu0 %v2209
    %v2227 = vpop.f32.mrf.mxu0
    %v2228 = vadd.f32 0.0, %v2227
    %2229 = vdwg.mxu0
    %2230 = vmatpush.msra.mxu0 %v448
    %2231 = vmatpush.msra.mxu0 %v444
    %2232 = vmatpush.msra.mxu0 %v440
    %2233 = vmatpush.msra.mxu0 %v436
    %2234 = vmatpush.msra.mxu0 %v432
    %2235 = vmatpush.msra.mxu0 %v428
    %2236 = vmatpush.msra.mxu0 %v424
    %2237 = vmatpush.msra.mxu0 %v420
    %2238 = vmatpush.msra.mxu0 %v416
    %2239 = vmatpush.msra.mxu0 %v412
    %2240 = vmatpush.msra.mxu0 %v408
    %2241 = vmatpush.msra.mxu0 %v404
    %2242 = vmatpush.msra.mxu0 %v400
    %2243 = vmatpush.msra.mxu0 %v396
    %2244 = vmatpush.msra.mxu0 %v392
    %2245 = vmatpush.msra.mxu0 %v388
    %2246 = vmatmul.f32.gmra.mxu0 %v2209
    %v2247 = vpop.f32.mrf.mxu0
    %v2248 = vadd.f32 0.0, %v2247
    %2249 = vdwg.mxu0
    %2250 = vmatpush.msra.mxu0 %v449
    %2251 = vmatpush.msra.mxu0 %v445
    %2252 = vmatpush.msra.mxu0 %v441
    %2253 = vmatpush.msra.mxu0 %v437
    %2254 = vmatpush.msra.mxu0 %v433
    %2255 = vmatpush.msra.mxu0 %v429
    %2256 = vmatpush.msra.mxu0 %v425
    %2257 = vmatpush.msra.mxu0 %v421
    %2258 = vmatpush.msra.mxu0 %v417
    %2259 = vmatpush.msra.mxu0 %v413
    %2260 = vmatpush.msra.mxu0 %v409
    %2261 = vmatpush.msra.mxu0 %v405
    %2262 = vmatpush.msra.mxu0 %v401
    %2263 = vmatpush.msra.mxu0 %v397
    %2264 = vmatpush.msra.mxu0 %v393
    %2265 = vmatpush.msra.mxu0 %v389
    %2266 = vmatmul.f32.gmra.mxu0 %v2209
    %v2267 = vpop.f32.mrf.mxu0
    %v2268 = vadd.f32 0.0, %v2267
    %2269 = vdwg.mxu0
    %2270 = vmatpush.msra.mxu0 %v450
    %2271 = vmatpush.msra.mxu0 %v446
    %2272 = vmatpush.msra.mxu0 %v442
    %2273 = vmatpush.msra.mxu0 %v438
    %2274 = vmatpush.msra.mxu0 %v434
    %2275 = vmatpush.msra.mxu0 %v430
    %2276 = vmatpush.msra.mxu0 %v426
    %2277 = vmatpush.msra.mxu0 %v422
    %2278 = vmatpush.msra.mxu0 %v418
    %2279 = vmatpush.msra.mxu0 %v414
    %2280 = vmatpush.msra.mxu0 %v410
    %2281 = vmatpush.msra.mxu0 %v406
    %2282 = vmatpush.msra.mxu0 %v402
    %2283 = vmatpush.msra.mxu0 %v398
    %2284 = vmatpush.msra.mxu0 %v394
    %2285 = vmatpush.msra.mxu0 %v390
    %2286 = vmatmul.f32.gmra.mxu0 %v2209
    %v2287 = vpop.f32.mrf.mxu0
    %v2288 = vadd.f32 0.0, %v2287
    %2289 = vdwg.mxu0
    %2290 = vmatpush.msra.mxu0 %v511
    %2291 = vmatpush.msra.mxu0 %v507
    %2292 = vmatpush.msra.mxu0 %v503
    %2293 = vmatpush.msra.mxu0 %v499
    %2294 = vmatpush.msra.mxu0 %v495
    %2295 = vmatpush.msra.mxu0 %v491
    %2296 = vmatpush.msra.mxu0 %v487
    %2297 = vmatpush.msra.mxu0 %v483
    %2298 = vmatpush.msra.mxu0 %v479
    %2299 = vmatpush.msra.mxu0 %v475
    %2300 = vmatpush.msra.mxu0 %v471
    %2301 = vmatpush.msra.mxu0 %v467
    %2302 = vmatpush.msra.mxu0 %v463
    %2303 = vmatpush.msra.mxu0 %v459
    %2304 = vmatpush.msra.mxu0 %v455
    %2305 = vmatpush.msra.mxu0 %v451
    %2306 = vmatmul.f32.gmra.mxu0 %v2053
    %v2307 = vpop.f32.mrf.mxu0
    %v2308 = vadd.f32 %v2228, %v2307
    %2309 = vdwg.mxu0
    %2310 = vmatpush.msra.mxu0 %v512
    %2311 = vmatpush.msra.mxu0 %v508
    %2312 = vmatpush.msra.mxu0 %v504
    %2313 = vmatpush.msra.mxu0 %v500
    %2314 = vmatpush.msra.mxu0 %v496
    %2315 = vmatpush.msra.mxu0 %v492
    %2316 = vmatpush.msra.mxu0 %v488
    %2317 = vmatpush.msra.mxu0 %v484
    %2318 = vmatpush.msra.mxu0 %v480
    %2319 = vmatpush.msra.mxu0 %v476
    %2320 = vmatpush.msra.mxu0 %v472
    %2321 = vmatpush.msra.mxu0 %v468
    %2322 = vmatpush.msra.mxu0 %v464
    %2323 = vmatpush.msra.mxu0 %v460
    %2324 = vmatpush.msra.mxu0 %v456
    %2325 = vmatpush.msra.mxu0 %v452
    %2326 = vmatmul.f32.gmra.mxu0 %v2053
    %v2327 = vpop.f32.mrf.mxu0
    %v2328 = vadd.f32 %v2248, %v2327
    %2329 = vdwg.mxu0
    %2330 = vmatpush.msra.mxu0 %v513
    %2331 = vmatpush.msra.mxu0 %v509
    %2332 = vmatpush.msra.mxu0 %v505
    %2333 = vmatpush.msra.mxu0 %v501
    %2334 = vmatpush.msra.mxu0 %v497
    %2335 = vmatpush.msra.mxu0 %v493
    %2336 = vmatpush.msra.mxu0 %v489
    %2337 = vmatpush.msra.mxu0 %v485
    %2338 = vmatpush.msra.mxu0 %v481
    %2339 = vmatpush.msra.mxu0 %v477
    %2340 = vmatpush.msra.mxu0 %v473
    %2341 = vmatpush.msra.mxu0 %v469
    %2342 = vmatpush.msra.mxu0 %v465
    %2343 = vmatpush.msra.mxu0 %v461
    %2344 = vmatpush.msra.mxu0 %v457
    %2345 = vmatpush.msra.mxu0 %v453
    %2346 = vmatmul.f32.gmra.mxu0 %v2053
    %v2347 = vpop.f32.mrf.mxu0
    %v2348 = vadd.f32 %v2268, %v2347
    %2349 = vdwg.mxu0
    %2350 = vmatpush.msra.mxu0 %v514
    %2351 = vmatpush.msra.mxu0 %v510
    %2352 = vmatpush.msra.mxu0 %v506
    %2353 = vmatpush.msra.mxu0 %v502
    %2354 = vmatpush.msra.mxu0 %v498
    %2355 = vmatpush.msra.mxu0 %v494
    %2356 = vmatpush.msra.mxu0 %v490
    %2357 = vmatpush.msra.mxu0 %v486
    %2358 = vmatpush.msra.mxu0 %v482
    %2359 = vmatpush.msra.mxu0 %v478
    %2360 = vmatpush.msra.mxu0 %v474
    %2361 = vmatpush.msra.mxu0 %v470
    %2362 = vmatpush.msra.mxu0 %v466
    %2363 = vmatpush.msra.mxu0 %v462
    %2364 = vmatpush.msra.mxu0 %v458
    %2365 = vmatpush.msra.mxu0 %v454
    %2366 = vmatmul.f32.gmra.mxu0 %v2053
    %v2367 = vpop.f32.mrf.mxu0
    %v2368 = vadd.f32 %v2288, %v2367
    %2369 = vdwg.mxu0
    %v2370 = vadd.f32 %v2308, %v517
    %v2371 = vadd.f32 %v2328, %v518
    %v2372 = vadd.f32 %v2348, %v519
    %v2373 = vadd.f32 %v2368, %v520
    %v2374 = vxor.u32 %v2370, 2147483648
    %v2375 = vmul.f32 %v2374, 1.442695
    %v2376 = vpow.pop %v2375
    %v2377 = vadd.f32 %v2376, 1.0
    %v2378 = vrcp.pop %v2377
    %v2379 = vmul.f32 %v2377, %v2378
    %v2380 = vsub.f32 1.0, %v2379
    %v2381 = vmul.f32 %v2378, %v2380
    %v2382 = vadd.f32 %v2378, %v2381
    %vm2383 = vweird.f32 %v2377
    %vm2384 = vweird.f32 %v2378
    %vm2385 = vmor %vm2383, %vm2384
    %v2386 = vsel %vm2385, %v2378, %v2382
    %v2387 = vand.u32 2147483647, %v2377
    %vm2388 = vcmp.eq.f32.partialorder %v2387, 8.507059e+37
    %v2389 = vand.u32 %v2377, 2147483648
    %v2390 = vor.u32 1.1754944e-38, %v2389
    %v2391 = vsel %vm2388, %v2390, %v2386
    %v2392 = vmul.f32 1.0, %v2391
    %v2393 = vxor.u32 %v2371, 2147483648
    %v2394 = vmul.f32 %v2393, 1.442695
    %v2395 = vpow.pop %v2394
    %v2396 = vadd.f32 %v2395, 1.0
    %v2397 = vrcp.pop %v2396
    %v2398 = vmul.f32 %v2396, %v2397
    %v2399 = vsub.f32 1.0, %v2398
    %v2400 = vmul.f32 %v2397, %v2399
    %v2401 = vadd.f32 %v2397, %v2400
    %vm2402 = vweird.f32 %v2396
    %vm2403 = vweird.f32 %v2397
    %vm2404 = vmor %vm2402, %vm2403
    %v2405 = vsel %vm2404, %v2397, %v2401
    %v2406 = vand.u32 2147483647, %v2396
    %vm2407 = vcmp.eq.f32.partialorder %v2406, 8.507059e+37
    %v2408 = vand.u32 %v2396, 2147483648
    %v2409 = vor.u32 1.1754944e-38, %v2408
    %v2410 = vsel %vm2407, %v2409, %v2405
    %v2411 = vmul.f32 1.0, %v2410
    %v2412 = vtanh.pop %v2372
    %v2413 = vxor.u32 %v2373, 2147483648
    %v2414 = vmul.f32 %v2413, 1.442695
    %v2415 = vpow.pop %v2414
    %v2416 = vadd.f32 %v2415, 1.0
    %v2417 = vrcp.pop %v2416
    %v2418 = vmul.f32 %v2416, %v2417
    %v2419 = vsub.f32 1.0, %v2418
    %v2420 = vmul.f32 %v2417, %v2419
    %v2421 = vadd.f32 %v2417, %v2420
    %vm2422 = vweird.f32 %v2416
    %vm2423 = vweird.f32 %v2417
    %vm2424 = vmor %vm2422, %vm2423
    %v2425 = vsel %vm2424, %v2417, %v2421
    %v2426 = vand.u32 2147483647, %v2416
    %vm2427 = vcmp.eq.f32.partialorder %v2426, 8.507059e+37
    %v2428 = vand.u32 %v2416, 2147483648
    %v2429 = vor.u32 1.1754944e-38, %v2428
    %v2430 = vsel %vm2427, %v2429, %v2425
    %v2431 = vmul.f32 1.0, %v2430
    %v2432 = vmul.f32 %v2411, %v2051
    %v2433 = vmul.f32 %v2392, %v2412
    %v2434 = vadd.f32 %v2432, %v2433
    %v2435 = vtanh.pop %v2434
    %v2436 = vmul.f32 %v2431, %v2435
    %s2437 = scalar_lea.vmem [#allocation3], 32
    %2438 = vst [vmem:[%s2437] sm:$0xff] %v2436
    %s2439 = smul.u32 5, 4
    %s2440 = smul.addr %s2439, 8
    %s2441 = scalar_lea.vmem [#allocation2], %s2440
    %v2442 = vld [vmem:[%s2441] sm:$0xff]
    %v2443 = vld [vmem:[%s2441 + $0x8] sm:$0xff]
    %v2444 = vld [vmem:[%s2441 + $0x10] sm:$0xff]
    %v2445 = vld [vmem:[%s2441 + $0x18] sm:$0xff]
    %2446 = vmatpush.msra.mxu0 %v383
    %2447 = vmatpush.msra.mxu0 %v379
    %2448 = vmatpush.msra.mxu0 %v375
    %2449 = vmatpush.msra.mxu0 %v371
    %2450 = vmatpush.msra.mxu0 %v367
    %2451 = vmatpush.msra.mxu0 %v363
    %2452 = vmatpush.msra.mxu0 %v359
    %2453 = vmatpush.msra.mxu0 %v355
    %2454 = vmatpush.msra.mxu0 %v351
    %2455 = vmatpush.msra.mxu0 %v347
    %2456 = vmatpush.msra.mxu0 %v343
    %2457 = vmatpush.msra.mxu0 %v339
    %2458 = vmatpush.msra.mxu0 %v335
    %2459 = vmatpush.msra.mxu0 %v331
    %2460 = vmatpush.msra.mxu0 %v327
    %2461 = vmatpush.msra.mxu0 %v323
    %2462 = vmatmul.f32.gmra.mxu0 %v2209
    %v2463 = vpop.f32.mrf.mxu0
    %v2464 = vadd.f32 0.0, %v2463
    %2465 = vdwg.mxu0
    %2466 = vmatpush.msra.mxu0 %v384
    %2467 = vmatpush.msra.mxu0 %v380
    %2468 = vmatpush.msra.mxu0 %v376
    %2469 = vmatpush.msra.mxu0 %v372
    %2470 = vmatpush.msra.mxu0 %v368
    %2471 = vmatpush.msra.mxu0 %v364
    %2472 = vmatpush.msra.mxu0 %v360
    %2473 = vmatpush.msra.mxu0 %v356
    %2474 = vmatpush.msra.mxu0 %v352
    %2475 = vmatpush.msra.mxu0 %v348
    %2476 = vmatpush.msra.mxu0 %v344
    %2477 = vmatpush.msra.mxu0 %v340
    %2478 = vmatpush.msra.mxu0 %v336
    %2479 = vmatpush.msra.mxu0 %v332
    %2480 = vmatpush.msra.mxu0 %v328
    %2481 = vmatpush.msra.mxu0 %v324
    %2482 = vmatmul.f32.gmra.mxu0 %v2209
    %v2483 = vpop.f32.mrf.mxu0
    %v2484 = vadd.f32 0.0, %v2483
    %2485 = vdwg.mxu0
    %2486 = vmatpush.msra.mxu0 %v385
    %2487 = vmatpush.msra.mxu0 %v381
    %2488 = vmatpush.msra.mxu0 %v377
    %2489 = vmatpush.msra.mxu0 %v373
    %2490 = vmatpush.msra.mxu0 %v369
    %2491 = vmatpush.msra.mxu0 %v365
    %2492 = vmatpush.msra.mxu0 %v361
    %2493 = vmatpush.msra.mxu0 %v357
    %2494 = vmatpush.msra.mxu0 %v353
    %2495 = vmatpush.msra.mxu0 %v349
    %2496 = vmatpush.msra.mxu0 %v345
    %2497 = vmatpush.msra.mxu0 %v341
    %2498 = vmatpush.msra.mxu0 %v337
    %2499 = vmatpush.msra.mxu0 %v333
    %2500 = vmatpush.msra.mxu0 %v329
    %2501 = vmatpush.msra.mxu0 %v325
    %2502 = vmatmul.f32.gmra.mxu0 %v2209
    %v2503 = vpop.f32.mrf.mxu0
    %v2504 = vadd.f32 0.0, %v2503
    %2505 = vdwg.mxu0
    %2506 = vmatpush.msra.mxu0 %v386
    %2507 = vmatpush.msra.mxu0 %v382
    %2508 = vmatpush.msra.mxu0 %v378
    %2509 = vmatpush.msra.mxu0 %v374
    %2510 = vmatpush.msra.mxu0 %v370
    %2511 = vmatpush.msra.mxu0 %v366
    %2512 = vmatpush.msra.mxu0 %v362
    %2513 = vmatpush.msra.mxu0 %v358
    %2514 = vmatpush.msra.mxu0 %v354
    %2515 = vmatpush.msra.mxu0 %v350
    %2516 = vmatpush.msra.mxu0 %v346
    %2517 = vmatpush.msra.mxu0 %v342
    %2518 = vmatpush.msra.mxu0 %v338
    %2519 = vmatpush.msra.mxu0 %v334
    %2520 = vmatpush.msra.mxu0 %v330
    %2521 = vmatpush.msra.mxu0 %v326
    %2522 = vmatmul.f32.gmra.mxu0 %v2209
    %v2523 = vpop.f32.mrf.mxu0
    %v2524 = vadd.f32 0.0, %v2523
    %2525 = vdwg.mxu0
    %v2526 = vadd.f32 %v2442, %v2464
    %v2527 = vadd.f32 %v2443, %v2484
    %v2528 = vadd.f32 %v2444, %v2504
    %v2529 = vadd.f32 %v2445, %v2524
    %v2530 = vxor.u32 %v2526, 2147483648
    %v2531 = vmul.f32 %v2530, 1.442695
    %v2532 = vpow.pop %v2531
    %v2533 = vadd.f32 %v2532, 1.0
    %v2534 = vrcp.pop %v2533
    %v2535 = vmul.f32 %v2533, %v2534
    %v2536 = vsub.f32 1.0, %v2535
    %v2537 = vmul.f32 %v2534, %v2536
    %v2538 = vadd.f32 %v2534, %v2537
    %vm2539 = vweird.f32 %v2533
    %vm2540 = vweird.f32 %v2534
    %vm2541 = vmor %vm2539, %vm2540
    %v2542 = vsel %vm2541, %v2534, %v2538
    %v2543 = vand.u32 2147483647, %v2533
    %vm2544 = vcmp.eq.f32.partialorder %v2543, 8.507059e+37
    %v2545 = vand.u32 %v2533, 2147483648
    %v2546 = vor.u32 1.1754944e-38, %v2545
    %v2547 = vsel %vm2544, %v2546, %v2542
    %v2548 = vmul.f32 1.0, %v2547
    %v2549 = vxor.u32 %v2527, 2147483648
    %v2550 = vmul.f32 %v2549, 1.442695
    %v2551 = vpow.pop %v2550
    %v2552 = vadd.f32 %v2551, 1.0
    %v2553 = vrcp.pop %v2552
    %v2554 = vmul.f32 %v2552, %v2553
    %v2555 = vsub.f32 1.0, %v2554
    %v2556 = vmul.f32 %v2553, %v2555
    %v2557 = vadd.f32 %v2553, %v2556
    %vm2558 = vweird.f32 %v2552
    %vm2559 = vweird.f32 %v2553
    %vm2560 = vmor %vm2558, %vm2559
    %v2561 = vsel %vm2560, %v2553, %v2557
    %v2562 = vand.u32 2147483647, %v2552
    %vm2563 = vcmp.eq.f32.partialorder %v2562, 8.507059e+37
    %v2564 = vand.u32 %v2552, 2147483648
    %v2565 = vor.u32 1.1754944e-38, %v2564
    %v2566 = vsel %vm2563, %v2565, %v2561
    %v2567 = vmul.f32 1.0, %v2566
    %v2568 = vtanh.pop %v2528
    %v2569 = vxor.u32 %v2529, 2147483648
    %v2570 = vmul.f32 %v2569, 1.442695
    %v2571 = vpow.pop %v2570
    %v2572 = vadd.f32 %v2571, 1.0
    %v2573 = vrcp.pop %v2572
    %v2574 = vmul.f32 %v2572, %v2573
    %v2575 = vsub.f32 1.0, %v2574
    %v2576 = vmul.f32 %v2573, %v2575
    %v2577 = vadd.f32 %v2573, %v2576
    %vm2578 = vweird.f32 %v2572
    %vm2579 = vweird.f32 %v2573
    %vm2580 = vmor %vm2578, %vm2579
    %v2581 = vsel %vm2580, %v2573, %v2577
    %v2582 = vand.u32 2147483647, %v2572
    %vm2583 = vcmp.eq.f32.partialorder %v2582, 8.507059e+37
    %v2584 = vand.u32 %v2572, 2147483648
    %v2585 = vor.u32 1.1754944e-38, %v2584
    %v2586 = vsel %vm2583, %v2585, %v2581
    %v2587 = vmul.f32 1.0, %v2586
    %v2588 = vmul.f32 %v2567, %v2207
    %v2589 = vmul.f32 %v2548, %v2568
    %v2590 = vadd.f32 %v2588, %v2589
    %v2591 = vtanh.pop %v2590
    %v2592 = vmul.f32 %v2587, %v2591
    %2593 = vmatpush.msra.mxu0 %v447
    %2594 = vmatpush.msra.mxu0 %v443
    %2595 = vmatpush.msra.mxu0 %v439
    %2596 = vmatpush.msra.mxu0 %v435
    %2597 = vmatpush.msra.mxu0 %v431
    %2598 = vmatpush.msra.mxu0 %v427
    %2599 = vmatpush.msra.mxu0 %v423
    %2600 = vmatpush.msra.mxu0 %v419
    %2601 = vmatpush.msra.mxu0 %v415
    %2602 = vmatpush.msra.mxu0 %v411
    %2603 = vmatpush.msra.mxu0 %v407
    %2604 = vmatpush.msra.mxu0 %v403
    %2605 = vmatpush.msra.mxu0 %v399
    %2606 = vmatpush.msra.mxu0 %v395
    %2607 = vmatpush.msra.mxu0 %v391
    %2608 = vmatpush.msra.mxu0 %v387
    %2609 = vmatmul.f32.gmra.mxu0 %v2592
    %v2610 = vpop.f32.mrf.mxu0
    %v2611 = vadd.f32 0.0, %v2610
    %2612 = vdwg.mxu0
    %2613 = vmatpush.msra.mxu0 %v448
    %2614 = vmatpush.msra.mxu0 %v444
    %2615 = vmatpush.msra.mxu0 %v440
    %2616 = vmatpush.msra.mxu0 %v436
    %2617 = vmatpush.msra.mxu0 %v432
    %2618 = vmatpush.msra.mxu0 %v428
    %2619 = vmatpush.msra.mxu0 %v424
    %2620 = vmatpush.msra.mxu0 %v420
    %2621 = vmatpush.msra.mxu0 %v416
    %2622 = vmatpush.msra.mxu0 %v412
    %2623 = vmatpush.msra.mxu0 %v408
    %2624 = vmatpush.msra.mxu0 %v404
    %2625 = vmatpush.msra.mxu0 %v400
    %2626 = vmatpush.msra.mxu0 %v396
    %2627 = vmatpush.msra.mxu0 %v392
    %2628 = vmatpush.msra.mxu0 %v388
    %2629 = vmatmul.f32.gmra.mxu0 %v2592
    %v2630 = vpop.f32.mrf.mxu0
    %v2631 = vadd.f32 0.0, %v2630
    %2632 = vdwg.mxu0
    %2633 = vmatpush.msra.mxu0 %v449
    %2634 = vmatpush.msra.mxu0 %v445
    %2635 = vmatpush.msra.mxu0 %v441
    %2636 = vmatpush.msra.mxu0 %v437
    %2637 = vmatpush.msra.mxu0 %v433
    %2638 = vmatpush.msra.mxu0 %v429
    %2639 = vmatpush.msra.mxu0 %v425
    %2640 = vmatpush.msra.mxu0 %v421
    %2641 = vmatpush.msra.mxu0 %v417
    %2642 = vmatpush.msra.mxu0 %v413
    %2643 = vmatpush.msra.mxu0 %v409
    %2644 = vmatpush.msra.mxu0 %v405
    %2645 = vmatpush.msra.mxu0 %v401
    %2646 = vmatpush.msra.mxu0 %v397
    %2647 = vmatpush.msra.mxu0 %v393
    %2648 = vmatpush.msra.mxu0 %v389
    %2649 = vmatmul.f32.gmra.mxu0 %v2592
    %v2650 = vpop.f32.mrf.mxu0
    %v2651 = vadd.f32 0.0, %v2650
    %2652 = vdwg.mxu0
    %2653 = vmatpush.msra.mxu0 %v450
    %2654 = vmatpush.msra.mxu0 %v446
    %2655 = vmatpush.msra.mxu0 %v442
    %2656 = vmatpush.msra.mxu0 %v438
    %2657 = vmatpush.msra.mxu0 %v434
    %2658 = vmatpush.msra.mxu0 %v430
    %2659 = vmatpush.msra.mxu0 %v426
    %2660 = vmatpush.msra.mxu0 %v422
    %2661 = vmatpush.msra.mxu0 %v418
    %2662 = vmatpush.msra.mxu0 %v414
    %2663 = vmatpush.msra.mxu0 %v410
    %2664 = vmatpush.msra.mxu0 %v406
    %2665 = vmatpush.msra.mxu0 %v402
    %2666 = vmatpush.msra.mxu0 %v398
    %2667 = vmatpush.msra.mxu0 %v394
    %2668 = vmatpush.msra.mxu0 %v390
    %2669 = vmatmul.f32.gmra.mxu0 %v2592
    %v2670 = vpop.f32.mrf.mxu0
    %v2671 = vadd.f32 0.0, %v2670
    %2672 = vdwg.mxu0
    %2673 = vmatpush.msra.mxu0 %v511
    %2674 = vmatpush.msra.mxu0 %v507
    %2675 = vmatpush.msra.mxu0 %v503
    %2676 = vmatpush.msra.mxu0 %v499
    %2677 = vmatpush.msra.mxu0 %v495
    %2678 = vmatpush.msra.mxu0 %v491
    %2679 = vmatpush.msra.mxu0 %v487
    %2680 = vmatpush.msra.mxu0 %v483
    %2681 = vmatpush.msra.mxu0 %v479
    %2682 = vmatpush.msra.mxu0 %v475
    %2683 = vmatpush.msra.mxu0 %v471
    %2684 = vmatpush.msra.mxu0 %v467
    %2685 = vmatpush.msra.mxu0 %v463
    %2686 = vmatpush.msra.mxu0 %v459
    %2687 = vmatpush.msra.mxu0 %v455
    %2688 = vmatpush.msra.mxu0 %v451
    %2689 = vmatmul.f32.gmra.mxu0 %v2436
    %v2690 = vpop.f32.mrf.mxu0
    %v2691 = vadd.f32 %v2611, %v2690
    %2692 = vdwg.mxu0
    %2693 = vmatpush.msra.mxu0 %v512
    %2694 = vmatpush.msra.mxu0 %v508
    %2695 = vmatpush.msra.mxu0 %v504
    %2696 = vmatpush.msra.mxu0 %v500
    %2697 = vmatpush.msra.mxu0 %v496
    %2698 = vmatpush.msra.mxu0 %v492
    %2699 = vmatpush.msra.mxu0 %v488
    %2700 = vmatpush.msra.mxu0 %v484
    %2701 = vmatpush.msra.mxu0 %v480
    %2702 = vmatpush.msra.mxu0 %v476
    %2703 = vmatpush.msra.mxu0 %v472
    %2704 = vmatpush.msra.mxu0 %v468
    %2705 = vmatpush.msra.mxu0 %v464
    %2706 = vmatpush.msra.mxu0 %v460
    %2707 = vmatpush.msra.mxu0 %v456
    %2708 = vmatpush.msra.mxu0 %v452
    %2709 = vmatmul.f32.gmra.mxu0 %v2436
    %v2710 = vpop.f32.mrf.mxu0
    %v2711 = vadd.f32 %v2631, %v2710
    %2712 = vdwg.mxu0
    %2713 = vmatpush.msra.mxu0 %v513
    %2714 = vmatpush.msra.mxu0 %v509
    %2715 = vmatpush.msra.mxu0 %v505
    %2716 = vmatpush.msra.mxu0 %v501
    %2717 = vmatpush.msra.mxu0 %v497
    %2718 = vmatpush.msra.mxu0 %v493
    %2719 = vmatpush.msra.mxu0 %v489
    %2720 = vmatpush.msra.mxu0 %v485
    %2721 = vmatpush.msra.mxu0 %v481
    %2722 = vmatpush.msra.mxu0 %v477
    %2723 = vmatpush.msra.mxu0 %v473
    %2724 = vmatpush.msra.mxu0 %v469
    %2725 = vmatpush.msra.mxu0 %v465
    %2726 = vmatpush.msra.mxu0 %v461
    %2727 = vmatpush.msra.mxu0 %v457
    %2728 = vmatpush.msra.mxu0 %v453
    %2729 = vmatmul.f32.gmra.mxu0 %v2436
    %v2730 = vpop.f32.mrf.mxu0
    %v2731 = vadd.f32 %v2651, %v2730
    %2732 = vdwg.mxu0
    %2733 = vmatpush.msra.mxu0 %v514
    %2734 = vmatpush.msra.mxu0 %v510
    %2735 = vmatpush.msra.mxu0 %v506
    %2736 = vmatpush.msra.mxu0 %v502
    %2737 = vmatpush.msra.mxu0 %v498
    %2738 = vmatpush.msra.mxu0 %v494
    %2739 = vmatpush.msra.mxu0 %v490
    %2740 = vmatpush.msra.mxu0 %v486
    %2741 = vmatpush.msra.mxu0 %v482
    %2742 = vmatpush.msra.mxu0 %v478
    %2743 = vmatpush.msra.mxu0 %v474
    %2744 = vmatpush.msra.mxu0 %v470
    %2745 = vmatpush.msra.mxu0 %v466
    %2746 = vmatpush.msra.mxu0 %v462
    %2747 = vmatpush.msra.mxu0 %v458
    %2748 = vmatpush.msra.mxu0 %v454
    %2749 = vmatmul.f32.gmra.mxu0 %v2436
    %v2750 = vpop.f32.mrf.mxu0
    %v2751 = vadd.f32 %v2671, %v2750
    %2752 = vdwg.mxu0
    %v2753 = vadd.f32 %v2691, %v517
    %v2754 = vadd.f32 %v2711, %v518
    %v2755 = vadd.f32 %v2731, %v519
    %v2756 = vadd.f32 %v2751, %v520
    %v2757 = vxor.u32 %v2753, 2147483648
    %v2758 = vmul.f32 %v2757, 1.442695
    %v2759 = vpow.pop %v2758
    %v2760 = vadd.f32 %v2759, 1.0
    %v2761 = vrcp.pop %v2760
    %v2762 = vmul.f32 %v2760, %v2761
    %v2763 = vsub.f32 1.0, %v2762
    %v2764 = vmul.f32 %v2761, %v2763
    %v2765 = vadd.f32 %v2761, %v2764
    %vm2766 = vweird.f32 %v2760
    %vm2767 = vweird.f32 %v2761
    %vm2768 = vmor %vm2766, %vm2767
    %v2769 = vsel %vm2768, %v2761, %v2765
    %v2770 = vand.u32 2147483647, %v2760
    %vm2771 = vcmp.eq.f32.partialorder %v2770, 8.507059e+37
    %v2772 = vand.u32 %v2760, 2147483648
    %v2773 = vor.u32 1.1754944e-38, %v2772
    %v2774 = vsel %vm2771, %v2773, %v2769
    %v2775 = vmul.f32 1.0, %v2774
    %v2776 = vxor.u32 %v2754, 2147483648
    %v2777 = vmul.f32 %v2776, 1.442695
    %v2778 = vpow.pop %v2777
    %v2779 = vadd.f32 %v2778, 1.0
    %v2780 = vrcp.pop %v2779
    %v2781 = vmul.f32 %v2779, %v2780
    %v2782 = vsub.f32 1.0, %v2781
    %v2783 = vmul.f32 %v2780, %v2782
    %v2784 = vadd.f32 %v2780, %v2783
    %vm2785 = vweird.f32 %v2779
    %vm2786 = vweird.f32 %v2780
    %vm2787 = vmor %vm2785, %vm2786
    %v2788 = vsel %vm2787, %v2780, %v2784
    %v2789 = vand.u32 2147483647, %v2779
    %vm2790 = vcmp.eq.f32.partialorder %v2789, 8.507059e+37
    %v2791 = vand.u32 %v2779, 2147483648
    %v2792 = vor.u32 1.1754944e-38, %v2791
    %v2793 = vsel %vm2790, %v2792, %v2788
    %v2794 = vmul.f32 1.0, %v2793
    %v2795 = vtanh.pop %v2755
    %v2796 = vxor.u32 %v2756, 2147483648
    %v2797 = vmul.f32 %v2796, 1.442695
    %v2798 = vpow.pop %v2797
    %v2799 = vadd.f32 %v2798, 1.0
    %v2800 = vrcp.pop %v2799
    %v2801 = vmul.f32 %v2799, %v2800
    %v2802 = vsub.f32 1.0, %v2801
    %v2803 = vmul.f32 %v2800, %v2802
    %v2804 = vadd.f32 %v2800, %v2803
    %vm2805 = vweird.f32 %v2799
    %vm2806 = vweird.f32 %v2800
    %vm2807 = vmor %vm2805, %vm2806
    %v2808 = vsel %vm2807, %v2800, %v2804
    %v2809 = vand.u32 2147483647, %v2799
    %vm2810 = vcmp.eq.f32.partialorder %v2809, 8.507059e+37
    %v2811 = vand.u32 %v2799, 2147483648
    %v2812 = vor.u32 1.1754944e-38, %v2811
    %v2813 = vsel %vm2810, %v2812, %v2808
    %v2814 = vmul.f32 1.0, %v2813
    %v2815 = vmul.f32 %v2794, %v2434
    %v2816 = vmul.f32 %v2775, %v2795
    %v2817 = vadd.f32 %v2815, %v2816
    %v2818 = vtanh.pop %v2817
    %v2819 = vmul.f32 %v2814, %v2818
    %s2820 = scalar_lea.vmem [#allocation3], 40
    %2821 = vst [vmem:[%s2820] sm:$0xff] %v2819
    %s2822 = smul.u32 6, 4
    %s2823 = smul.addr %s2822, 8
    %s2824 = scalar_lea.vmem [#allocation2], %s2823
    %v2825 = vld [vmem:[%s2824] sm:$0xff]
    %v2826 = vld [vmem:[%s2824 + $0x8] sm:$0xff]
    %v2827 = vld [vmem:[%s2824 + $0x10] sm:$0xff]
    %v2828 = vld [vmem:[%s2824 + $0x18] sm:$0xff]
    %2829 = vmatpush.msra.mxu0 %v383
    %2830 = vmatpush.msra.mxu0 %v379
    %2831 = vmatpush.msra.mxu0 %v375
    %2832 = vmatpush.msra.mxu0 %v371
    %2833 = vmatpush.msra.mxu0 %v367
    %2834 = vmatpush.msra.mxu0 %v363
    %2835 = vmatpush.msra.mxu0 %v359
    %2836 = vmatpush.msra.mxu0 %v355
    %2837 = vmatpush.msra.mxu0 %v351
    %2838 = vmatpush.msra.mxu0 %v347
    %2839 = vmatpush.msra.mxu0 %v343
    %2840 = vmatpush.msra.mxu0 %v339
    %2841 = vmatpush.msra.mxu0 %v335
    %2842 = vmatpush.msra.mxu0 %v331
    %2843 = vmatpush.msra.mxu0 %v327
    %2844 = vmatpush.msra.mxu0 %v323
    %2845 = vmatmul.f32.gmra.mxu0 %v2592
    %v2846 = vpop.f32.mrf.mxu0
    %v2847 = vadd.f32 0.0, %v2846
    %2848 = vdwg.mxu0
    %2849 = vmatpush.msra.mxu0 %v384
    %2850 = vmatpush.msra.mxu0 %v380
    %2851 = vmatpush.msra.mxu0 %v376
    %2852 = vmatpush.msra.mxu0 %v372
    %2853 = vmatpush.msra.mxu0 %v368
    %2854 = vmatpush.msra.mxu0 %v364
    %2855 = vmatpush.msra.mxu0 %v360
    %2856 = vmatpush.msra.mxu0 %v356
    %2857 = vmatpush.msra.mxu0 %v352
    %2858 = vmatpush.msra.mxu0 %v348
    %2859 = vmatpush.msra.mxu0 %v344
    %2860 = vmatpush.msra.mxu0 %v340
    %2861 = vmatpush.msra.mxu0 %v336
    %2862 = vmatpush.msra.mxu0 %v332
    %2863 = vmatpush.msra.mxu0 %v328
    %2864 = vmatpush.msra.mxu0 %v324
    %2865 = vmatmul.f32.gmra.mxu0 %v2592
    %v2866 = vpop.f32.mrf.mxu0
    %v2867 = vadd.f32 0.0, %v2866
    %2868 = vdwg.mxu0
    %2869 = vmatpush.msra.mxu0 %v385
    %2870 = vmatpush.msra.mxu0 %v381
    %2871 = vmatpush.msra.mxu0 %v377
    %2872 = vmatpush.msra.mxu0 %v373
    %2873 = vmatpush.msra.mxu0 %v369
    %2874 = vmatpush.msra.mxu0 %v365
    %2875 = vmatpush.msra.mxu0 %v361
    %2876 = vmatpush.msra.mxu0 %v357
    %2877 = vmatpush.msra.mxu0 %v353
    %2878 = vmatpush.msra.mxu0 %v349
    %2879 = vmatpush.msra.mxu0 %v345
    %2880 = vmatpush.msra.mxu0 %v341
    %2881 = vmatpush.msra.mxu0 %v337
    %2882 = vmatpush.msra.mxu0 %v333
    %2883 = vmatpush.msra.mxu0 %v329
    %2884 = vmatpush.msra.mxu0 %v325
    %2885 = vmatmul.f32.gmra.mxu0 %v2592
    %v2886 = vpop.f32.mrf.mxu0
    %v2887 = vadd.f32 0.0, %v2886
    %2888 = vdwg.mxu0
    %2889 = vmatpush.msra.mxu0 %v386
    %2890 = vmatpush.msra.mxu0 %v382
    %2891 = vmatpush.msra.mxu0 %v378
    %2892 = vmatpush.msra.mxu0 %v374
    %2893 = vmatpush.msra.mxu0 %v370
    %2894 = vmatpush.msra.mxu0 %v366
    %2895 = vmatpush.msra.mxu0 %v362
    %2896 = vmatpush.msra.mxu0 %v358
    %2897 = vmatpush.msra.mxu0 %v354
    %2898 = vmatpush.msra.mxu0 %v350
    %2899 = vmatpush.msra.mxu0 %v346
    %2900 = vmatpush.msra.mxu0 %v342
    %2901 = vmatpush.msra.mxu0 %v338
    %2902 = vmatpush.msra.mxu0 %v334
    %2903 = vmatpush.msra.mxu0 %v330
    %2904 = vmatpush.msra.mxu0 %v326
    %2905 = vmatmul.f32.gmra.mxu0 %v2592
    %v2906 = vpop.f32.mrf.mxu0
    %v2907 = vadd.f32 0.0, %v2906
    %2908 = vdwg.mxu0
    %v2909 = vadd.f32 %v2825, %v2847
    %v2910 = vadd.f32 %v2826, %v2867
    %v2911 = vadd.f32 %v2827, %v2887
    %v2912 = vadd.f32 %v2828, %v2907
    %v2913 = vxor.u32 %v2909, 2147483648
    %v2914 = vmul.f32 %v2913, 1.442695
    %v2915 = vpow.pop %v2914
    %v2916 = vadd.f32 %v2915, 1.0
    %v2917 = vrcp.pop %v2916
    %v2918 = vmul.f32 %v2916, %v2917
    %v2919 = vsub.f32 1.0, %v2918
    %v2920 = vmul.f32 %v2917, %v2919
    %v2921 = vadd.f32 %v2917, %v2920
    %vm2922 = vweird.f32 %v2916
    %vm2923 = vweird.f32 %v2917
    %vm2924 = vmor %vm2922, %vm2923
    %v2925 = vsel %vm2924, %v2917, %v2921
    %v2926 = vand.u32 2147483647, %v2916
    %vm2927 = vcmp.eq.f32.partialorder %v2926, 8.507059e+37
    %v2928 = vand.u32 %v2916, 2147483648
    %v2929 = vor.u32 1.1754944e-38, %v2928
    %v2930 = vsel %vm2927, %v2929, %v2925
    %v2931 = vmul.f32 1.0, %v2930
    %v2932 = vxor.u32 %v2910, 2147483648
    %v2933 = vmul.f32 %v2932, 1.442695
    %v2934 = vpow.pop %v2933
    %v2935 = vadd.f32 %v2934, 1.0
    %v2936 = vrcp.pop %v2935
    %v2937 = vmul.f32 %v2935, %v2936
    %v2938 = vsub.f32 1.0, %v2937
    %v2939 = vmul.f32 %v2936, %v2938
    %v2940 = vadd.f32 %v2936, %v2939
    %vm2941 = vweird.f32 %v2935
    %vm2942 = vweird.f32 %v2936
    %vm2943 = vmor %vm2941, %vm2942
    %v2944 = vsel %vm2943, %v2936, %v2940
    %v2945 = vand.u32 2147483647, %v2935
    %vm2946 = vcmp.eq.f32.partialorder %v2945, 8.507059e+37
    %v2947 = vand.u32 %v2935, 2147483648
    %v2948 = vor.u32 1.1754944e-38, %v2947
    %v2949 = vsel %vm2946, %v2948, %v2944
    %v2950 = vmul.f32 1.0, %v2949
    %v2951 = vtanh.pop %v2911
    %v2952 = vxor.u32 %v2912, 2147483648
    %v2953 = vmul.f32 %v2952, 1.442695
    %v2954 = vpow.pop %v2953
    %v2955 = vadd.f32 %v2954, 1.0
    %v2956 = vrcp.pop %v2955
    %v2957 = vmul.f32 %v2955, %v2956
    %v2958 = vsub.f32 1.0, %v2957
    %v2959 = vmul.f32 %v2956, %v2958
    %v2960 = vadd.f32 %v2956, %v2959
    %vm2961 = vweird.f32 %v2955
    %vm2962 = vweird.f32 %v2956
    %vm2963 = vmor %vm2961, %vm2962
    %v2964 = vsel %vm2963, %v2956, %v2960
    %v2965 = vand.u32 2147483647, %v2955
    %vm2966 = vcmp.eq.f32.partialorder %v2965, 8.507059e+37
    %v2967 = vand.u32 %v2955, 2147483648
    %v2968 = vor.u32 1.1754944e-38, %v2967
    %v2969 = vsel %vm2966, %v2968, %v2964
    %v2970 = vmul.f32 1.0, %v2969
    %v2971 = vmul.f32 %v2950, %v2590
    %v2972 = vmul.f32 %v2931, %v2951
    %v2973 = vadd.f32 %v2971, %v2972
    %v2974 = vtanh.pop %v2973
    %v2975 = vmul.f32 %v2970, %v2974
    %2976 = vmatpush.msra.mxu0 %v447
    %2977 = vmatpush.msra.mxu0 %v443
    %2978 = vmatpush.msra.mxu0 %v439
    %2979 = vmatpush.msra.mxu0 %v435
    %2980 = vmatpush.msra.mxu0 %v431
    %2981 = vmatpush.msra.mxu0 %v427
    %2982 = vmatpush.msra.mxu0 %v423
    %2983 = vmatpush.msra.mxu0 %v419
    %2984 = vmatpush.msra.mxu0 %v415
    %2985 = vmatpush.msra.mxu0 %v411
    %2986 = vmatpush.msra.mxu0 %v407
    %2987 = vmatpush.msra.mxu0 %v403
    %2988 = vmatpush.msra.mxu0 %v399
    %2989 = vmatpush.msra.mxu0 %v395
    %2990 = vmatpush.msra.mxu0 %v391
    %2991 = vmatpush.msra.mxu0 %v387
    %2992 = vmatmul.f32.gmra.mxu0 %v2975
    %v2993 = vpop.f32.mrf.mxu0
    %v2994 = vadd.f32 0.0, %v2993
    %2995 = vdwg.mxu0
    %2996 = vmatpush.msra.mxu0 %v448
    %2997 = vmatpush.msra.mxu0 %v444
    %2998 = vmatpush.msra.mxu0 %v440
    %2999 = vmatpush.msra.mxu0 %v436
    %3000 = vmatpush.msra.mxu0 %v432
    %3001 = vmatpush.msra.mxu0 %v428
    %3002 = vmatpush.msra.mxu0 %v424
    %3003 = vmatpush.msra.mxu0 %v420
    %3004 = vmatpush.msra.mxu0 %v416
    %3005 = vmatpush.msra.mxu0 %v412
    %3006 = vmatpush.msra.mxu0 %v408
    %3007 = vmatpush.msra.mxu0 %v404
    %3008 = vmatpush.msra.mxu0 %v400
    %3009 = vmatpush.msra.mxu0 %v396
    %3010 = vmatpush.msra.mxu0 %v392
    %3011 = vmatpush.msra.mxu0 %v388
    %3012 = vmatmul.f32.gmra.mxu0 %v2975
    %v3013 = vpop.f32.mrf.mxu0
    %v3014 = vadd.f32 0.0, %v3013
    %3015 = vdwg.mxu0
    %3016 = vmatpush.msra.mxu0 %v449
    %3017 = vmatpush.msra.mxu0 %v445
    %3018 = vmatpush.msra.mxu0 %v441
    %3019 = vmatpush.msra.mxu0 %v437
    %3020 = vmatpush.msra.mxu0 %v433
    %3021 = vmatpush.msra.mxu0 %v429
    %3022 = vmatpush.msra.mxu0 %v425
    %3023 = vmatpush.msra.mxu0 %v421
    %3024 = vmatpush.msra.mxu0 %v417
    %3025 = vmatpush.msra.mxu0 %v413
    %3026 = vmatpush.msra.mxu0 %v409
    %3027 = vmatpush.msra.mxu0 %v405
    %3028 = vmatpush.msra.mxu0 %v401
    %3029 = vmatpush.msra.mxu0 %v397
    %3030 = vmatpush.msra.mxu0 %v393
    %3031 = vmatpush.msra.mxu0 %v389
    %3032 = vmatmul.f32.gmra.mxu0 %v2975
    %v3033 = vpop.f32.mrf.mxu0
    %v3034 = vadd.f32 0.0, %v3033
    %3035 = vdwg.mxu0
    %3036 = vmatpush.msra.mxu0 %v450
    %3037 = vmatpush.msra.mxu0 %v446
    %3038 = vmatpush.msra.mxu0 %v442
    %3039 = vmatpush.msra.mxu0 %v438
    %3040 = vmatpush.msra.mxu0 %v434
    %3041 = vmatpush.msra.mxu0 %v430
    %3042 = vmatpush.msra.mxu0 %v426
    %3043 = vmatpush.msra.mxu0 %v422
    %3044 = vmatpush.msra.mxu0 %v418
    %3045 = vmatpush.msra.mxu0 %v414
    %3046 = vmatpush.msra.mxu0 %v410
    %3047 = vmatpush.msra.mxu0 %v406
    %3048 = vmatpush.msra.mxu0 %v402
    %3049 = vmatpush.msra.mxu0 %v398
    %3050 = vmatpush.msra.mxu0 %v394
    %3051 = vmatpush.msra.mxu0 %v390
    %3052 = vmatmul.f32.gmra.mxu0 %v2975
    %v3053 = vpop.f32.mrf.mxu0
    %v3054 = vadd.f32 0.0, %v3053
    %3055 = vdwg.mxu0
    %3056 = vmatpush.msra.mxu0 %v511
    %3057 = vmatpush.msra.mxu0 %v507
    %3058 = vmatpush.msra.mxu0 %v503
    %3059 = vmatpush.msra.mxu0 %v499
    %3060 = vmatpush.msra.mxu0 %v495
    %3061 = vmatpush.msra.mxu0 %v491
    %3062 = vmatpush.msra.mxu0 %v487
    %3063 = vmatpush.msra.mxu0 %v483
    %3064 = vmatpush.msra.mxu0 %v479
    %3065 = vmatpush.msra.mxu0 %v475
    %3066 = vmatpush.msra.mxu0 %v471
    %3067 = vmatpush.msra.mxu0 %v467
    %3068 = vmatpush.msra.mxu0 %v463
    %3069 = vmatpush.msra.mxu0 %v459
    %3070 = vmatpush.msra.mxu0 %v455
    %3071 = vmatpush.msra.mxu0 %v451
    %3072 = vmatmul.f32.gmra.mxu0 %v2819
    %v3073 = vpop.f32.mrf.mxu0
    %v3074 = vadd.f32 %v2994, %v3073
    %3075 = vdwg.mxu0
    %3076 = vmatpush.msra.mxu0 %v512
    %3077 = vmatpush.msra.mxu0 %v508
    %3078 = vmatpush.msra.mxu0 %v504
    %3079 = vmatpush.msra.mxu0 %v500
    %3080 = vmatpush.msra.mxu0 %v496
    %3081 = vmatpush.msra.mxu0 %v492
    %3082 = vmatpush.msra.mxu0 %v488
    %3083 = vmatpush.msra.mxu0 %v484
    %3084 = vmatpush.msra.mxu0 %v480
    %3085 = vmatpush.msra.mxu0 %v476
    %3086 = vmatpush.msra.mxu0 %v472
    %3087 = vmatpush.msra.mxu0 %v468
    %3088 = vmatpush.msra.mxu0 %v464
    %3089 = vmatpush.msra.mxu0 %v460
    %3090 = vmatpush.msra.mxu0 %v456
    %3091 = vmatpush.msra.mxu0 %v452
    %3092 = vmatmul.f32.gmra.mxu0 %v2819
    %v3093 = vpop.f32.mrf.mxu0
    %v3094 = vadd.f32 %v3014, %v3093
    %3095 = vdwg.mxu0
    %3096 = vmatpush.msra.mxu0 %v513
    %3097 = vmatpush.msra.mxu0 %v509
    %3098 = vmatpush.msra.mxu0 %v505
    %3099 = vmatpush.msra.mxu0 %v501
    %3100 = vmatpush.msra.mxu0 %v497
    %3101 = vmatpush.msra.mxu0 %v493
    %3102 = vmatpush.msra.mxu0 %v489
    %3103 = vmatpush.msra.mxu0 %v485
    %3104 = vmatpush.msra.mxu0 %v481
    %3105 = vmatpush.msra.mxu0 %v477
    %3106 = vmatpush.msra.mxu0 %v473
    %3107 = vmatpush.msra.mxu0 %v469
    %3108 = vmatpush.msra.mxu0 %v465
    %3109 = vmatpush.msra.mxu0 %v461
    %3110 = vmatpush.msra.mxu0 %v457
    %3111 = vmatpush.msra.mxu0 %v453
    %3112 = vmatmul.f32.gmra.mxu0 %v2819
    %v3113 = vpop.f32.mrf.mxu0
    %v3114 = vadd.f32 %v3034, %v3113
    %3115 = vdwg.mxu0
    %3116 = vmatpush.msra.mxu0 %v514
    %3117 = vmatpush.msra.mxu0 %v510
    %3118 = vmatpush.msra.mxu0 %v506
    %3119 = vmatpush.msra.mxu0 %v502
    %3120 = vmatpush.msra.mxu0 %v498
    %3121 = vmatpush.msra.mxu0 %v494
    %3122 = vmatpush.msra.mxu0 %v490
    %3123 = vmatpush.msra.mxu0 %v486
    %3124 = vmatpush.msra.mxu0 %v482
    %3125 = vmatpush.msra.mxu0 %v478
    %3126 = vmatpush.msra.mxu0 %v474
    %3127 = vmatpush.msra.mxu0 %v470
    %3128 = vmatpush.msra.mxu0 %v466
    %3129 = vmatpush.msra.mxu0 %v462
    %3130 = vmatpush.msra.mxu0 %v458
    %3131 = vmatpush.msra.mxu0 %v454
    %3132 = vmatmul.f32.gmra.mxu0 %v2819
    %v3133 = vpop.f32.mrf.mxu0
    %v3134 = vadd.f32 %v3054, %v3133
    %3135 = vdwg.mxu0
    %v3136 = vadd.f32 %v3074, %v517
    %v3137 = vadd.f32 %v3094, %v518
    %v3138 = vadd.f32 %v3114, %v519
    %v3139 = vadd.f32 %v3134, %v520
    %v3140 = vxor.u32 %v3136, 2147483648
    %v3141 = vmul.f32 %v3140, 1.442695
    %v3142 = vpow.pop %v3141
    %v3143 = vadd.f32 %v3142, 1.0
    %v3144 = vrcp.pop %v3143
    %v3145 = vmul.f32 %v3143, %v3144
    %v3146 = vsub.f32 1.0, %v3145
    %v3147 = vmul.f32 %v3144, %v3146
    %v3148 = vadd.f32 %v3144, %v3147
    %vm3149 = vweird.f32 %v3143
    %vm3150 = vweird.f32 %v3144
    %vm3151 = vmor %vm3149, %vm3150
    %v3152 = vsel %vm3151, %v3144, %v3148
    %v3153 = vand.u32 2147483647, %v3143
    %vm3154 = vcmp.eq.f32.partialorder %v3153, 8.507059e+37
    %v3155 = vand.u32 %v3143, 2147483648
    %v3156 = vor.u32 1.1754944e-38, %v3155
    %v3157 = vsel %vm3154, %v3156, %v3152
    %v3158 = vmul.f32 1.0, %v3157
    %v3159 = vxor.u32 %v3137, 2147483648
    %v3160 = vmul.f32 %v3159, 1.442695
    %v3161 = vpow.pop %v3160
    %v3162 = vadd.f32 %v3161, 1.0
    %v3163 = vrcp.pop %v3162
    %v3164 = vmul.f32 %v3162, %v3163
    %v3165 = vsub.f32 1.0, %v3164
    %v3166 = vmul.f32 %v3163, %v3165
    %v3167 = vadd.f32 %v3163, %v3166
    %vm3168 = vweird.f32 %v3162
    %vm3169 = vweird.f32 %v3163
    %vm3170 = vmor %vm3168, %vm3169
    %v3171 = vsel %vm3170, %v3163, %v3167
    %v3172 = vand.u32 2147483647, %v3162
    %vm3173 = vcmp.eq.f32.partialorder %v3172, 8.507059e+37
    %v3174 = vand.u32 %v3162, 2147483648
    %v3175 = vor.u32 1.1754944e-38, %v3174
    %v3176 = vsel %vm3173, %v3175, %v3171
    %v3177 = vmul.f32 1.0, %v3176
    %v3178 = vtanh.pop %v3138
    %v3179 = vxor.u32 %v3139, 2147483648
    %v3180 = vmul.f32 %v3179, 1.442695
    %v3181 = vpow.pop %v3180
    %v3182 = vadd.f32 %v3181, 1.0
    %v3183 = vrcp.pop %v3182
    %v3184 = vmul.f32 %v3182, %v3183
    %v3185 = vsub.f32 1.0, %v3184
    %v3186 = vmul.f32 %v3183, %v3185
    %v3187 = vadd.f32 %v3183, %v3186
    %vm3188 = vweird.f32 %v3182
    %vm3189 = vweird.f32 %v3183
    %vm3190 = vmor %vm3188, %vm3189
    %v3191 = vsel %vm3190, %v3183, %v3187
    %v3192 = vand.u32 2147483647, %v3182
    %vm3193 = vcmp.eq.f32.partialorder %v3192, 8.507059e+37
    %v3194 = vand.u32 %v3182, 2147483648
    %v3195 = vor.u32 1.1754944e-38, %v3194
    %v3196 = vsel %vm3193, %v3195, %v3191
    %v3197 = vmul.f32 1.0, %v3196
    %v3198 = vmul.f32 %v3177, %v2817
    %v3199 = vmul.f32 %v3158, %v3178
    %v3200 = vadd.f32 %v3198, %v3199
    %v3201 = vtanh.pop %v3200
    %v3202 = vmul.f32 %v3197, %v3201
    %s3203 = scalar_lea.vmem [#allocation3], 48
    %3204 = vst [vmem:[%s3203] sm:$0xff] %v3202
    %s3205 = smul.u32 7, 4
    %s3206 = smul.addr %s3205, 8
    %s3207 = scalar_lea.vmem [#allocation2], %s3206
    %v3208 = vld [vmem:[%s3207] sm:$0xff]
    %v3209 = vld [vmem:[%s3207 + $0x8] sm:$0xff]
    %v3210 = vld [vmem:[%s3207 + $0x10] sm:$0xff]
    %v3211 = vld [vmem:[%s3207 + $0x18] sm:$0xff]
    %3212 = vmatpush.msra.mxu0 %v383
    %3213 = vmatpush.msra.mxu0 %v379
    %3214 = vmatpush.msra.mxu0 %v375
    %3215 = vmatpush.msra.mxu0 %v371
    %3216 = vmatpush.msra.mxu0 %v367
    %3217 = vmatpush.msra.mxu0 %v363
    %3218 = vmatpush.msra.mxu0 %v359
    %3219 = vmatpush.msra.mxu0 %v355
    %3220 = vmatpush.msra.mxu0 %v351
    %3221 = vmatpush.msra.mxu0 %v347
    %3222 = vmatpush.msra.mxu0 %v343
    %3223 = vmatpush.msra.mxu0 %v339
    %3224 = vmatpush.msra.mxu0 %v335
    %3225 = vmatpush.msra.mxu0 %v331
    %3226 = vmatpush.msra.mxu0 %v327
    %3227 = vmatpush.msra.mxu0 %v323
    %3228 = vmatmul.f32.gmra.mxu0 %v2975
    %v3229 = vpop.f32.mrf.mxu0
    %v3230 = vadd.f32 0.0, %v3229
    %3231 = vdwg.mxu0
    %3232 = vmatpush.msra.mxu0 %v384
    %3233 = vmatpush.msra.mxu0 %v380
    %3234 = vmatpush.msra.mxu0 %v376
    %3235 = vmatpush.msra.mxu0 %v372
    %3236 = vmatpush.msra.mxu0 %v368
    %3237 = vmatpush.msra.mxu0 %v364
    %3238 = vmatpush.msra.mxu0 %v360
    %3239 = vmatpush.msra.mxu0 %v356
    %3240 = vmatpush.msra.mxu0 %v352
    %3241 = vmatpush.msra.mxu0 %v348
    %3242 = vmatpush.msra.mxu0 %v344
    %3243 = vmatpush.msra.mxu0 %v340
    %3244 = vmatpush.msra.mxu0 %v336
    %3245 = vmatpush.msra.mxu0 %v332
    %3246 = vmatpush.msra.mxu0 %v328
    %3247 = vmatpush.msra.mxu0 %v324
    %3248 = vmatmul.f32.gmra.mxu0 %v2975
    %v3249 = vpop.f32.mrf.mxu0
    %v3250 = vadd.f32 0.0, %v3249
    %3251 = vdwg.mxu0
    %3252 = vmatpush.msra.mxu0 %v385
    %3253 = vmatpush.msra.mxu0 %v381
    %3254 = vmatpush.msra.mxu0 %v377
    %3255 = vmatpush.msra.mxu0 %v373
    %3256 = vmatpush.msra.mxu0 %v369
    %3257 = vmatpush.msra.mxu0 %v365
    %3258 = vmatpush.msra.mxu0 %v361
    %3259 = vmatpush.msra.mxu0 %v357
    %3260 = vmatpush.msra.mxu0 %v353
    %3261 = vmatpush.msra.mxu0 %v349
    %3262 = vmatpush.msra.mxu0 %v345
    %3263 = vmatpush.msra.mxu0 %v341
    %3264 = vmatpush.msra.mxu0 %v337
    %3265 = vmatpush.msra.mxu0 %v333
    %3266 = vmatpush.msra.mxu0 %v329
    %3267 = vmatpush.msra.mxu0 %v325
    %3268 = vmatmul.f32.gmra.mxu0 %v2975
    %v3269 = vpop.f32.mrf.mxu0
    %v3270 = vadd.f32 0.0, %v3269
    %3271 = vdwg.mxu0
    %3272 = vmatpush.msra.mxu0 %v386
    %3273 = vmatpush.msra.mxu0 %v382
    %3274 = vmatpush.msra.mxu0 %v378
    %3275 = vmatpush.msra.mxu0 %v374
    %3276 = vmatpush.msra.mxu0 %v370
    %3277 = vmatpush.msra.mxu0 %v366
    %3278 = vmatpush.msra.mxu0 %v362
    %3279 = vmatpush.msra.mxu0 %v358
    %3280 = vmatpush.msra.mxu0 %v354
    %3281 = vmatpush.msra.mxu0 %v350
    %3282 = vmatpush.msra.mxu0 %v346
    %3283 = vmatpush.msra.mxu0 %v342
    %3284 = vmatpush.msra.mxu0 %v338
    %3285 = vmatpush.msra.mxu0 %v334
    %3286 = vmatpush.msra.mxu0 %v330
    %3287 = vmatpush.msra.mxu0 %v326
    %3288 = vmatmul.f32.gmra.mxu0 %v2975
    %v3289 = vpop.f32.mrf.mxu0
    %v3290 = vadd.f32 0.0, %v3289
    %3291 = vdwg.mxu0
    %v3292 = vadd.f32 %v3208, %v3230
    %v3293 = vadd.f32 %v3209, %v3250
    %v3294 = vadd.f32 %v3210, %v3270
    %v3295 = vadd.f32 %v3211, %v3290
    %v3296 = vxor.u32 %v3292, 2147483648
    %v3297 = vmul.f32 %v3296, 1.442695
    %v3298 = vpow.pop %v3297
    %v3299 = vadd.f32 %v3298, 1.0
    %v3300 = vrcp.pop %v3299
    %v3301 = vmul.f32 %v3299, %v3300
    %v3302 = vsub.f32 1.0, %v3301
    %v3303 = vmul.f32 %v3300, %v3302
    %v3304 = vadd.f32 %v3300, %v3303
    %vm3305 = vweird.f32 %v3299
    %vm3306 = vweird.f32 %v3300
    %vm3307 = vmor %vm3305, %vm3306
    %v3308 = vsel %vm3307, %v3300, %v3304
    %v3309 = vand.u32 2147483647, %v3299
    %vm3310 = vcmp.eq.f32.partialorder %v3309, 8.507059e+37
    %v3311 = vand.u32 %v3299, 2147483648
    %v3312 = vor.u32 1.1754944e-38, %v3311
    %v3313 = vsel %vm3310, %v3312, %v3308
    %v3314 = vmul.f32 1.0, %v3313
    %v3315 = vxor.u32 %v3293, 2147483648
    %v3316 = vmul.f32 %v3315, 1.442695
    %v3317 = vpow.pop %v3316
    %v3318 = vadd.f32 %v3317, 1.0
    %v3319 = vrcp.pop %v3318
    %v3320 = vmul.f32 %v3318, %v3319
    %v3321 = vsub.f32 1.0, %v3320
    %v3322 = vmul.f32 %v3319, %v3321
    %v3323 = vadd.f32 %v3319, %v3322
    %vm3324 = vweird.f32 %v3318
    %vm3325 = vweird.f32 %v3319
    %vm3326 = vmor %vm3324, %vm3325
    %v3327 = vsel %vm3326, %v3319, %v3323
    %v3328 = vand.u32 2147483647, %v3318
    %vm3329 = vcmp.eq.f32.partialorder %v3328, 8.507059e+37
    %v3330 = vand.u32 %v3318, 2147483648
    %v3331 = vor.u32 1.1754944e-38, %v3330
    %v3332 = vsel %vm3329, %v3331, %v3327
    %v3333 = vmul.f32 1.0, %v3332
    %v3334 = vtanh.pop %v3294
    %v3335 = vxor.u32 %v3295, 2147483648
    %v3336 = vmul.f32 %v3335, 1.442695
    %v3337 = vpow.pop %v3336
    %v3338 = vadd.f32 %v3337, 1.0
    %v3339 = vrcp.pop %v3338
    %v3340 = vmul.f32 %v3338, %v3339
    %v3341 = vsub.f32 1.0, %v3340
    %v3342 = vmul.f32 %v3339, %v3341
    %v3343 = vadd.f32 %v3339, %v3342
    %vm3344 = vweird.f32 %v3338
    %vm3345 = vweird.f32 %v3339
    %vm3346 = vmor %vm3344, %vm3345
    %v3347 = vsel %vm3346, %v3339, %v3343
    %v3348 = vand.u32 2147483647, %v3338
    %vm3349 = vcmp.eq.f32.partialorder %v3348, 8.507059e+37
    %v3350 = vand.u32 %v3338, 2147483648
    %v3351 = vor.u32 1.1754944e-38, %v3350
    %v3352 = vsel %vm3349, %v3351, %v3347
    %v3353 = vmul.f32 1.0, %v3352
    %v3354 = vmul.f32 %v3333, %v2973
    %v3355 = vmul.f32 %v3314, %v3334
    %v3356 = vadd.f32 %v3354, %v3355
    %v3357 = vtanh.pop %v3356
    %v3358 = vmul.f32 %v3353, %v3357
    %3359 = vmatpush.msra.mxu0 %v447
    %3360 = vmatpush.msra.mxu0 %v443
    %3361 = vmatpush.msra.mxu0 %v439
    %3362 = vmatpush.msra.mxu0 %v435
    %3363 = vmatpush.msra.mxu0 %v431
    %3364 = vmatpush.msra.mxu0 %v427
    %3365 = vmatpush.msra.mxu0 %v423
    %3366 = vmatpush.msra.mxu0 %v419
    %3367 = vmatpush.msra.mxu0 %v415
    %3368 = vmatpush.msra.mxu0 %v411
    %3369 = vmatpush.msra.mxu0 %v407
    %3370 = vmatpush.msra.mxu0 %v403
    %3371 = vmatpush.msra.mxu0 %v399
    %3372 = vmatpush.msra.mxu0 %v395
    %3373 = vmatpush.msra.mxu0 %v391
    %3374 = vmatpush.msra.mxu0 %v387
    %3375 = vmatmul.f32.gmra.mxu0 %v3358
    %v3376 = vpop.f32.mrf.mxu0
    %v3377 = vadd.f32 0.0, %v3376
    %3378 = vdwg.mxu0
    %3379 = vmatpush.msra.mxu0 %v448
    %3380 = vmatpush.msra.mxu0 %v444
    %3381 = vmatpush.msra.mxu0 %v440
    %3382 = vmatpush.msra.mxu0 %v436
    %3383 = vmatpush.msra.mxu0 %v432
    %3384 = vmatpush.msra.mxu0 %v428
    %3385 = vmatpush.msra.mxu0 %v424
    %3386 = vmatpush.msra.mxu0 %v420
    %3387 = vmatpush.msra.mxu0 %v416
    %3388 = vmatpush.msra.mxu0 %v412
    %3389 = vmatpush.msra.mxu0 %v408
    %3390 = vmatpush.msra.mxu0 %v404
    %3391 = vmatpush.msra.mxu0 %v400
    %3392 = vmatpush.msra.mxu0 %v396
    %3393 = vmatpush.msra.mxu0 %v392
    %3394 = vmatpush.msra.mxu0 %v388
    %3395 = vmatmul.f32.gmra.mxu0 %v3358
    %v3396 = vpop.f32.mrf.mxu0
    %v3397 = vadd.f32 0.0, %v3396
    %3398 = vdwg.mxu0
    %3399 = vmatpush.msra.mxu0 %v449
    %3400 = vmatpush.msra.mxu0 %v445
    %3401 = vmatpush.msra.mxu0 %v441
    %3402 = vmatpush.msra.mxu0 %v437
    %3403 = vmatpush.msra.mxu0 %v433
    %3404 = vmatpush.msra.mxu0 %v429
    %3405 = vmatpush.msra.mxu0 %v425
    %3406 = vmatpush.msra.mxu0 %v421
    %3407 = vmatpush.msra.mxu0 %v417
    %3408 = vmatpush.msra.mxu0 %v413
    %3409 = vmatpush.msra.mxu0 %v409
    %3410 = vmatpush.msra.mxu0 %v405
    %3411 = vmatpush.msra.mxu0 %v401
    %3412 = vmatpush.msra.mxu0 %v397
    %3413 = vmatpush.msra.mxu0 %v393
    %3414 = vmatpush.msra.mxu0 %v389
    %3415 = vmatmul.f32.gmra.mxu0 %v3358
    %v3416 = vpop.f32.mrf.mxu0
    %v3417 = vadd.f32 0.0, %v3416
    %3418 = vdwg.mxu0
    %3419 = vmatpush.msra.mxu0 %v450
    %3420 = vmatpush.msra.mxu0 %v446
    %3421 = vmatpush.msra.mxu0 %v442
    %3422 = vmatpush.msra.mxu0 %v438
    %3423 = vmatpush.msra.mxu0 %v434
    %3424 = vmatpush.msra.mxu0 %v430
    %3425 = vmatpush.msra.mxu0 %v426
    %3426 = vmatpush.msra.mxu0 %v422
    %3427 = vmatpush.msra.mxu0 %v418
    %3428 = vmatpush.msra.mxu0 %v414
    %3429 = vmatpush.msra.mxu0 %v410
    %3430 = vmatpush.msra.mxu0 %v406
    %3431 = vmatpush.msra.mxu0 %v402
    %3432 = vmatpush.msra.mxu0 %v398
    %3433 = vmatpush.msra.mxu0 %v394
    %3434 = vmatpush.msra.mxu0 %v390
    %3435 = vmatmul.f32.gmra.mxu0 %v3358
    %v3436 = vpop.f32.mrf.mxu0
    %v3437 = vadd.f32 0.0, %v3436
    %3438 = vdwg.mxu0
    %3439 = vmatpush.msra.mxu0 %v511
    %3440 = vmatpush.msra.mxu0 %v507
    %3441 = vmatpush.msra.mxu0 %v503
    %3442 = vmatpush.msra.mxu0 %v499
    %3443 = vmatpush.msra.mxu0 %v495
    %3444 = vmatpush.msra.mxu0 %v491
    %3445 = vmatpush.msra.mxu0 %v487
    %3446 = vmatpush.msra.mxu0 %v483
    %3447 = vmatpush.msra.mxu0 %v479
    %3448 = vmatpush.msra.mxu0 %v475
    %3449 = vmatpush.msra.mxu0 %v471
    %3450 = vmatpush.msra.mxu0 %v467
    %3451 = vmatpush.msra.mxu0 %v463
    %3452 = vmatpush.msra.mxu0 %v459
    %3453 = vmatpush.msra.mxu0 %v455
    %3454 = vmatpush.msra.mxu0 %v451
    %3455 = vmatmul.f32.gmra.mxu0 %v3202
    %v3456 = vpop.f32.mrf.mxu0
    %v3457 = vadd.f32 %v3377, %v3456
    %3458 = vdwg.mxu0
    %3459 = vmatpush.msra.mxu0 %v512
    %3460 = vmatpush.msra.mxu0 %v508
    %3461 = vmatpush.msra.mxu0 %v504
    %3462 = vmatpush.msra.mxu0 %v500
    %3463 = vmatpush.msra.mxu0 %v496
    %3464 = vmatpush.msra.mxu0 %v492
    %3465 = vmatpush.msra.mxu0 %v488
    %3466 = vmatpush.msra.mxu0 %v484
    %3467 = vmatpush.msra.mxu0 %v480
    %3468 = vmatpush.msra.mxu0 %v476
    %3469 = vmatpush.msra.mxu0 %v472
    %3470 = vmatpush.msra.mxu0 %v468
    %3471 = vmatpush.msra.mxu0 %v464
    %3472 = vmatpush.msra.mxu0 %v460
    %3473 = vmatpush.msra.mxu0 %v456
    %3474 = vmatpush.msra.mxu0 %v452
    %3475 = vmatmul.f32.gmra.mxu0 %v3202
    %v3476 = vpop.f32.mrf.mxu0
    %v3477 = vadd.f32 %v3397, %v3476
    %3478 = vdwg.mxu0
    %3479 = vmatpush.msra.mxu0 %v513
    %3480 = vmatpush.msra.mxu0 %v509
    %3481 = vmatpush.msra.mxu0 %v505
    %3482 = vmatpush.msra.mxu0 %v501
    %3483 = vmatpush.msra.mxu0 %v497
    %3484 = vmatpush.msra.mxu0 %v493
    %3485 = vmatpush.msra.mxu0 %v489
    %3486 = vmatpush.msra.mxu0 %v485
    %3487 = vmatpush.msra.mxu0 %v481
    %3488 = vmatpush.msra.mxu0 %v477
    %3489 = vmatpush.msra.mxu0 %v473
    %3490 = vmatpush.msra.mxu0 %v469
    %3491 = vmatpush.msra.mxu0 %v465
    %3492 = vmatpush.msra.mxu0 %v461
    %3493 = vmatpush.msra.mxu0 %v457
    %3494 = vmatpush.msra.mxu0 %v453
    %3495 = vmatmul.f32.gmra.mxu0 %v3202
    %v3496 = vpop.f32.mrf.mxu0
    %v3497 = vadd.f32 %v3417, %v3496
    %3498 = vdwg.mxu0
    %3499 = vmatpush.msra.mxu0 %v514
    %3500 = vmatpush.msra.mxu0 %v510
    %3501 = vmatpush.msra.mxu0 %v506
    %3502 = vmatpush.msra.mxu0 %v502
    %3503 = vmatpush.msra.mxu0 %v498
    %3504 = vmatpush.msra.mxu0 %v494
    %3505 = vmatpush.msra.mxu0 %v490
    %3506 = vmatpush.msra.mxu0 %v486
    %3507 = vmatpush.msra.mxu0 %v482
    %3508 = vmatpush.msra.mxu0 %v478
    %3509 = vmatpush.msra.mxu0 %v474
    %3510 = vmatpush.msra.mxu0 %v470
    %3511 = vmatpush.msra.mxu0 %v466
    %3512 = vmatpush.msra.mxu0 %v462
    %3513 = vmatpush.msra.mxu0 %v458
    %3514 = vmatpush.msra.mxu0 %v454
    %3515 = vmatmul.f32.gmra.mxu0 %v3202
    %v3516 = vpop.f32.mrf.mxu0
    %v3517 = vadd.f32 %v3437, %v3516
    %3518 = vdwg.mxu0
    %v3519 = vadd.f32 %v3457, %v517
    %v3520 = vadd.f32 %v3477, %v518
    %v3521 = vadd.f32 %v3497, %v519
    %v3522 = vadd.f32 %v3517, %v520
    %v3523 = vxor.u32 %v3519, 2147483648
    %v3524 = vmul.f32 %v3523, 1.442695
    %v3525 = vpow.pop %v3524
    %v3526 = vadd.f32 %v3525, 1.0
    %v3527 = vrcp.pop %v3526
    %v3528 = vmul.f32 %v3526, %v3527
    %v3529 = vsub.f32 1.0, %v3528
    %v3530 = vmul.f32 %v3527, %v3529
    %v3531 = vadd.f32 %v3527, %v3530
    %vm3532 = vweird.f32 %v3526
    %vm3533 = vweird.f32 %v3527
    %vm3534 = vmor %vm3532, %vm3533
    %v3535 = vsel %vm3534, %v3527, %v3531
    %v3536 = vand.u32 2147483647, %v3526
    %vm3537 = vcmp.eq.f32.partialorder %v3536, 8.507059e+37
    %v3538 = vand.u32 %v3526, 2147483648
    %v3539 = vor.u32 1.1754944e-38, %v3538
    %v3540 = vsel %vm3537, %v3539, %v3535
    %v3541 = vmul.f32 1.0, %v3540
    %v3542 = vxor.u32 %v3520, 2147483648
    %v3543 = vmul.f32 %v3542, 1.442695
    %v3544 = vpow.pop %v3543
    %v3545 = vadd.f32 %v3544, 1.0
    %v3546 = vrcp.pop %v3545
    %v3547 = vmul.f32 %v3545, %v3546
    %v3548 = vsub.f32 1.0, %v3547
    %v3549 = vmul.f32 %v3546, %v3548
    %v3550 = vadd.f32 %v3546, %v3549
    %vm3551 = vweird.f32 %v3545
    %vm3552 = vweird.f32 %v3546
    %vm3553 = vmor %vm3551, %vm3552
    %v3554 = vsel %vm3553, %v3546, %v3550
    %v3555 = vand.u32 2147483647, %v3545
    %vm3556 = vcmp.eq.f32.partialorder %v3555, 8.507059e+37
    %v3557 = vand.u32 %v3545, 2147483648
    %v3558 = vor.u32 1.1754944e-38, %v3557
    %v3559 = vsel %vm3556, %v3558, %v3554
    %v3560 = vmul.f32 1.0, %v3559
    %v3561 = vtanh.pop %v3521
    %v3562 = vxor.u32 %v3522, 2147483648
    %v3563 = vmul.f32 %v3562, 1.442695
    %v3564 = vpow.pop %v3563
    %v3565 = vadd.f32 %v3564, 1.0
    %v3566 = vrcp.pop %v3565
    %v3567 = vmul.f32 %v3565, %v3566
    %v3568 = vsub.f32 1.0, %v3567
    %v3569 = vmul.f32 %v3566, %v3568
    %v3570 = vadd.f32 %v3566, %v3569
    %vm3571 = vweird.f32 %v3565
    %vm3572 = vweird.f32 %v3566
    %vm3573 = vmor %vm3571, %vm3572
    %v3574 = vsel %vm3573, %v3566, %v3570
    %v3575 = vand.u32 2147483647, %v3565
    %vm3576 = vcmp.eq.f32.partialorder %v3575, 8.507059e+37
    %v3577 = vand.u32 %v3565, 2147483648
    %v3578 = vor.u32 1.1754944e-38, %v3577
    %v3579 = vsel %vm3576, %v3578, %v3574
    %v3580 = vmul.f32 1.0, %v3579
    %v3581 = vmul.f32 %v3560, %v3200
    %v3582 = vmul.f32 %v3541, %v3561
    %v3583 = vadd.f32 %v3581, %v3582
    %v3584 = vtanh.pop %v3583
    %v3585 = vmul.f32 %v3580, %v3584
    %s3586 = scalar_lea.vmem [#allocation3], 56
    %3587 = vst [vmem:[%s3586] sm:$0xff] %v3585
    %v3588 = vld [vmem:[#allocation3] sm:$0xff]
    %v3589 = vld [vmem:[#allocation3 + $0x8] sm:$0xff]
    %v3590 = vld [vmem:[#allocation3 + $0x10] sm:$0xff]
    %v3591 = vld [vmem:[#allocation3 + $0x18] sm:$0xff]
    %v3592 = vld [vmem:[#allocation3 + $0x20] sm:$0xff]
    %v3593 = vld [vmem:[#allocation3 + $0x28] sm:$0xff]
    %v3594 = vld [vmem:[#allocation3 + $0x30] sm:$0xff]
    %v3595 = vld [vmem:[#allocation3 + $0x38] sm:$0xff]
    %v3596 = vld [vmem:[%s7] sm:$0xff]
    %v3597 = vld [vmem:[%s7 + $0x8] sm:$0xff]
    %v3598 = vld [vmem:[%s7 + $0x10] sm:$0xff]
    %v3599 = vld [vmem:[%s7 + $0x18] sm:$0xff]
    %v3600 = vld [vmem:[%s7 + $0x20] sm:$0xff]
    %v3601 = vld [vmem:[%s7 + $0x28] sm:$0xff]
    %v3602 = vld [vmem:[%s7 + $0x30] sm:$0xff]
    %v3603 = vld [vmem:[%s7 + $0x38] sm:$0xff]
    %v3604 = vld [vmem:[%s7 + $0x40] sm:$0xff]
    %v3605 = vld [vmem:[%s7 + $0x48] sm:$0xff]
    %v3606 = vld [vmem:[%s7 + $0x50] sm:$0xff]
    %v3607 = vld [vmem:[%s7 + $0x58] sm:$0xff]
    %v3608 = vld [vmem:[%s7 + $0x60] sm:$0xff]
    %v3609 = vld [vmem:[%s7 + $0x68] sm:$0xff]
    %v3610 = vld [vmem:[%s7 + $0x70] sm:$0xff]
    %v3611 = vld [vmem:[%s7 + $0x78] sm:$0xff]
    %s3612 = sld [smem:[#allocation4]]
    %v3613 = vstv %s3612
    %3614 = vmatpush.msra.mxu0 %v3611
    %3615 = vmatpush.msra.mxu0 %v3610
    %3616 = vmatpush.msra.mxu0 %v3609
    %3617 = vmatpush.msra.mxu0 %v3608
    %3618 = vmatpush.msra.mxu0 %v3607
    %3619 = vmatpush.msra.mxu0 %v3606
    %3620 = vmatpush.msra.mxu0 %v3605
    %3621 = vmatpush.msra.mxu0 %v3604
    %3622 = vmatpush.msra.mxu0 %v3603
    %3623 = vmatpush.msra.mxu0 %v3602
    %3624 = vmatpush.msra.mxu0 %v3601
    %3625 = vmatpush.msra.mxu0 %v3600
    %3626 = vmatpush.msra.mxu0 %v3599
    %3627 = vmatpush.msra.mxu0 %v3598
    %3628 = vmatpush.msra.mxu0 %v3597
    %3629 = vmatpush.msra.mxu0 %v3596
    %3630 = vmatmul.f32.gmra.mxu0 %v3588
    %v3631 = vpop.f32.mrf.mxu0
    %v3632 = vadd.f32 %v3613, %v3631
    %3633 = vmatmul.f32.gmra.mxu0 %v3589
    %v3634 = vpop.f32.mrf.mxu0
    %v3635 = vadd.f32 %v3613, %v3634
    %3636 = vmatmul.f32.gmra.mxu0 %v3590
    %v3637 = vpop.f32.mrf.mxu0
    %v3638 = vadd.f32 %v3613, %v3637
    %3639 = vmatmul.f32.gmra.mxu0 %v3591
    %v3640 = vpop.f32.mrf.mxu0
    %v3641 = vadd.f32 %v3613, %v3640
    %3642 = vmatmul.f32.gmra.mxu0 %v3592
    %v3643 = vpop.f32.mrf.mxu0
    %v3644 = vadd.f32 %v3613, %v3643
    %3645 = vmatmul.f32.gmra.mxu0 %v3593
    %v3646 = vpop.f32.mrf.mxu0
    %v3647 = vadd.f32 %v3613, %v3646
    %3648 = vmatmul.f32.gmra.mxu0 %v3594
    %v3649 = vpop.f32.mrf.mxu0
    %v3650 = vadd.f32 %v3613, %v3649
    %3651 = vmatmul.f32.gmra.mxu0 %v3595
    %v3652 = vpop.f32.mrf.mxu0
    %v3653 = vadd.f32 %v3613, %v3652
    %3654 = vdwg.mxu0
    %vm3655 = vcmask 7168
    %3656 = vst.msk [vmem:[%s9] sm:$0xff] %vm3655, %v3632
    %3657 = vst.msk [vmem:[%s9 + $0x8] sm:$0xff] %vm3655, %v3635
    %3658 = vst.msk [vmem:[%s9 + $0x10] sm:$0xff] %vm3655, %v3638
    %3659 = vst.msk [vmem:[%s9 + $0x18] sm:$0xff] %vm3655, %v3641
    %3660 = vst.msk [vmem:[%s9 + $0x20] sm:$0xff] %vm3655, %v3644
    %3661 = vst.msk [vmem:[%s9 + $0x28] sm:$0xff] %vm3655, %v3647
    %3662 = vst.msk [vmem:[%s9 + $0x30] sm:$0xff] %vm3655, %v3650
    %3663 = vst.msk [vmem:[%s9 + $0x38] sm:$0xff] %vm3655, %v3653
    // Predicated region
    $region50: #{tpu_custom_call.1} parent=1 // pred_check
      _
    $region51: #{tpu_custom_call.1} parent=1 // pred_check_branch
      %3665 = sbr.rel (0) target = $region53
    $region52: #{tpu_custom_call.1} parent=1 // pred_region
      _
    $region53: #{tpu_custom_call.1} parent=1 // pred_fallthru
      _
    // Predicated region
    $region54: #{tpu_custom_call.1} parent=1 // pred_check
      _
    $region55: #{tpu_custom_call.1} parent=1 // pred_check_branch
      %3667 = sbr.rel (0) target = $region57
    $region56: #{tpu_custom_call.1} parent=1 // pred_region
      _
    $region57: #{tpu_custom_call.1} parent=1 // pred_fallthru
      _
    %3668 = vsyncpa [#allocation6], 1
    %3669 = vsyncpa [#allocation8], 1

</llo_original>
